<compile_context>
chip_gen: v5e
topology: v5e:2x2
jax: 0.10.0
libtpu: 0.0.40
codegen_flags: <defaults>
</compile_context>

<pallas_src>
import jax
import jax.numpy as jnp
from jax import lax
from jax.experimental import pallas as pl
from jax.experimental.pallas import tpu as pltpu


# ----------------------------- in-kernel helpers -----------------------------

def _layernorm_noaffine(x, eps=1e-5):
    # PyTorch nn.LayerNorm core: biased variance, eps inside rsqrt.
    # gamma/beta are folded into the following Linear weights (frozen model).
    mu = jnp.mean(x, axis=-1, keepdims=True)
    xc = x - mu
    var = jnp.mean(xc * xc, axis=-1, keepdims=True)
    return xc * lax.rsqrt(var + eps)


def _gelu_exact(x):
    # F.gelu default = exact erf-based GELU (keeps PyTorch semantics).
    return 0.5 * x * (1.0 + lax.erf(x * 0.7071067811865476))


# --------------------------------- kernel ------------------------------------

def dti_head_kernel(
    mol_ref, prot_ref,                 # (TB, MOL_DIM), (TB, PROT_DIM) activations
    mw_ref, pw_ref,                    # LN-folded align weights, bf16
    w1m_ref, w1p_ref,                  # fc1 split into molecule-half / protein-half, bf16
    w2_ref, w3_ref,                    # fc2 / fc3 weights, bf16
    bias_ref,                          # (8, 2H) f32: [b1', b2, b3|0, w_out|0, b_out|0, ...]
    out_ref,                           # (TB, 1)
):
    H = mw_ref.shape[1]
    bf16 = jnp.bfloat16
    f32 = jnp.float32

    mol = mol_ref[...].astype(f32)
    prot = prot_ref[...].astype(f32)

    # molecule_align / protein_align (LN affine + align bias already folded away)
    m = _layernorm_noaffine(mol).astype(bf16)
    p = _layernorm_noaffine(prot).astype(bf16)
    ma = jnp.dot(m, mw_ref[...], preferred_element_type=f32)
    pa = jnp.dot(p, pw_ref[...], preferred_element_type=f32)

    # fc1 on concat([ma, pa], axis=1), written as a split matmul.
    h = (jnp.dot(ma.astype(bf16), w1m_ref[...], preferred_element_type=f32)
         + jnp.dot(pa.astype(bf16), w1p_ref[...], preferred_element_type=f32)
         + bias_ref[0:1, :])
    h = _gelu_exact(h)

    # fc2
    h = _gelu_exact(
        jnp.dot(h.astype(bf16), w2_ref[...], preferred_element_type=f32)
        + bias_ref[1:2, :])

    # fc3
    h = _gelu_exact(
        jnp.dot(h.astype(bf16), w3_ref[...], preferred_element_type=f32)
        + bias_ref[2:3, 0:H])

    # fc_out (single output column): VPU multiply + lane reduction instead of
    # a 1-column MXU matmul sitting on the latency tail.
    w_out_row = bias_ref[3:4, 0:H]      # (1, H)
    b_out = bias_ref[4:5, 0:1]          # (1, 1)
    out_ref[...] = jnp.sum(h * w_out_row, axis=-1, keepdims=True) + b_out


# --------------------------------- wrapper -----------------------------------

def dti_head(cls_molecule, cls_protein, fp, *, block_b=128):
    """fp: folded/packed params from fold_params(). block_b: batch tile
    (128 fills v5e MXU rows; use 256 on v6e/v7x for large batches)."""
    B, mol_dim = cls_molecule.shape
    prot_dim = cls_protein.shape[1]

    # Pad batch to a multiple of the batch tile (sliced back below).
    pad_b = ((B + block_b - 1) // block_b) * block_b
    if pad_b != B:
        cls_molecule = jnp.pad(cls_molecule, ((0, pad_b - B), (0, 0)))
        cls_protein = jnp.pad(cls_protein, ((0, pad_b - B), (0, 0)))
    grid = (pad_b // block_b,)

    act_map = lambda i: (i, 0)     # new batch block each grid step
    w_map = lambda i: (0, 0)       # weights resident across grid steps

    # TODO(synk): if hidden_dim / tiles grow on v7x (32 MiB scoped VMEM),
    # add pipeline_mode=pl.Buffered(1) to the weight BlockSpecs or raise
    # vmem_limit_bytes; unnecessary at this (<1 MB weight) footprint.
    out = pl.pallas_call(
        dti_head_kernel,
        out_shape=jax.ShapeDtypeStruct((pad_b, 1), jnp.float32),
        grid=grid,
        in_specs=[
            pl.BlockSpec((block_b, mol_dim), act_map),
            pl.BlockSpec((block_b, prot_dim), act_map),
            pl.BlockSpec(fp["mw"].shape, w_map),
            pl.BlockSpec(fp["pw"].shape, w_map),
            pl.BlockSpec(fp["w1m"].shape, w_map),
            pl.BlockSpec(fp["w1p"].shape, w_map),
            pl.BlockSpec(fp["w2"].shape, w_map),
            pl.BlockSpec(fp["w3"].shape, w_map),
            pl.BlockSpec(fp["bias"].shape, w_map),
        ],
        out_specs=pl.BlockSpec((block_b, 1), act_map),
        compiler_params=pltpu.CompilerParams(
            dimension_semantics=("parallel",)),   # megacore sharding on v7x
    )(cls_molecule, cls_protein, fp["mw"], fp["pw"], fp["w1m"], fp["w1p"],
      fp["w2"], fp["w3"], fp["bias"])
    return out[:B]


# ------------------------------ param building -------------------------------

def make_raw_params(key, hidden_dim, mol_dim, prot_dim):
    """Synthetic PyTorch-style params (Linear as [in, out]; LN affine nontrivial
    so that the gamma/beta folding path is actually exercised)."""
    ks = jax.random.split(key, 10)

    def lin(k, fan_in, fan_out):
        bound = 1.0 / jnp.sqrt(jnp.float32(fan_in))
        kw, kb = jax.random.split(k)
        w = jax.random.uniform(kw, (fan_in, fan_out), jnp.float32, -bound, bound)
        b = jax.random.uniform(kb, (fan_out,), jnp.float32, -bound, bound)
        return w, b

    H, H2 = hidden_dim, 2 * hidden_dim
    mol_w, mol_b = lin(ks[0], mol_dim, H)
    prot_w, prot_b = lin(ks[1], prot_dim, H)
    w1, b1 = lin(ks[2], H2, H2)
    w2, b2 = lin(ks[3], H2, H2)
    w3, b3 = lin(ks[4], H2, H)
    w_out, b_out = lin(ks[5], H, 1)

    return dict(
        mol_ln_g=1.0 + 0.1 * jax.random.normal(ks[6], (mol_dim,), jnp.float32),
        mol_ln_b=0.1 * jax.random.normal(ks[7], (mol_dim,), jnp.float32),
        prot_ln_g=1.0 + 0.1 * jax.random.normal(ks[8], (prot_dim,), jnp.float32),
        prot_ln_b=0.1 * jax.random.normal(ks[9], (prot_dim,), jnp.float32),
        mol_w=mol_w, mol_b=mol_b, prot_w=prot_w, prot_b=prot_b,
        w1=w1, b1=b1, w2=w2, b2=b2, w3=w3, b3=b3, w_out=w_out, b_out=b_out,
    )


def fold_params(raw, compute_dtype=jnp.bfloat16):
    """Fold LN gamma/beta into the align weights, fold the align biases into
    fc1's bias (all in f32), split w1 into mol/prot halves, cast weight
    matrices to bf16, and stack all remaining small vectors into one array."""
    H = raw["mol_w"].shape[1]
    H2 = 2 * H

    mw = raw["mol_ln_g"][:, None] * raw["mol_w"]
    pw = raw["prot_ln_g"][:, None] * raw["prot_w"]
    bm = raw["mol_ln_b"] @ raw["mol_w"] + raw["mol_b"]       # (H,)
    bp = raw["prot_ln_b"] @ raw["prot_w"] + raw["prot_b"]    # (H,)

    w1m = raw["w1"][:H, :]
    w1p = raw["w1"][H:, :]
    b1f = raw["b1"] + bm @ w1m + bp @ w1p                    # (2H,)

    bias = jnp.zeros((8, H2), jnp.float32)
    bias = bias.at[0, :].set(b1f)
    bias = bias.at[1, :].set(raw["b2"])
    bias = bias.at[2, :H].set(raw["b3"])
    bias = bias.at[3, :H].set(raw["w_out"][:, 0])
    bias = bias.at[4, 0].set(raw["b_out"][0])

    cast = lambda w: w.astype(compute_dtype)
    return dict(mw=cast(mw), pw=cast(pw), w1m=cast(w1m), w1p=cast(w1p),
                w2=cast(raw["w2"]), w3=cast(raw["w3"]), bias=bias)


# ----------------------------- pure-JAX reference ----------------------------

def dti_head_ref(cls_molecule, cls_protein, raw):
    """Plain f32 reference matching the PyTorch forward exactly."""
    def ln(x, g, b, eps=1e-5):
        mu = jnp.mean(x, -1, keepdims=True)
        var = jnp.mean((x - mu) ** 2, -1, keepdims=True)
        return (x - mu) / jnp.sqrt(var + eps) * g + b

    gelu = lambda x: jax.nn.gelu(x, approximate=False)
    m = ln(cls_molecule, raw["mol_ln_g"], raw["mol_ln_b"]) @ raw["mol_w"] + raw["mol_b"]
    p = ln(cls_protein, raw["prot_ln_g"], raw["prot_ln_b"]) @ raw["prot_w"] + raw["prot_b"]
    x = jnp.concatenate([m, p], axis=1)
    x = gelu(x @ raw["w1"] + raw["b1"])
    x = gelu(x @ raw["w2"] + raw["b2"])
    x = gelu(x @ raw["w3"] + raw["b3"])
    return x @ raw["w_out"] + raw["b_out"]


# ----------------------------------- main -------------------------------------

if __name__ == "__main__":
    # TODO(synk): the frozen molecule/protein transformer encoders are external
    # pretrained sub-modules; their pooler_output vectors are the kernel inputs.
    B = 200              # non-multiple of the tile -> exercises batch padding
    HIDDEN = 128         # hidden_dim (small version of 512)
    MOL_DIM = 128        # molecule_input_dim
    PROT_DIM = 256       # protein_input_dim (small version of 1024)
    BLOCK_B = 128        # batch tile -> grid of 2 blocks (pipelining + megacore)

    key = jax.random.PRNGKey(0)
    k_mol, k_prot, k_params = jax.random.split(key, 3)

    cls_molecule = jax.random.normal(k_mol, (B, MOL_DIM), jnp.float32)
    cls_protein = jax.random.normal(k_prot, (B, PROT_DIM), jnp.float32)

    raw_params = make_raw_params(k_params, HIDDEN, MOL_DIM, PROT_DIM)
    packed_params = fold_params(raw_params)

    out = dti_head(cls_molecule, cls_protein, packed_params, block_b=BLOCK_B)
    out = jax.block_until_ready(out)
    assert out.shape == (B, 1), out.shape

    ref = jax.block_until_ready(dti_head_ref(cls_molecule, cls_protein, raw_params))
    # Kernel uses bf16 matmul operands with f32 accumulation; loosen tolerance
    # vs. the pure-f32 reference accordingly.
    assert jnp.allclose(out, ref, atol=5e-2, rtol=5e-2), (
        float(jnp.max(jnp.abs(out - ref))))

    print("KERNEL_OK")
</pallas_src>

<mosaic_0001>
module attributes {stable_mosaic.version = 11 : i64} {
  func.func @dti_head_kernel(%arg0: i32, %arg1: memref<128x128xf32, #tpu.memory_space<vmem>>, %arg2: memref<128x256xf32, #tpu.memory_space<vmem>>, %arg3: memref<128x128xbf16, #tpu.memory_space<vmem>>, %arg4: memref<256x128xbf16, #tpu.memory_space<vmem>>, %arg5: memref<128x256xbf16, #tpu.memory_space<vmem>>, %arg6: memref<128x256xbf16, #tpu.memory_space<vmem>>, %arg7: memref<256x256xbf16, #tpu.memory_space<vmem>>, %arg8: memref<256x128xbf16, #tpu.memory_space<vmem>>, %arg9: memref<8x256xf32, #tpu.memory_space<vmem>>, %arg10: memref<128x1xf32, #tpu.memory_space<vmem>>) attributes {dimension_semantics = [#tpu.dimension_semantics<parallel>], iteration_bounds = array<i64: 2>, scalar_prefetch = 0 : i64, scratch_operands = 0 : i64, tpu.core_type = #tpu.core_type<tc>, window_params = [{transform_indices = @transform_0, window_bounds = array<i64: 128, 128>}, {transform_indices = @transform_1, window_bounds = array<i64: 128, 256>}, {pipeline_mode = #tpu.pipeline_mode<synchronous>, transform_indices = @transform_2, window_bounds = array<i64: 128, 128>}, {pipeline_mode = #tpu.pipeline_mode<synchronous>, transform_indices = @transform_3, window_bounds = array<i64: 256, 128>}, {pipeline_mode = #tpu.pipeline_mode<synchronous>, transform_indices = @transform_4, window_bounds = array<i64: 128, 256>}, {pipeline_mode = #tpu.pipeline_mode<synchronous>, transform_indices = @transform_5, window_bounds = array<i64: 128, 256>}, {pipeline_mode = #tpu.pipeline_mode<synchronous>, transform_indices = @transform_6, window_bounds = array<i64: 256, 256>}, {pipeline_mode = #tpu.pipeline_mode<synchronous>, transform_indices = @transform_7, window_bounds = array<i64: 256, 128>}, {pipeline_mode = #tpu.pipeline_mode<synchronous>, transform_indices = @transform_8, window_bounds = array<i64: 8, 256>}, {transform_indices = @transform_9, window_bounds = array<i64: 128, 1>}]} {
    %c0 = arith.constant 0 : index
    %c0_0 = arith.constant 0 : index
    %0 = vector.load %arg1[%c0, %c0_0] : memref<128x128xf32, #tpu.memory_space<vmem>>, vector<128x128xf32>
    %c0_1 = arith.constant 0 : index
    %c0_2 = arith.constant 0 : index
    %1 = vector.load %arg2[%c0_1, %c0_2] : memref<128x256xf32, #tpu.memory_space<vmem>>, vector<128x256xf32>
    %cst = arith.constant dense<0.000000e+00> : vector<128xf32>
    %2 = vector.multi_reduction <add>, %0, %cst [1] : vector<128x128xf32> to vector<128xf32>
    %3 = vector.shape_cast %2 : vector<128xf32> to vector<128x1xf32>
    %cst_3 = arith.constant 1.280000e+02 : f32
    %4 = vector.broadcast %cst_3 : f32 to vector<128x1xf32>
    %5 = arith.divf %3, %4 : vector<128x1xf32>
    %6 = vector.broadcast %5 : vector<128x1xf32> to vector<128x128xf32>
    %7 = arith.subf %0, %6 : vector<128x128xf32>
    %8 = arith.mulf %7, %7 : vector<128x128xf32>
    %cst_4 = arith.constant dense<0.000000e+00> : vector<128xf32>
    %9 = vector.multi_reduction <add>, %8, %cst_4 [1] : vector<128x128xf32> to vector<128xf32>
    %10 = vector.shape_cast %9 : vector<128xf32> to vector<128x1xf32>
    %cst_5 = arith.constant 1.280000e+02 : f32
    %11 = vector.broadcast %cst_5 : f32 to vector<128x1xf32>
    %12 = arith.divf %10, %11 : vector<128x1xf32>
    %cst_6 = arith.constant 9.99999974E-6 : f32
    %13 = vector.broadcast %cst_6 : f32 to vector<128x1xf32>
    %14 = arith.addf %12, %13 : vector<128x1xf32>
    %15 = math.rsqrt %14 : vector<128x1xf32>
    %16 = vector.broadcast %15 : vector<128x1xf32> to vector<128x128xf32>
    %17 = arith.mulf %7, %16 : vector<128x128xf32>
    %18 = arith.truncf %17 : vector<128x128xf32> to vector<128x128xbf16>
    %cst_7 = arith.constant dense<0.000000e+00> : vector<128xf32>
    %19 = vector.multi_reduction <add>, %1, %cst_7 [1] : vector<128x256xf32> to vector<128xf32>
    %20 = vector.shape_cast %19 : vector<128xf32> to vector<128x1xf32>
    %cst_8 = arith.constant 2.560000e+02 : f32
    %21 = vector.broadcast %cst_8 : f32 to vector<128x1xf32>
    %22 = arith.divf %20, %21 : vector<128x1xf32>
    %23 = vector.broadcast %22 : vector<128x1xf32> to vector<128x256xf32>
    %24 = arith.subf %1, %23 : vector<128x256xf32>
    %25 = arith.mulf %24, %24 : vector<128x256xf32>
    %cst_9 = arith.constant dense<0.000000e+00> : vector<128xf32>
    %26 = vector.multi_reduction <add>, %25, %cst_9 [1] : vector<128x256xf32> to vector<128xf32>
    %27 = vector.shape_cast %26 : vector<128xf32> to vector<128x1xf32>
    %cst_10 = arith.constant 2.560000e+02 : f32
    %28 = vector.broadcast %cst_10 : f32 to vector<128x1xf32>
    %29 = arith.divf %27, %28 : vector<128x1xf32>
    %cst_11 = arith.constant 9.99999974E-6 : f32
    %30 = vector.broadcast %cst_11 : f32 to vector<128x1xf32>
    %31 = arith.addf %29, %30 : vector<128x1xf32>
    %32 = math.rsqrt %31 : vector<128x1xf32>
    %33 = vector.broadcast %32 : vector<128x1xf32> to vector<128x256xf32>
    %34 = arith.mulf %24, %33 : vector<128x256xf32>
    %35 = arith.truncf %34 : vector<128x256xf32> to vector<128x256xbf16>
    %c0_12 = arith.constant 0 : index
    %c0_13 = arith.constant 0 : index
    %36 = vector.load %arg3[%c0_12, %c0_13] : memref<128x128xbf16, #tpu.memory_space<vmem>>, vector<128x128xbf16>
    %cst_14 = arith.constant dense<0.000000e+00> : vector<128x128xf32>
    %37 = tpu.matmul %18, %36, %cst_14 {dimension_numbers = #tpu.dot_dimension_numbers<[1], [0], [0], [1], [0, 0, 1, 1], [], []>} : vector<128x128xbf16>, vector<128x128xbf16>, vector<128x128xf32> -> vector<128x128xf32>
    %c0_15 = arith.constant 0 : index
    %c0_16 = arith.constant 0 : index
    %38 = vector.load %arg4[%c0_15, %c0_16] : memref<256x128xbf16, #tpu.memory_space<vmem>>, vector<256x128xbf16>
    %cst_17 = arith.constant dense<0.000000e+00> : vector<128x128xf32>
    %39 = tpu.matmul %35, %38, %cst_17 {dimension_numbers = #tpu.dot_dimension_numbers<[1], [0], [0], [1], [0, 0, 1, 1], [], []>} : vector<128x256xbf16>, vector<256x128xbf16>, vector<128x128xf32> -> vector<128x128xf32>
    %40 = arith.truncf %37 : vector<128x128xf32> to vector<128x128xbf16>
    %c0_18 = arith.constant 0 : index
    %c0_19 = arith.constant 0 : index
    %41 = vector.load %arg5[%c0_18, %c0_19] : memref<128x256xbf16, #tpu.memory_space<vmem>>, vector<128x256xbf16>
    %cst_20 = arith.constant dense<0.000000e+00> : vector<128x256xf32>
    %42 = tpu.matmul %40, %41, %cst_20 {dimension_numbers = #tpu.dot_dimension_numbers<[1], [0], [0], [1], [0, 0, 1, 1], [], []>} : vector<128x128xbf16>, vector<128x256xbf16>, vector<128x256xf32> -> vector<128x256xf32>
    %43 = arith.truncf %39 : vector<128x128xf32> to vector<128x128xbf16>
    %c0_21 = arith.constant 0 : index
    %c0_22 = arith.constant 0 : index
    %44 = vector.load %arg6[%c0_21, %c0_22] : memref<128x256xbf16, #tpu.memory_space<vmem>>, vector<128x256xbf16>
    %cst_23 = arith.constant dense<0.000000e+00> : vector<128x256xf32>
    %45 = tpu.matmul %43, %44, %cst_23 {dimension_numbers = #tpu.dot_dimension_numbers<[1], [0], [0], [1], [0, 0, 1, 1], [], []>} : vector<128x128xbf16>, vector<128x256xbf16>, vector<128x256xf32> -> vector<128x256xf32>
    %46 = arith.addf %42, %45 : vector<128x256xf32>
    %c0_24 = arith.constant 0 : index
    %c0_25 = arith.constant 0 : index
    %47 = vector.load %arg9[%c0_24, %c0_25] : memref<8x256xf32, #tpu.memory_space<vmem>>, vector<1x256xf32>
    %48 = vector.broadcast %47 : vector<1x256xf32> to vector<128x256xf32>
    %49 = arith.addf %46, %48 : vector<128x256xf32>
    %cst_26 = arith.constant 5.000000e-01 : f32
    %50 = vector.broadcast %cst_26 : f32 to vector<128x256xf32>
    %51 = arith.mulf %50, %49 : vector<128x256xf32>
    %cst_27 = arith.constant 0.707106769 : f32
    %52 = vector.broadcast %cst_27 : f32 to vector<128x256xf32>
    %53 = arith.mulf %49, %52 : vector<128x256xf32>
    %54 = math.erf %53 : vector<128x256xf32>
    %cst_28 = arith.constant 1.000000e+00 : f32
    %55 = vector.broadcast %cst_28 : f32 to vector<128x256xf32>
    %56 = arith.addf %55, %54 : vector<128x256xf32>
    %57 = arith.mulf %51, %56 : vector<128x256xf32>
    %58 = arith.truncf %57 : vector<128x256xf32> to vector<128x256xbf16>
    %c0_29 = arith.constant 0 : index
    %c0_30 = arith.constant 0 : index
    %59 = vector.load %arg7[%c0_29, %c0_30] : memref<256x256xbf16, #tpu.memory_space<vmem>>, vector<256x256xbf16>
    %cst_31 = arith.constant dense<0.000000e+00> : vector<128x256xf32>
    %60 = tpu.matmul %58, %59, %cst_31 {dimension_numbers = #tpu.dot_dimension_numbers<[1], [0], [0], [1], [0, 0, 1, 1], [], []>} : vector<128x256xbf16>, vector<256x256xbf16>, vector<128x256xf32> -> vector<128x256xf32>
    %c1 = arith.constant 1 : index
    %c0_32 = arith.constant 0 : index
    %61 = vector.load %arg9[%c1, %c0_32] : memref<8x256xf32, #tpu.memory_space<vmem>>, vector<1x256xf32>
    %62 = vector.broadcast %61 : vector<1x256xf32> to vector<128x256xf32>
    %63 = arith.addf %60, %62 : vector<128x256xf32>
    %cst_33 = arith.constant 5.000000e-01 : f32
    %64 = vector.broadcast %cst_33 : f32 to vector<128x256xf32>
    %65 = arith.mulf %64, %63 : vector<128x256xf32>
    %cst_34 = arith.constant 0.707106769 : f32
    %66 = vector.broadcast %cst_34 : f32 to vector<128x256xf32>
    %67 = arith.mulf %63, %66 : vector<128x256xf32>
    %68 = math.erf %67 : vector<128x256xf32>
    %cst_35 = arith.constant 1.000000e+00 : f32
    %69 = vector.broadcast %cst_35 : f32 to vector<128x256xf32>
    %70 = arith.addf %69, %68 : vector<128x256xf32>
    %71 = arith.mulf %65, %70 : vector<128x256xf32>
    %72 = arith.truncf %71 : vector<128x256xf32> to vector<128x256xbf16>
    %c0_36 = arith.constant 0 : index
    %c0_37 = arith.constant 0 : index
    %73 = vector.load %arg8[%c0_36, %c0_37] : memref<256x128xbf16, #tpu.memory_space<vmem>>, vector<256x128xbf16>
    %cst_38 = arith.constant dense<0.000000e+00> : vector<128x128xf32>
    %74 = tpu.matmul %72, %73, %cst_38 {dimension_numbers = #tpu.dot_dimension_numbers<[1], [0], [0], [1], [0, 0, 1, 1], [], []>} : vector<128x256xbf16>, vector<256x128xbf16>, vector<128x128xf32> -> vector<128x128xf32>
    %c2 = arith.constant 2 : index
    %c0_39 = arith.constant 0 : index
    %75 = vector.load %arg9[%c2, %c0_39] : memref<8x256xf32, #tpu.memory_space<vmem>>, vector<1x128xf32>
    %76 = vector.broadcast %75 : vector<1x128xf32> to vector<128x128xf32>
    %77 = arith.addf %74, %76 : vector<128x128xf32>
    %cst_40 = arith.constant 5.000000e-01 : f32
    %78 = vector.broadcast %cst_40 : f32 to vector<128x128xf32>
    %79 = arith.mulf %78, %77 : vector<128x128xf32>
    %cst_41 = arith.constant 0.707106769 : f32
    %80 = vector.broadcast %cst_41 : f32 to vector<128x128xf32>
    %81 = arith.mulf %77, %80 : vector<128x128xf32>
    %82 = math.erf %81 : vector<128x128xf32>
    %cst_42 = arith.constant 1.000000e+00 : f32
    %83 = vector.broadcast %cst_42 : f32 to vector<128x128xf32>
    %84 = arith.addf %83, %82 : vector<128x128xf32>
    %85 = arith.mulf %79, %84 : vector<128x128xf32>
    %c3 = arith.constant 3 : index
    %c0_43 = arith.constant 0 : index
    %86 = vector.load %arg9[%c3, %c0_43] : memref<8x256xf32, #tpu.memory_space<vmem>>, vector<1x128xf32>
    %c4 = arith.constant 4 : index
    %c0_44 = arith.constant 0 : index
    %87 = vector.load %arg9[%c4, %c0_44] : memref<8x256xf32, #tpu.memory_space<vmem>>, vector<1x1xf32>
    %88 = vector.broadcast %86 : vector<1x128xf32> to vector<128x128xf32>
    %89 = arith.mulf %85, %88 : vector<128x128xf32>
    %cst_45 = arith.constant dense<0.000000e+00> : vector<128xf32>
    %90 = vector.multi_reduction <add>, %89, %cst_45 [1] : vector<128x128xf32> to vector<128xf32>
    %91 = vector.shape_cast %90 : vector<128xf32> to vector<128x1xf32>
    %92 = vector.broadcast %87 : vector<1x1xf32> to vector<128x1xf32>
    %93 = arith.addf %91, %92 : vector<128x1xf32>
    %c0_46 = arith.constant 0 : index
    %c0_47 = arith.constant 0 : index
    %94 = vector.load %arg10[%c0_46, %c0_47] : memref<128x1xf32, #tpu.memory_space<vmem>>, vector<128x1xf32>
    tpu.vector_store %arg10[%c0_46, %c0_47], %93 {strides = array<i32>} : memref<128x1xf32, #tpu.memory_space<vmem>>, vector<128x1xf32>,
    return
  }
  func.func @transform_0(%arg0: i32) -> (i32, i32) {
    %c0_i32 = arith.constant 0 : i32
    %c0_i32_0 = arith.constant 0 : i32
    return %arg0, %c0_i32 : i32, i32
  }
  func.func @transform_1(%arg0: i32) -> (i32, i32) {
    %c0_i32 = arith.constant 0 : i32
    %c0_i32_0 = arith.constant 0 : i32
    return %arg0, %c0_i32 : i32, i32
  }
  func.func @transform_2(%arg0: i32) -> (i32, i32) {
    %c0_i32 = arith.constant 0 : i32
    %c0_i32_0 = arith.constant 0 : i32
    %c0_i32_1 = arith.constant 0 : i32
    return %c0_i32, %c0_i32_0 : i32, i32
  }
  func.func @transform_3(%arg0: i32) -> (i32, i32) {
    %c0_i32 = arith.constant 0 : i32
    %c0_i32_0 = arith.constant 0 : i32
    %c0_i32_1 = arith.constant 0 : i32
    return %c0_i32, %c0_i32_0 : i32, i32
  }
  func.func @transform_4(%arg0: i32) -> (i32, i32) {
    %c0_i32 = arith.constant 0 : i32
    %c0_i32_0 = arith.constant 0 : i32
    %c0_i32_1 = arith.constant 0 : i32
    return %c0_i32, %c0_i32_0 : i32, i32
  }
  func.func @transform_5(%arg0: i32) -> (i32, i32) {
    %c0_i32 = arith.constant 0 : i32
    %c0_i32_0 = arith.constant 0 : i32
    %c0_i32_1 = arith.constant 0 : i32
    return %c0_i32, %c0_i32_0 : i32, i32
  }
  func.func @transform_6(%arg0: i32) -> (i32, i32) {
    %c0_i32 = arith.constant 0 : i32
    %c0_i32_0 = arith.constant 0 : i32
    %c0_i32_1 = arith.constant 0 : i32
    return %c0_i32, %c0_i32_0 : i32, i32
  }
  func.func @transform_7(%arg0: i32) -> (i32, i32) {
    %c0_i32 = arith.constant 0 : i32
    %c0_i32_0 = arith.constant 0 : i32
    %c0_i32_1 = arith.constant 0 : i32
    return %c0_i32, %c0_i32_0 : i32, i32
  }
  func.func @transform_8(%arg0: i32) -> (i32, i32) {
    %c0_i32 = arith.constant 0 : i32
    %c0_i32_0 = arith.constant 0 : i32
    %c0_i32_1 = arith.constant 0 : i32
    return %c0_i32, %c0_i32_0 : i32, i32
  }
  func.func @transform_9(%arg0: i32) -> (i32, i32) {
    %c0_i32 = arith.constant 0 : i32
    %c0_i32_0 = arith.constant 0 : i32
    return %arg0, %c0_i32 : i32, i32
  }
}

</mosaic_0001>

<llo_original>
// kernel: tpu_custom_call.1
$region0: #{tpu_custom_call.1}
  #allocation0 [shape = 'u32[]', space=smem, size = 0x4, offset = 0x4, fixed_abs, tag = 'smem constant byte address 0x4 - core index']
  #allocation1 [shape = 'u32[72,128]{1,0:T(1,128)}', space=vmem, size = 0x9000, scoped, tag = 'internal scratch']
  %s0 = inlined_call_operand.hbm [shape: f32[256,128], index: 0, kind: input, shape index: {}]
  %s1 = inlined_call_operand.hbm [shape: f32[256,256], index: 1, kind: input, shape index: {}]
  %s2 = inlined_call_operand.hbm [shape: bf16[128,128], index: 2, kind: input, shape index: {}]
  %s3 = inlined_call_operand.hbm [shape: bf16[256,128], index: 3, kind: input, shape index: {}]
  %s4 = inlined_call_operand.hbm [shape: bf16[128,256], index: 4, kind: input, shape index: {}]
  %s5 = inlined_call_operand.hbm [shape: bf16[128,256], index: 5, kind: input, shape index: {}]
  %s6 = inlined_call_operand.hbm [shape: bf16[256,256], index: 6, kind: input, shape index: {}]
  %s7 = inlined_call_operand.hbm [shape: bf16[256,128], index: 7, kind: input, shape index: {}]
  %s8 = inlined_call_operand.hbm [shape: f32[8,256], index: 8, kind: input, shape index: {}]
  %s9 = inlined_call_operand.vmem [shape: f32[256,1], index: 9, kind: output, shape index: {}]
  %s10 = sld [smem:[#allocation0]]
  $region105: #{tpu_custom_call.1} parent=0
    _
  %s12 = ssub.s32 1, %s10
  %s13 = scalar_select 0, %s12, %s10
  $region1: #{tpu_custom_call.1} parent=0
    #allocation2 [shape = 'u8[131072]{0}', space=vmem, size = 0x20000, scoped, tag = 'input window, operand 0']
    #allocation3 [shape = 's32[2]{0}', space=sflag, size = 0x8, scoped, tag = 'scoped memory for tpu_custom_call.1']
    #allocation4 [shape = 'u8[262144]{0}', space=vmem, size = 0x40000, scoped, tag = 'input window, operand 1']
    #allocation5 [shape = 's32[2]{0}', space=sflag, size = 0x8, scoped, tag = 'scoped memory for tpu_custom_call.1']
    #allocation6 [shape = 'u8[32768]{0}', space=vmem, size = 0x8000, scoped, tag = 'input window, operand 2, single buffered']
    #allocation7 [shape = 'u8[65536]{0}', space=vmem, size = 0x10000, scoped, tag = 'input window, operand 3, single buffered']
    #allocation8 [shape = 's32[1]{0}', space=sflag, size = 0x4, scoped, tag = 'scoped memory for tpu_custom_call.1']
    #allocation9 [shape = 'u8[65536]{0}', space=vmem, size = 0x10000, scoped, tag = 'input window, operand 4, single buffered']
    #allocation10 [shape = 'u8[65536]{0}', space=vmem, size = 0x10000, scoped, tag = 'input window, operand 5, single buffered']
    #allocation11 [shape = 's32[1]{0}', space=sflag, size = 0x4, scoped, tag = 'scoped memory for tpu_custom_call.1']
    #allocation12 [shape = 'u8[131072]{0}', space=vmem, size = 0x20000, scoped, tag = 'input window, operand 6, single buffered']
    #allocation13 [shape = 'u8[65536]{0}', space=vmem, size = 0x10000, scoped, tag = 'input window, operand 7, single buffered']
    #allocation14 [shape = 's32[1]{0}', space=sflag, size = 0x4, scoped, tag = 'scoped memory for tpu_custom_call.1']
    #allocation15 [shape = 'u8[8192]{0}', space=vmem, size = 0x2000, scoped, tag = 'input window, operand 8, single buffered']
    %14 = vsyncpa [#allocation3], 0
    %s15 = scalar_lea.sflag [#allocation3], 1
    %16 = vsyncpa %s15, 0
    %17 = vsyncpa [#allocation5], 0
    %s18 = scalar_lea.sflag [#allocation5], 1
    %19 = vsyncpa %s18, 0
    %20 = vsyncpa [#allocation8], 0
    %21 = vsyncpa [#allocation11], 0
    %22 = vsyncpa [#allocation14], 0
    loop: start=0, step=1, limit=4
    $region2: #{tpu_custom_call.1} parent=1 // loop_pre_header
      _
    $region3: #{tpu_custom_call.1} parent=1 // loop_header
      %s24 = sphi 0, %s28
      %p25 = scmp.ge.s32.totalorder %s24, 4
      %s34 = sphi 0, %s36
      %s37 = sphi 0, %s34
      %s38 = sphi 0, %s37
      %s54 = sphi 0, %s38
      %s60 = sphi 0, %s62
      %s63 = sphi 0, %s60
      %s64 = sphi 0, %s63
      %s80 = sphi 0, %s64
      %s84 = sphi 0, %s84
      %s86 = sphi 0, %s84
      %s87 = sphi 0, %s86
      %s101 = sphi 0, %s87
      %s105 = sphi 0, %s105
      %s107 = sphi 0, %s105
      %s108 = sphi 0, %s107
      %s122 = sphi 0, %s108
      %s126 = sphi 0, %s126
      %s128 = sphi 0, %s126
      %s129 = sphi 0, %s128
      %s143 = sphi 0, %s129
      %s147 = sphi 0, %s147
      %s149 = sphi 0, %s147
      %s150 = sphi 0, %s149
      %s164 = sphi 0, %s150
      %s168 = sphi 0, %s168
      %s170 = sphi 0, %s168
      %s171 = sphi 0, %s170
      %s185 = sphi 0, %s171
      %s189 = sphi 0, %s189
      %s191 = sphi 0, %s189
      %s192 = sphi 0, %s191
      %s206 = sphi 0, %s192
      %s210 = sphi 0, %s210
      %s212 = sphi 0, %s210
      %s213 = sphi 0, %s212
      %s227 = sphi 0, %s213
      %s233 = sphi 0, %s235
      %s236 = sphi 0, %s233
      %s237 = sphi 0, %s236
      %s253 = sphi 0, %s237
    $region4: #{tpu_custom_call.1} parent=1 // loop_header_branch
      %27 = sbr.rel (%p25) target = $region8
    $region5: #{tpu_custom_call.1} parent=1 // loop_body
      %s29 = ssub.s32 %s24, 1
      %s30 = ssub.s32 %s24, 2
      %s31 = sadd.s32 %s24, 1
      %s32 = ssub.s32 %s24, %s31
      %p33 = scmp.eq.s32.totalorder %s32, 0
      %s35 = sadd.s32 %s34, 1
      %s36 = scalar_select %p33, %s34, %s35
      %p39 = pneg %p33
      %p40 = scmp.eq.s32.totalorder %s24, 1
      %p41 = por %p39, %p40
      %p42 = scmp.ne.s32.totalorder %s34, %s37
      %p43 = scmp.eq.s32.totalorder %s24, 0
      %p44 = por %p42, %p43
      %p45 = scmp.ne.s32.totalorder %s34, %s37
      %p46 = scmp.eq.s32.totalorder %s29, 1
      %p47 = por %p45, %p46
      %p48 = scmp.ne.s32.totalorder %s37, %s38
      %p49 = scmp.eq.s32.totalorder %s29, 0
      %p50 = por %p48, %p49
      %p51 = scmp.ne.s32.totalorder %s37, %s38
      %p52 = scmp.eq.s32.totalorder %s30, 1
      %p53 = por %p51, %p52
      %p55 = scmp.ne.s32.totalorder %s38, %s54
      %p56 = scmp.eq.s32.totalorder %s30, 0
      %p57 = por %p55, %p56
      %s58 = ssub.s32 %s24, %s31
      %p59 = scmp.eq.s32.totalorder %s58, 0
      %s61 = sadd.s32 %s60, 1
      %s62 = scalar_select %p59, %s60, %s61
      %p65 = pneg %p59
      %p66 = scmp.eq.s32.totalorder %s24, 1
      %p67 = por %p65, %p66
      %p68 = scmp.ne.s32.totalorder %s60, %s63
      %p69 = scmp.eq.s32.totalorder %s24, 0
      %p70 = por %p68, %p69
      %p71 = scmp.ne.s32.totalorder %s60, %s63
      %p72 = scmp.eq.s32.totalorder %s29, 1
      %p73 = por %p71, %p72
      %p74 = scmp.ne.s32.totalorder %s63, %s64
      %p75 = scmp.eq.s32.totalorder %s29, 0
      %p76 = por %p74, %p75
      %p77 = scmp.ne.s32.totalorder %s63, %s64
      %p78 = scmp.eq.s32.totalorder %s30, 1
      %p79 = por %p77, %p78
      %p81 = scmp.ne.s32.totalorder %s64, %s80
      %p82 = scmp.eq.s32.totalorder %s30, 0
      %p83 = por %p81, %p82
      %s85 = sadd.s32 %s84, 1
      %p88 = scmp.eq.s32.totalorder %s24, 1
      %p89 = scmp.ne.s32.totalorder %s84, %s86
      %p90 = scmp.eq.s32.totalorder %s24, 0
      %p91 = por %p89, %p90
      %p92 = scmp.ne.s32.totalorder %s84, %s86
      %p93 = scmp.eq.s32.totalorder %s29, 1
      %p94 = por %p92, %p93
      %p95 = scmp.ne.s32.totalorder %s86, %s87
      %p96 = scmp.eq.s32.totalorder %s29, 0
      %p97 = por %p95, %p96
      %p98 = scmp.ne.s32.totalorder %s86, %s87
      %p99 = scmp.eq.s32.totalorder %s30, 1
      %p100 = por %p98, %p99
      %p102 = scmp.ne.s32.totalorder %s87, %s101
      %p103 = scmp.eq.s32.totalorder %s30, 0
      %p104 = por %p102, %p103
      %s106 = sadd.s32 %s105, 1
      %p109 = scmp.eq.s32.totalorder %s24, 1
      %p110 = scmp.ne.s32.totalorder %s105, %s107
      %p111 = scmp.eq.s32.totalorder %s24, 0
      %p112 = por %p110, %p111
      %p113 = scmp.ne.s32.totalorder %s105, %s107
      %p114 = scmp.eq.s32.totalorder %s29, 1
      %p115 = por %p113, %p114
      %p116 = scmp.ne.s32.totalorder %s107, %s108
      %p117 = scmp.eq.s32.totalorder %s29, 0
      %p118 = por %p116, %p117
      %p119 = scmp.ne.s32.totalorder %s107, %s108
      %p120 = scmp.eq.s32.totalorder %s30, 1
      %p121 = por %p119, %p120
      %p123 = scmp.ne.s32.totalorder %s108, %s122
      %p124 = scmp.eq.s32.totalorder %s30, 0
      %p125 = por %p123, %p124
      %s127 = sadd.s32 %s126, 1
      %p130 = scmp.eq.s32.totalorder %s24, 1
      %p131 = scmp.ne.s32.totalorder %s126, %s128
      %p132 = scmp.eq.s32.totalorder %s24, 0
      %p133 = por %p131, %p132
      %p134 = scmp.ne.s32.totalorder %s126, %s128
      %p135 = scmp.eq.s32.totalorder %s29, 1
      %p136 = por %p134, %p135
      %p137 = scmp.ne.s32.totalorder %s128, %s129
      %p138 = scmp.eq.s32.totalorder %s29, 0
      %p139 = por %p137, %p138
      %p140 = scmp.ne.s32.totalorder %s128, %s129
      %p141 = scmp.eq.s32.totalorder %s30, 1
      %p142 = por %p140, %p141
      %p144 = scmp.ne.s32.totalorder %s129, %s143
      %p145 = scmp.eq.s32.totalorder %s30, 0
      %p146 = por %p144, %p145
      %s148 = sadd.s32 %s147, 1
      %p151 = scmp.eq.s32.totalorder %s24, 1
      %p152 = scmp.ne.s32.totalorder %s147, %s149
      %p153 = scmp.eq.s32.totalorder %s24, 0
      %p154 = por %p152, %p153
      %p155 = scmp.ne.s32.totalorder %s147, %s149
      %p156 = scmp.eq.s32.totalorder %s29, 1
      %p157 = por %p155, %p156
      %p158 = scmp.ne.s32.totalorder %s149, %s150
      %p159 = scmp.eq.s32.totalorder %s29, 0
      %p160 = por %p158, %p159
      %p161 = scmp.ne.s32.totalorder %s149, %s150
      %p162 = scmp.eq.s32.totalorder %s30, 1
      %p163 = por %p161, %p162
      %p165 = scmp.ne.s32.totalorder %s150, %s164
      %p166 = scmp.eq.s32.totalorder %s30, 0
      %p167 = por %p165, %p166
      %s169 = sadd.s32 %s168, 1
      %p172 = scmp.eq.s32.totalorder %s24, 1
      %p173 = scmp.ne.s32.totalorder %s168, %s170
      %p174 = scmp.eq.s32.totalorder %s24, 0
      %p175 = por %p173, %p174
      %p176 = scmp.ne.s32.totalorder %s168, %s170
      %p177 = scmp.eq.s32.totalorder %s29, 1
      %p178 = por %p176, %p177
      %p179 = scmp.ne.s32.totalorder %s170, %s171
      %p180 = scmp.eq.s32.totalorder %s29, 0
      %p181 = por %p179, %p180
      %p182 = scmp.ne.s32.totalorder %s170, %s171
      %p183 = scmp.eq.s32.totalorder %s30, 1
      %p184 = por %p182, %p183
      %p186 = scmp.ne.s32.totalorder %s171, %s185
      %p187 = scmp.eq.s32.totalorder %s30, 0
      %p188 = por %p186, %p187
      %s190 = sadd.s32 %s189, 1
      %p193 = scmp.eq.s32.totalorder %s24, 1
      %p194 = scmp.ne.s32.totalorder %s189, %s191
      %p195 = scmp.eq.s32.totalorder %s24, 0
      %p196 = por %p194, %p195
      %p197 = scmp.ne.s32.totalorder %s189, %s191
      %p198 = scmp.eq.s32.totalorder %s29, 1
      %p199 = por %p197, %p198
      %p200 = scmp.ne.s32.totalorder %s191, %s192
      %p201 = scmp.eq.s32.totalorder %s29, 0
      %p202 = por %p200, %p201
      %p203 = scmp.ne.s32.totalorder %s191, %s192
      %p204 = scmp.eq.s32.totalorder %s30, 1
      %p205 = por %p203, %p204
      %p207 = scmp.ne.s32.totalorder %s192, %s206
      %p208 = scmp.eq.s32.totalorder %s30, 0
      %p209 = por %p207, %p208
      %s211 = sadd.s32 %s210, 1
      %p214 = scmp.eq.s32.totalorder %s24, 1
      %p215 = scmp.ne.s32.totalorder %s210, %s212
      %p216 = scmp.eq.s32.totalorder %s24, 0
      %p217 = por %p215, %p216
      %p218 = scmp.ne.s32.totalorder %s210, %s212
      %p219 = scmp.eq.s32.totalorder %s29, 1
      %p220 = por %p218, %p219
      %p221 = scmp.ne.s32.totalorder %s212, %s213
      %p222 = scmp.eq.s32.totalorder %s29, 0
      %p223 = por %p221, %p222
      %p224 = scmp.ne.s32.totalorder %s212, %s213
      %p225 = scmp.eq.s32.totalorder %s30, 1
      %p226 = por %p224, %p225
      %p228 = scmp.ne.s32.totalorder %s213, %s227
      %p229 = scmp.eq.s32.totalorder %s30, 0
      %p230 = por %p228, %p229
      %s231 = ssub.s32 %s24, %s31
      %p232 = scmp.eq.s32.totalorder %s231, 0
      %s234 = sadd.s32 %s233, 1
      %s235 = scalar_select %p232, %s233, %s234
      %p238 = pneg %p232
      %p239 = scmp.eq.s32.totalorder %s24, 1
      %p240 = por %p238, %p239
      %p241 = scmp.ne.s32.totalorder %s233, %s236
      %p242 = scmp.eq.s32.totalorder %s24, 0
      %p243 = por %p241, %p242
      %p244 = scmp.ne.s32.totalorder %s233, %s236
      %p245 = scmp.eq.s32.totalorder %s29, 1
      %p246 = por %p244, %p245
      %p247 = scmp.ne.s32.totalorder %s236, %s237
      %p248 = scmp.eq.s32.totalorder %s29, 0
      %p249 = por %p247, %p248
      %p250 = scmp.ne.s32.totalorder %s236, %s237
      %p251 = scmp.eq.s32.totalorder %s30, 1
      %p252 = por %p250, %p251
      %p254 = scmp.ne.s32.totalorder %s237, %s253
      %p255 = scmp.eq.s32.totalorder %s30, 0
      %p256 = por %p254, %p255
      %p257 = scmp.le.s32.totalorder 1, %s24
      %p258 = scmp.lt.s32.totalorder %s24, 3
      %p259 = pnand %p257, %p258
      %p260 = pneg %p259
      // Predicated region
      $region9: #{tpu_custom_call.1} parent=5 // pred_check
        _
      $region10: #{tpu_custom_call.1} parent=5 // pred_check_branch
        %262 = sbr.rel (%p259) target = $region12
      $region11: #{tpu_custom_call.1} parent=5 // pred_region
        %s263 = ssub.s32 %s24, 1
        // Predicated region
        $region13: #{tpu_custom_call.1} parent=11 // pred_check
          %p264 = pneg %p97
        $region14: #{tpu_custom_call.1} parent=11 // pred_check_branch
          %266 = sbr.rel (%p264) target = $region16
        $region15: #{tpu_custom_call.1} parent=11 // pred_region
          %268 = vsyncadd [#allocation5], 0
          %s269 = sshll.u32 %s2, 4
          %s270 = int_to_ptr.hbm [resolvable:$true] %s269
          %s271 = sshll.u32 [#allocation6], 4
          %s272 = int_to_ptr.vmem [resolvable:$true] %s271
          %277 = dma.hbm_to_vmem [thread:$0]  %s270, 1024, %s272, [#allocation5], 64, 64, 4
        $region16: #{tpu_custom_call.1} parent=11 // pred_fallthru
          _
        // Predicated region
        $region17: #{tpu_custom_call.1} parent=11 // pred_check
          %p278 = pneg %p118
        $region18: #{tpu_custom_call.1} parent=11 // pred_check_branch
          %280 = sbr.rel (%p278) target = $region20
        $region19: #{tpu_custom_call.1} parent=11 // pred_region
          %282 = vsyncadd [#allocation8], 0
          %s283 = sshll.u32 %s3, 4
          %s284 = int_to_ptr.hbm [resolvable:$true] %s283
          %s285 = sshll.u32 [#allocation7], 4
          %s286 = int_to_ptr.vmem [resolvable:$true] %s285
          %291 = dma.hbm_to_vmem [thread:$0]  %s284, 2048, %s286, [#allocation8], 64, 64, 4
        $region20: #{tpu_custom_call.1} parent=11 // pred_fallthru
          _
        // Predicated region
        $region21: #{tpu_custom_call.1} parent=11 // pred_check
          %p292 = pneg %p139
        $region22: #{tpu_custom_call.1} parent=11 // pred_check_branch
          %294 = sbr.rel (%p292) target = $region24
        $region23: #{tpu_custom_call.1} parent=11 // pred_region
          %296 = vsyncadd [#allocation8], 0
          %s297 = sshll.u32 %s4, 4
          %s298 = int_to_ptr.hbm [resolvable:$true] %s297
          %s299 = sshll.u32 [#allocation9], 4
          %s300 = int_to_ptr.vmem [resolvable:$true] %s299
          %305 = dma.hbm_to_vmem [thread:$0]  %s298, 2048, %s300, [#allocation8], 128, 128, 8
        $region24: #{tpu_custom_call.1} parent=11 // pred_fallthru
          _
        // Predicated region
        $region25: #{tpu_custom_call.1} parent=11 // pred_check
          %p306 = pneg %p160
        $region26: #{tpu_custom_call.1} parent=11 // pred_check_branch
          %308 = sbr.rel (%p306) target = $region28
        $region27: #{tpu_custom_call.1} parent=11 // pred_region
          %310 = vsyncadd [#allocation11], 0
          %s311 = sshll.u32 %s5, 4
          %s312 = int_to_ptr.hbm [resolvable:$true] %s311
          %s313 = sshll.u32 [#allocation10], 4
          %s314 = int_to_ptr.vmem [resolvable:$true] %s313
          %319 = dma.hbm_to_vmem [thread:$0]  %s312, 2048, %s314, [#allocation11], 128, 128, 8
        $region28: #{tpu_custom_call.1} parent=11 // pred_fallthru
          _
        // Predicated region
        $region29: #{tpu_custom_call.1} parent=11 // pred_check
          %p320 = pneg %p181
        $region30: #{tpu_custom_call.1} parent=11 // pred_check_branch
          %322 = sbr.rel (%p320) target = $region32
        $region31: #{tpu_custom_call.1} parent=11 // pred_region
          %324 = vsyncadd [#allocation11], 0
          %s325 = sshll.u32 %s6, 4
          %s326 = int_to_ptr.hbm [resolvable:$true] %s325
          %s327 = sshll.u32 [#allocation12], 4
          %s328 = int_to_ptr.vmem [resolvable:$true] %s327
          %333 = dma.hbm_to_vmem [thread:$0]  %s326, 4096, %s328, [#allocation11], 128, 128, 8
        $region32: #{tpu_custom_call.1} parent=11 // pred_fallthru
          _
        // Predicated region
        $region33: #{tpu_custom_call.1} parent=11 // pred_check
          %p334 = pneg %p202
        $region34: #{tpu_custom_call.1} parent=11 // pred_check_branch
          %336 = sbr.rel (%p334) target = $region36
        $region35: #{tpu_custom_call.1} parent=11 // pred_region
          %338 = vsyncadd [#allocation14], 0
          %s339 = sshll.u32 %s7, 4
          %s340 = int_to_ptr.hbm [resolvable:$true] %s339
          %s341 = sshll.u32 [#allocation13], 4
          %s342 = int_to_ptr.vmem [resolvable:$true] %s341
          %347 = dma.hbm_to_vmem [thread:$0]  %s340, 2048, %s342, [#allocation14], 64, 64, 4
        $region36: #{tpu_custom_call.1} parent=11 // pred_fallthru
          _
        // Predicated region
        $region37: #{tpu_custom_call.1} parent=11 // pred_check
          %p348 = pneg %p223
        $region38: #{tpu_custom_call.1} parent=11 // pred_check_branch
          %350 = sbr.rel (%p348) target = $region40
        $region39: #{tpu_custom_call.1} parent=11 // pred_region
          %352 = vsyncadd [#allocation14], 0
          %s354 = sshll.u32 %s8, 4
          %s355 = int_to_ptr.hbm [resolvable:$true] %s354
          %s356 = sshll.u32 [#allocation15], 4
          %s357 = int_to_ptr.vmem [resolvable:$true] %s356
          %359 = dma.hbm_to_vmem [thread:$0]  %s355, 256, %s357, [#allocation14]
        $region40: #{tpu_custom_call.1} parent=11 // pred_fallthru
          _
      $region12: #{tpu_custom_call.1} parent=5 // pred_fallthru
        _
      %p360 = scmp.lt.s32.totalorder %s24, 2
      // Predicated region
      $region41: #{tpu_custom_call.1} parent=5 // pred_check
        %p361 = pneg %p360
      $region42: #{tpu_custom_call.1} parent=5 // pred_check_branch
        %363 = sbr.rel (%p361) target = $region44
      $region43: #{tpu_custom_call.1} parent=5 // pred_region
        // Predicated region
        $region45: #{tpu_custom_call.1} parent=43 // pred_check
          %p364 = pneg %p44
        $region46: #{tpu_custom_call.1} parent=43 // pred_check_branch
          %366 = sbr.rel (%p364) target = $region48
        $region47: #{tpu_custom_call.1} parent=43 // pred_region
          %s367 = sand.u32 %s34, 1
          %s368 = scalar_lea.sflag [#allocation3], %s367
          %s369 = sand.u32 %s34, 1
          %s370 = smul.addr %s369, 128
          %s371 = scalar_lea.vmem [#allocation2], %s370
          %s372 = smul.u32 16, %s24
          %374 = vsyncadd %s368, 0
          %s375 = smul.addr %s372, 8
          %s376 = scalar_lea.hbm %s0, %s375
          %s377 = sshll.u32 %s376, 4
          %s378 = int_to_ptr.hbm [resolvable:$true] %s377
          %s379 = sshll.u32 %s371, 4
          %s380 = int_to_ptr.vmem [resolvable:$true] %s379
          %385 = dma.hbm_to_vmem [thread:$0]  %s378, 2048, %s380, %s368, 128, 128, 8
        $region48: #{tpu_custom_call.1} parent=43 // pred_fallthru
          _
        // Predicated region
        $region49: #{tpu_custom_call.1} parent=43 // pred_check
          %p386 = pneg %p70
        $region50: #{tpu_custom_call.1} parent=43 // pred_check_branch
          %388 = sbr.rel (%p386) target = $region52
        $region51: #{tpu_custom_call.1} parent=43 // pred_region
          %s389 = sand.u32 %s24, 1
          %s390 = scalar_lea.sflag [#allocation5], %s389
          %s391 = sand.u32 %s60, 1
          %s392 = smul.addr %s391, 256
          %s393 = scalar_lea.vmem [#allocation4], %s392
          %s394 = smul.u32 16, %s24
          %396 = vsyncadd %s390, 0
          %s397 = smul.addr %s394, 2
          %s398 = smul.addr %s397, 8
          %s399 = scalar_lea.hbm %s1, %s398
          %s400 = sshll.u32 %s399, 4
          %s401 = int_to_ptr.hbm [resolvable:$true] %s400
          %s402 = sshll.u32 %s393, 4
          %s403 = int_to_ptr.vmem [resolvable:$true] %s402
          %408 = dma.hbm_to_vmem [thread:$0]  %s401, 4096, %s403, %s390, 256, 256, 16
        $region52: #{tpu_custom_call.1} parent=43 // pred_fallthru
          _
      $region44: #{tpu_custom_call.1} parent=5 // pred_fallthru
        _
      %p409 = scmp.le.s32.totalorder 1, %s24
      %p410 = scmp.lt.s32.totalorder %s24, 3
      %p411 = pnand %p409, %p410
      %p412 = pneg %p411
      // Predicated region
      $region53: #{tpu_custom_call.1} parent=5 // pred_check
        _
      $region54: #{tpu_custom_call.1} parent=5 // pred_check_branch
        %414 = sbr.rel (%p411) target = $region56
      $region55: #{tpu_custom_call.1} parent=5 // pred_region
        %s415 = ssub.s32 %s24, 1
        %s416 = sand.u32 %s37, 1
        %s417 = scalar_lea.sflag [#allocation3], %s416
        %s418 = sand.u32 %s37, 1
        %s419 = smul.addr %s418, 128
        %s420 = scalar_lea.vmem [#allocation2], %s419
        // Predicated region
        $region57: #{tpu_custom_call.1} parent=55 // pred_check
          %p421 = pneg %p50
        $region58: #{tpu_custom_call.1} parent=55 // pred_check_branch
          %423 = sbr.rel (%p421) target = $region60
        $region59: #{tpu_custom_call.1} parent=55 // pred_region
          %425 = dma.done %s417, 2048
        $region60: #{tpu_custom_call.1} parent=55 // pred_fallthru
          _
        %s426 = sand.u32 %s29, 1
        %s427 = scalar_lea.sflag [#allocation5], %s426
        %s428 = sand.u32 %s63, 1
        %s429 = smul.addr %s428, 256
        %s430 = scalar_lea.vmem [#allocation4], %s429
        // Predicated region
        $region61: #{tpu_custom_call.1} parent=55 // pred_check
          %p431 = pneg %p76
        $region62: #{tpu_custom_call.1} parent=55 // pred_check_branch
          %433 = sbr.rel (%p431) target = $region64
        $region63: #{tpu_custom_call.1} parent=55 // pred_region
          %435 = dma.done %s427, 4096
        $region64: #{tpu_custom_call.1} parent=55 // pred_fallthru
          _
        // Predicated region
        $region65: #{tpu_custom_call.1} parent=55 // pred_check
          %p436 = pneg %p97
        $region66: #{tpu_custom_call.1} parent=55 // pred_check_branch
          %438 = sbr.rel (%p436) target = $region68
        $region67: #{tpu_custom_call.1} parent=55 // pred_region
          %440 = dma.done [#allocation5], 1024
        $region68: #{tpu_custom_call.1} parent=55 // pred_fallthru
          _
        // Predicated region
        $region69: #{tpu_custom_call.1} parent=55 // pred_check
          %p441 = pneg %p118
        $region70: #{tpu_custom_call.1} parent=55 // pred_check_branch
          %443 = sbr.rel (%p441) target = $region72
        $region71: #{tpu_custom_call.1} parent=55 // pred_region
          %445 = dma.done [#allocation8], 2048
        $region72: #{tpu_custom_call.1} parent=55 // pred_fallthru
          _
        // Predicated region
        $region73: #{tpu_custom_call.1} parent=55 // pred_check
          %p446 = pneg %p139
        $region74: #{tpu_custom_call.1} parent=55 // pred_check_branch
          %448 = sbr.rel (%p446) target = $region76
        $region75: #{tpu_custom_call.1} parent=55 // pred_region
          %450 = dma.done [#allocation8], 2048
        $region76: #{tpu_custom_call.1} parent=55 // pred_fallthru
          _
        // Predicated region
        $region77: #{tpu_custom_call.1} parent=55 // pred_check
          %p451 = pneg %p160
        $region78: #{tpu_custom_call.1} parent=55 // pred_check_branch
          %453 = sbr.rel (%p451) target = $region80
        $region79: #{tpu_custom_call.1} parent=55 // pred_region
          %455 = dma.done [#allocation11], 2048
        $region80: #{tpu_custom_call.1} parent=55 // pred_fallthru
          _
        // Predicated region
        $region81: #{tpu_custom_call.1} parent=55 // pred_check
          %p456 = pneg %p181
        $region82: #{tpu_custom_call.1} parent=55 // pred_check_branch
          %458 = sbr.rel (%p456) target = $region84
        $region83: #{tpu_custom_call.1} parent=55 // pred_region
          %460 = dma.done [#allocation11], 4096
        $region84: #{tpu_custom_call.1} parent=55 // pred_fallthru
          _
        // Predicated region
        $region85: #{tpu_custom_call.1} parent=55 // pred_check
          %p461 = pneg %p202
        $region86: #{tpu_custom_call.1} parent=55 // pred_check_branch
          %463 = sbr.rel (%p461) target = $region88
        $region87: #{tpu_custom_call.1} parent=55 // pred_region
          %465 = dma.done [#allocation14], 2048
        $region88: #{tpu_custom_call.1} parent=55 // pred_fallthru
          _
        // Predicated region
        $region89: #{tpu_custom_call.1} parent=55 // pred_check
          %p466 = pneg %p223
        $region90: #{tpu_custom_call.1} parent=55 // pred_check_branch
          %468 = sbr.rel (%p466) target = $region92
        $region91: #{tpu_custom_call.1} parent=55 // pred_region
          %470 = dma.done [#allocation14], 256
        $region92: #{tpu_custom_call.1} parent=55 // pred_fallthru
          _
        %s471 = sand.u32 %s37, 1
        %s472 = scalar_lea.sflag [#allocation3], %s471
        %s473 = sand.u32 %s37, 1
        %s474 = smul.addr %s473, 128
        %s475 = scalar_lea.vmem [#allocation2], %s474
        %p476 = pneg %p50
        %p477 = pneg %p47
        %s478 = sand.u32 %s29, 1
        %s479 = scalar_lea.sflag [#allocation5], %s478
        %s480 = sand.u32 %s63, 1
        %s481 = smul.addr %s480, 256
        %s482 = scalar_lea.vmem [#allocation4], %s481
        %p483 = pneg %p76
        %p484 = pneg %p73
        %p485 = pneg %p97
        %p486 = pneg %p94
        %p487 = pneg %p118
        %p488 = pneg %p115
        %p489 = pneg %p139
        %p490 = pneg %p136
        %p491 = pneg %p160
        %p492 = pneg %p157
        %p493 = pneg %p181
        %p494 = pneg %p178
        %p495 = pneg %p202
        %p496 = pneg %p199
        %p497 = pneg %p223
        %p498 = pneg %p220
        %p499 = pneg %p249
        %p500 = pneg %p246
        %s501 = smul.u32 16, %s29
        %p502 = scmp.lt.s32.totalorder %s501, 31
        %s503 = scalar_select %p502, %s501, 31
        %s504 = smul.addr %s503, 8
        %s505 = scalar_lea.vmem %s9, %s504
        %s506 = smul.u32 16, %s29
        %s507 = smul.u32 16, %s29
        %s508 = smul.u32 16, %s29
        %p509 = scmp.lt.s32.totalorder %s508, 31
        %s510 = scalar_select %p509, %s508, 31
        %s511 = smul.addr %s510, 8
        %s512 = scalar_lea.vmem %s9, %s511
        %s513 = smul.u32 16, %s29
        %v514 = vld [vmem:[%s420] sm:$0xff]
        %v515 = vld [vmem:[%s420 + $0x8] sm:$0xff]
        %v516 = vld [vmem:[%s420 + $0x10] sm:$0xff]
        %v517 = vld [vmem:[%s420 + $0x18] sm:$0xff]
        %v518 = vld [vmem:[%s420 + $0x20] sm:$0xff]
        %v519 = vld [vmem:[%s420 + $0x28] sm:$0xff]
        %v520 = vld [vmem:[%s420 + $0x30] sm:$0xff]
        %v521 = vld [vmem:[%s420 + $0x38] sm:$0xff]
        %v522 = vld [vmem:[%s420 + $0x40] sm:$0xff]
        %v523 = vld [vmem:[%s420 + $0x48] sm:$0xff]
        %v524 = vld [vmem:[%s420 + $0x50] sm:$0xff]
        %v525 = vld [vmem:[%s420 + $0x58] sm:$0xff]
        %v526 = vld [vmem:[%s420 + $0x60] sm:$0xff]
        %v527 = vld [vmem:[%s420 + $0x68] sm:$0xff]
        %v528 = vld [vmem:[%s420 + $0x70] sm:$0xff]
        %v529 = vld [vmem:[%s420 + $0x78] sm:$0xff]
        %v530 = vld [vmem:[%s430] sm:$0xff]
        %v531 = vld [vmem:[%s430 + $0x8] sm:$0xff]
        %v532 = vld [vmem:[%s430 + $0x10] sm:$0xff]
        %v533 = vld [vmem:[%s430 + $0x18] sm:$0xff]
        %v534 = vld [vmem:[%s430 + $0x20] sm:$0xff]
        %v535 = vld [vmem:[%s430 + $0x28] sm:$0xff]
        %v536 = vld [vmem:[%s430 + $0x30] sm:$0xff]
        %v537 = vld [vmem:[%s430 + $0x38] sm:$0xff]
        %v538 = vld [vmem:[%s430 + $0x40] sm:$0xff]
        %v539 = vld [vmem:[%s430 + $0x48] sm:$0xff]
        %v540 = vld [vmem:[%s430 + $0x50] sm:$0xff]
        %v541 = vld [vmem:[%s430 + $0x58] sm:$0xff]
        %v542 = vld [vmem:[%s430 + $0x60] sm:$0xff]
        %v543 = vld [vmem:[%s430 + $0x68] sm:$0xff]
        %v544 = vld [vmem:[%s430 + $0x70] sm:$0xff]
        %v545 = vld [vmem:[%s430 + $0x78] sm:$0xff]
        %v546 = vld [vmem:[%s430 + $0x80] sm:$0xff]
        %v547 = vld [vmem:[%s430 + $0x88] sm:$0xff]
        %v548 = vld [vmem:[%s430 + $0x90] sm:$0xff]
        %v549 = vld [vmem:[%s430 + $0x98] sm:$0xff]
        %v550 = vld [vmem:[%s430 + $0xa0] sm:$0xff]
        %v551 = vld [vmem:[%s430 + $0xa8] sm:$0xff]
        %v552 = vld [vmem:[%s430 + $0xb0] sm:$0xff]
        %v553 = vld [vmem:[%s430 + $0xb8] sm:$0xff]
        %v554 = vld [vmem:[%s430 + $0xc0] sm:$0xff]
        %v555 = vld [vmem:[%s430 + $0xc8] sm:$0xff]
        %v556 = vld [vmem:[%s430 + $0xd0] sm:$0xff]
        %v557 = vld [vmem:[%s430 + $0xd8] sm:$0xff]
        %v558 = vld [vmem:[%s430 + $0xe0] sm:$0xff]
        %v559 = vld [vmem:[%s430 + $0xe8] sm:$0xff]
        %v560 = vld [vmem:[%s430 + $0xf0] sm:$0xff]
        %v561 = vld [vmem:[%s430 + $0xf8] sm:$0xff]
        %562 = vadd.xlane.f32.xlu0 %v514
        %v563 = vpop.xlane.xlu0 %562
        %564 = vadd.xlane.f32.xlu0 %v515
        %v565 = vpop.xlane.xlu0 %564
        %566 = vadd.xlane.f32.xlu0 %v516
        %v567 = vpop.xlane.xlu0 %566
        %568 = vadd.xlane.f32.xlu0 %v517
        %v569 = vpop.xlane.xlu0 %568
        %570 = vadd.xlane.f32.xlu0 %v518
        %v571 = vpop.xlane.xlu0 %570
        %572 = vadd.xlane.f32.xlu0 %v519
        %v573 = vpop.xlane.xlu0 %572
        %574 = vadd.xlane.f32.xlu0 %v520
        %v575 = vpop.xlane.xlu0 %574
        %576 = vadd.xlane.f32.xlu0 %v521
        %v577 = vpop.xlane.xlu0 %576
        %578 = vadd.xlane.f32.xlu0 %v522
        %v579 = vpop.xlane.xlu0 %578
        %580 = vadd.xlane.f32.xlu0 %v523
        %v581 = vpop.xlane.xlu0 %580
        %582 = vadd.xlane.f32.xlu0 %v524
        %v583 = vpop.xlane.xlu0 %582
        %584 = vadd.xlane.f32.xlu0 %v525
        %v585 = vpop.xlane.xlu0 %584
        %586 = vadd.xlane.f32.xlu0 %v526
        %v587 = vpop.xlane.xlu0 %586
        %588 = vadd.xlane.f32.xlu0 %v527
        %v589 = vpop.xlane.xlu0 %588
        %590 = vadd.xlane.f32.xlu0 %v528
        %v591 = vpop.xlane.xlu0 %590
        %592 = vadd.xlane.f32.xlu0 %v529
        %v593 = vpop.xlane.xlu0 %592
        %v594 = vrcp.pop 128.0
        %v595 = vmul.f32 128.0, %v594
        %v596 = vsub.f32 1.0, %v595
        %v597 = vmul.f32 %v594, %v596
        %v598 = vadd.f32 %v594, %v597
        %vm599 = vweird.f32 %v594
        %v600 = vsel %vm599, %v594, %v598
        %v601 = vmul.f32 %v563, %v600
        %v602 = vmul.f32 %v565, %v600
        %v603 = vmul.f32 %v567, %v600
        %v604 = vmul.f32 %v569, %v600
        %v605 = vmul.f32 %v571, %v600
        %v606 = vmul.f32 %v573, %v600
        %v607 = vmul.f32 %v575, %v600
        %v608 = vmul.f32 %v577, %v600
        %v609 = vmul.f32 %v579, %v600
        %v610 = vmul.f32 %v581, %v600
        %v611 = vmul.f32 %v583, %v600
        %v612 = vmul.f32 %v585, %v600
        %v613 = vmul.f32 %v587, %v600
        %v614 = vmul.f32 %v589, %v600
        %v615 = vmul.f32 %v591, %v600
        %v616 = vmul.f32 %v593, %v600
        %v617 = vsub.f32 %v514, %v601
        %v618 = vsub.f32 %v515, %v602
        %v619 = vsub.f32 %v516, %v603
        %v620 = vsub.f32 %v517, %v604
        %v621 = vsub.f32 %v518, %v605
        %v622 = vsub.f32 %v519, %v606
        %v623 = vsub.f32 %v520, %v607
        %v624 = vsub.f32 %v521, %v608
        %v625 = vsub.f32 %v522, %v609
        %v626 = vsub.f32 %v523, %v610
        %v627 = vsub.f32 %v524, %v611
        %v628 = vsub.f32 %v525, %v612
        %v629 = vsub.f32 %v526, %v613
        %v630 = vsub.f32 %v527, %v614
        %v631 = vsub.f32 %v528, %v615
        %v632 = vsub.f32 %v529, %v616
        %v633 = vmul.f32 %v617, %v617
        %v634 = vmul.f32 %v618, %v618
        %v635 = vmul.f32 %v619, %v619
        %v636 = vmul.f32 %v620, %v620
        %v637 = vmul.f32 %v621, %v621
        %v638 = vmul.f32 %v622, %v622
        %v639 = vmul.f32 %v623, %v623
        %v640 = vmul.f32 %v624, %v624
        %v641 = vmul.f32 %v625, %v625
        %v642 = vmul.f32 %v626, %v626
        %v643 = vmul.f32 %v627, %v627
        %v644 = vmul.f32 %v628, %v628
        %v645 = vmul.f32 %v629, %v629
        %v646 = vmul.f32 %v630, %v630
        %v647 = vmul.f32 %v631, %v631
        %v648 = vmul.f32 %v632, %v632
        %649 = vadd.xlane.f32.xlu0 %v633
        %v650 = vpop.xlane.xlu0 %649
        %651 = vadd.xlane.f32.xlu0 %v634
        %v652 = vpop.xlane.xlu0 %651
        %653 = vadd.xlane.f32.xlu0 %v635
        %v654 = vpop.xlane.xlu0 %653
        %655 = vadd.xlane.f32.xlu0 %v636
        %v656 = vpop.xlane.xlu0 %655
        %657 = vadd.xlane.f32.xlu0 %v637
        %v658 = vpop.xlane.xlu0 %657
        %659 = vadd.xlane.f32.xlu0 %v638
        %v660 = vpop.xlane.xlu0 %659
        %661 = vadd.xlane.f32.xlu0 %v639
        %v662 = vpop.xlane.xlu0 %661
        %663 = vadd.xlane.f32.xlu0 %v640
        %v664 = vpop.xlane.xlu0 %663
        %665 = vadd.xlane.f32.xlu0 %v641
        %v666 = vpop.xlane.xlu0 %665
        %667 = vadd.xlane.f32.xlu0 %v642
        %v668 = vpop.xlane.xlu0 %667
        %669 = vadd.xlane.f32.xlu0 %v643
        %v670 = vpop.xlane.xlu0 %669
        %671 = vadd.xlane.f32.xlu0 %v644
        %v672 = vpop.xlane.xlu0 %671
        %673 = vadd.xlane.f32.xlu0 %v645
        %v674 = vpop.xlane.xlu0 %673
        %675 = vadd.xlane.f32.xlu0 %v646
        %v676 = vpop.xlane.xlu0 %675
        %677 = vadd.xlane.f32.xlu0 %v647
        %v678 = vpop.xlane.xlu0 %677
        %679 = vadd.xlane.f32.xlu0 %v648
        %v680 = vpop.xlane.xlu0 %679
        %v681 = vmul.f32 %v650, %v600
        %v682 = vmul.f32 %v652, %v600
        %v683 = vmul.f32 %v654, %v600
        %v684 = vmul.f32 %v656, %v600
        %v685 = vmul.f32 %v658, %v600
        %v686 = vmul.f32 %v660, %v600
        %v687 = vmul.f32 %v662, %v600
        %v688 = vmul.f32 %v664, %v600
        %v689 = vmul.f32 %v666, %v600
        %v690 = vmul.f32 %v668, %v600
        %v691 = vmul.f32 %v670, %v600
        %v692 = vmul.f32 %v672, %v600
        %v693 = vmul.f32 %v674, %v600
        %v694 = vmul.f32 %v676, %v600
        %v695 = vmul.f32 %v678, %v600
        %v696 = vmul.f32 %v680, %v600
        %v697 = vadd.f32 %v681, 1e-05
        %v698 = vadd.f32 %v682, 1e-05
        %v699 = vadd.f32 %v683, 1e-05
        %v700 = vadd.f32 %v684, 1e-05
        %v701 = vadd.f32 %v685, 1e-05
        %v702 = vadd.f32 %v686, 1e-05
        %v703 = vadd.f32 %v687, 1e-05
        %v704 = vadd.f32 %v688, 1e-05
        %v705 = vadd.f32 %v689, 1e-05
        %v706 = vadd.f32 %v690, 1e-05
        %v707 = vadd.f32 %v691, 1e-05
        %v708 = vadd.f32 %v692, 1e-05
        %v709 = vadd.f32 %v693, 1e-05
        %v710 = vadd.f32 %v694, 1e-05
        %v711 = vadd.f32 %v695, 1e-05
        %v712 = vadd.f32 %v696, 1e-05
        %v713 = vrsqrt.pop %v697
        %v714 = vmul.f32 %v713, %v697
        %v715 = vmul.f32 %v714, %v713
        %v716 = vmul.f32 0.5, %v715
        %v717 = vsub.f32 1.5, %v716
        %v718 = vmul.f32 %v713, %v717
        %vm719 = vweird.f32 %v697
        %vm720 = vweird.f32 %v713
        %vm721 = vmor %vm719, %vm720
        %v722 = vsel %vm721, %v713, %v718
        %v723 = vrsqrt.pop %v698
        %v724 = vmul.f32 %v723, %v698
        %v725 = vmul.f32 %v724, %v723
        %v726 = vmul.f32 0.5, %v725
        %v727 = vsub.f32 1.5, %v726
        %v728 = vmul.f32 %v723, %v727
        %vm729 = vweird.f32 %v698
        %vm730 = vweird.f32 %v723
        %vm731 = vmor %vm729, %vm730
        %v732 = vsel %vm731, %v723, %v728
        %v733 = vrsqrt.pop %v699
        %v734 = vmul.f32 %v733, %v699
        %v735 = vmul.f32 %v734, %v733
        %v736 = vmul.f32 0.5, %v735
        %v737 = vsub.f32 1.5, %v736
        %v738 = vmul.f32 %v733, %v737
        %vm739 = vweird.f32 %v699
        %vm740 = vweird.f32 %v733
        %vm741 = vmor %vm739, %vm740
        %v742 = vsel %vm741, %v733, %v738
        %v743 = vrsqrt.pop %v700
        %v744 = vmul.f32 %v743, %v700
        %v745 = vmul.f32 %v744, %v743
        %v746 = vmul.f32 0.5, %v745
        %v747 = vsub.f32 1.5, %v746
        %v748 = vmul.f32 %v743, %v747
        %vm749 = vweird.f32 %v700
        %vm750 = vweird.f32 %v743
        %vm751 = vmor %vm749, %vm750
        %v752 = vsel %vm751, %v743, %v748
        %v753 = vrsqrt.pop %v701
        %v754 = vmul.f32 %v753, %v701
        %v755 = vmul.f32 %v754, %v753
        %v756 = vmul.f32 0.5, %v755
        %v757 = vsub.f32 1.5, %v756
        %v758 = vmul.f32 %v753, %v757
        %vm759 = vweird.f32 %v701
        %vm760 = vweird.f32 %v753
        %vm761 = vmor %vm759, %vm760
        %v762 = vsel %vm761, %v753, %v758
        %v763 = vrsqrt.pop %v702
        %v764 = vmul.f32 %v763, %v702
        %v765 = vmul.f32 %v764, %v763
        %v766 = vmul.f32 0.5, %v765
        %v767 = vsub.f32 1.5, %v766
        %v768 = vmul.f32 %v763, %v767
        %vm769 = vweird.f32 %v702
        %vm770 = vweird.f32 %v763
        %vm771 = vmor %vm769, %vm770
        %v772 = vsel %vm771, %v763, %v768
        %v773 = vrsqrt.pop %v703
        %v774 = vmul.f32 %v773, %v703
        %v775 = vmul.f32 %v774, %v773
        %v776 = vmul.f32 0.5, %v775
        %v777 = vsub.f32 1.5, %v776
        %v778 = vmul.f32 %v773, %v777
        %vm779 = vweird.f32 %v703
        %vm780 = vweird.f32 %v773
        %vm781 = vmor %vm779, %vm780
        %v782 = vsel %vm781, %v773, %v778
        %v783 = vrsqrt.pop %v704
        %v784 = vmul.f32 %v783, %v704
        %v785 = vmul.f32 %v784, %v783
        %v786 = vmul.f32 0.5, %v785
        %v787 = vsub.f32 1.5, %v786
        %v788 = vmul.f32 %v783, %v787
        %vm789 = vweird.f32 %v704
        %vm790 = vweird.f32 %v783
        %vm791 = vmor %vm789, %vm790
        %v792 = vsel %vm791, %v783, %v788
        %v793 = vrsqrt.pop %v705
        %v794 = vmul.f32 %v793, %v705
        %v795 = vmul.f32 %v794, %v793
        %v796 = vmul.f32 0.5, %v795
        %v797 = vsub.f32 1.5, %v796
        %v798 = vmul.f32 %v793, %v797
        %vm799 = vweird.f32 %v705
        %vm800 = vweird.f32 %v793
        %vm801 = vmor %vm799, %vm800
        %v802 = vsel %vm801, %v793, %v798
        %v803 = vrsqrt.pop %v706
        %v804 = vmul.f32 %v803, %v706
        %v805 = vmul.f32 %v804, %v803
        %v806 = vmul.f32 0.5, %v805
        %v807 = vsub.f32 1.5, %v806
        %v808 = vmul.f32 %v803, %v807
        %vm809 = vweird.f32 %v706
        %vm810 = vweird.f32 %v803
        %vm811 = vmor %vm809, %vm810
        %v812 = vsel %vm811, %v803, %v808
        %v813 = vrsqrt.pop %v707
        %v814 = vmul.f32 %v813, %v707
        %v815 = vmul.f32 %v814, %v813
        %v816 = vmul.f32 0.5, %v815
        %v817 = vsub.f32 1.5, %v816
        %v818 = vmul.f32 %v813, %v817
        %vm819 = vweird.f32 %v707
        %vm820 = vweird.f32 %v813
        %vm821 = vmor %vm819, %vm820
        %v822 = vsel %vm821, %v813, %v818
        %v823 = vrsqrt.pop %v708
        %v824 = vmul.f32 %v823, %v708
        %v825 = vmul.f32 %v824, %v823
        %v826 = vmul.f32 0.5, %v825
        %v827 = vsub.f32 1.5, %v826
        %v828 = vmul.f32 %v823, %v827
        %vm829 = vweird.f32 %v708
        %vm830 = vweird.f32 %v823
        %vm831 = vmor %vm829, %vm830
        %v832 = vsel %vm831, %v823, %v828
        %v833 = vrsqrt.pop %v709
        %v834 = vmul.f32 %v833, %v709
        %v835 = vmul.f32 %v834, %v833
        %v836 = vmul.f32 0.5, %v835
        %v837 = vsub.f32 1.5, %v836
        %v838 = vmul.f32 %v833, %v837
        %vm839 = vweird.f32 %v709
        %vm840 = vweird.f32 %v833
        %vm841 = vmor %vm839, %vm840
        %v842 = vsel %vm841, %v833, %v838
        %v843 = vrsqrt.pop %v710
        %v844 = vmul.f32 %v843, %v710
        %v845 = vmul.f32 %v844, %v843
        %v846 = vmul.f32 0.5, %v845
        %v847 = vsub.f32 1.5, %v846
        %v848 = vmul.f32 %v843, %v847
        %vm849 = vweird.f32 %v710
        %vm850 = vweird.f32 %v843
        %vm851 = vmor %vm849, %vm850
        %v852 = vsel %vm851, %v843, %v848
        %v853 = vrsqrt.pop %v711
        %v854 = vmul.f32 %v853, %v711
        %v855 = vmul.f32 %v854, %v853
        %v856 = vmul.f32 0.5, %v855
        %v857 = vsub.f32 1.5, %v856
        %v858 = vmul.f32 %v853, %v857
        %vm859 = vweird.f32 %v711
        %vm860 = vweird.f32 %v853
        %vm861 = vmor %vm859, %vm860
        %v862 = vsel %vm861, %v853, %v858
        %v863 = vrsqrt.pop %v712
        %v864 = vmul.f32 %v863, %v712
        %v865 = vmul.f32 %v864, %v863
        %v866 = vmul.f32 0.5, %v865
        %v867 = vsub.f32 1.5, %v866
        %v868 = vmul.f32 %v863, %v867
        %vm869 = vweird.f32 %v712
        %vm870 = vweird.f32 %v863
        %vm871 = vmor %vm869, %vm870
        %v872 = vsel %vm871, %v863, %v868
        %v873 = vmul.f32 %v617, %v722
        %v874 = vmul.f32 %v618, %v732
        %v875 = vmul.f32 %v619, %v742
        %v876 = vmul.f32 %v620, %v752
        %v877 = vmul.f32 %v621, %v762
        %v878 = vmul.f32 %v622, %v772
        %v879 = vmul.f32 %v623, %v782
        %v880 = vmul.f32 %v624, %v792
        %v881 = vmul.f32 %v625, %v802
        %v882 = vmul.f32 %v626, %v812
        %v883 = vmul.f32 %v627, %v822
        %v884 = vmul.f32 %v628, %v832
        %v885 = vmul.f32 %v629, %v842
        %v886 = vmul.f32 %v630, %v852
        %v887 = vmul.f32 %v631, %v862
        %v888 = vmul.f32 %v632, %v872
        %v889 = vpack.c.bf16 %v874, %v873
        %v890 = vpack.c.bf16 %v876, %v875
        %v891 = vpack.c.bf16 %v878, %v877
        %v892 = vpack.c.bf16 %v880, %v879
        %v893 = vpack.c.bf16 %v882, %v881
        %v894 = vpack.c.bf16 %v884, %v883
        %v895 = vpack.c.bf16 %v886, %v885
        %v896 = vpack.c.bf16 %v888, %v887
        %v897 = vadd.f32 %v530, %v531
        %898 = vadd.xlane.f32.xlu0 %v897
        %v899 = vpop.xlane.xlu0 %898
        %v900 = vadd.f32 %v532, %v533
        %901 = vadd.xlane.f32.xlu0 %v900
        %v902 = vpop.xlane.xlu0 %901
        %v903 = vadd.f32 %v534, %v535
        %904 = vadd.xlane.f32.xlu0 %v903
        %v905 = vpop.xlane.xlu0 %904
        %v906 = vadd.f32 %v536, %v537
        %907 = vadd.xlane.f32.xlu0 %v906
        %v908 = vpop.xlane.xlu0 %907
        %v909 = vadd.f32 %v538, %v539
        %910 = vadd.xlane.f32.xlu0 %v909
        %v911 = vpop.xlane.xlu0 %910
        %v912 = vadd.f32 %v540, %v541
        %913 = vadd.xlane.f32.xlu0 %v912
        %v914 = vpop.xlane.xlu0 %913
        %v915 = vadd.f32 %v542, %v543
        %916 = vadd.xlane.f32.xlu0 %v915
        %v917 = vpop.xlane.xlu0 %916
        %v918 = vadd.f32 %v544, %v545
        %919 = vadd.xlane.f32.xlu0 %v918
        %v920 = vpop.xlane.xlu0 %919
        %v921 = vadd.f32 %v546, %v547
        %922 = vadd.xlane.f32.xlu0 %v921
        %v923 = vpop.xlane.xlu0 %922
        %v924 = vadd.f32 %v548, %v549
        %925 = vadd.xlane.f32.xlu0 %v924
        %v926 = vpop.xlane.xlu0 %925
        %v927 = vadd.f32 %v550, %v551
        %928 = vadd.xlane.f32.xlu0 %v927
        %v929 = vpop.xlane.xlu0 %928
        %v930 = vadd.f32 %v552, %v553
        %931 = vadd.xlane.f32.xlu0 %v930
        %v932 = vpop.xlane.xlu0 %931
        %v933 = vadd.f32 %v554, %v555
        %934 = vadd.xlane.f32.xlu0 %v933
        %v935 = vpop.xlane.xlu0 %934
        %v936 = vadd.f32 %v556, %v557
        %937 = vadd.xlane.f32.xlu0 %v936
        %v938 = vpop.xlane.xlu0 %937
        %v939 = vadd.f32 %v558, %v559
        %940 = vadd.xlane.f32.xlu0 %v939
        %v941 = vpop.xlane.xlu0 %940
        %v942 = vadd.f32 %v560, %v561
        %943 = vadd.xlane.f32.xlu0 %v942
        %v944 = vpop.xlane.xlu0 %943
        %v945 = vrcp.pop 256.0
        %v946 = vmul.f32 256.0, %v945
        %v947 = vsub.f32 1.0, %v946
        %v948 = vmul.f32 %v945, %v947
        %v949 = vadd.f32 %v945, %v948
        %vm950 = vweird.f32 %v945
        %v951 = vsel %vm950, %v945, %v949
        %v952 = vmul.f32 %v899, %v951
        %v953 = vmul.f32 %v902, %v951
        %v954 = vmul.f32 %v905, %v951
        %v955 = vmul.f32 %v908, %v951
        %v956 = vmul.f32 %v911, %v951
        %v957 = vmul.f32 %v914, %v951
        %v958 = vmul.f32 %v917, %v951
        %v959 = vmul.f32 %v920, %v951
        %v960 = vmul.f32 %v923, %v951
        %v961 = vmul.f32 %v926, %v951
        %v962 = vmul.f32 %v929, %v951
        %v963 = vmul.f32 %v932, %v951
        %v964 = vmul.f32 %v935, %v951
        %v965 = vmul.f32 %v938, %v951
        %v966 = vmul.f32 %v941, %v951
        %v967 = vmul.f32 %v944, %v951
        %v968 = vsub.f32 %v530, %v952
        %v969 = vsub.f32 %v531, %v952
        %v970 = vsub.f32 %v532, %v953
        %v971 = vsub.f32 %v533, %v953
        %v972 = vsub.f32 %v534, %v954
        %v973 = vsub.f32 %v535, %v954
        %v974 = vsub.f32 %v536, %v955
        %v975 = vsub.f32 %v537, %v955
        %v976 = vsub.f32 %v538, %v956
        %v977 = vsub.f32 %v539, %v956
        %v978 = vsub.f32 %v540, %v957
        %v979 = vsub.f32 %v541, %v957
        %v980 = vsub.f32 %v542, %v958
        %v981 = vsub.f32 %v543, %v958
        %v982 = vsub.f32 %v544, %v959
        %v983 = vsub.f32 %v545, %v959
        %v984 = vsub.f32 %v546, %v960
        %v985 = vsub.f32 %v547, %v960
        %v986 = vsub.f32 %v548, %v961
        %v987 = vsub.f32 %v549, %v961
        %v988 = vsub.f32 %v550, %v962
        %v989 = vsub.f32 %v551, %v962
        %v990 = vsub.f32 %v552, %v963
        %v991 = vsub.f32 %v553, %v963
        %v992 = vsub.f32 %v554, %v964
        %v993 = vsub.f32 %v555, %v964
        %v994 = vsub.f32 %v556, %v965
        %v995 = vsub.f32 %v557, %v965
        %v996 = vsub.f32 %v558, %v966
        %v997 = vsub.f32 %v559, %v966
        %v998 = vsub.f32 %v560, %v967
        %v999 = vsub.f32 %v561, %v967
        %v1000 = vmul.f32 %v968, %v968
        %v1001 = vmul.f32 %v969, %v969
        %v1002 = vmul.f32 %v970, %v970
        %v1003 = vmul.f32 %v971, %v971
        %v1004 = vmul.f32 %v972, %v972
        %v1005 = vmul.f32 %v973, %v973
        %v1006 = vmul.f32 %v974, %v974
        %v1007 = vmul.f32 %v975, %v975
        %v1008 = vmul.f32 %v976, %v976
        %v1009 = vmul.f32 %v977, %v977
        %v1010 = vmul.f32 %v978, %v978
        %v1011 = vmul.f32 %v979, %v979
        %v1012 = vmul.f32 %v980, %v980
        %v1013 = vmul.f32 %v981, %v981
        %v1014 = vmul.f32 %v982, %v982
        %v1015 = vmul.f32 %v983, %v983
        %v1016 = vmul.f32 %v984, %v984
        %v1017 = vmul.f32 %v985, %v985
        %v1018 = vmul.f32 %v986, %v986
        %v1019 = vmul.f32 %v987, %v987
        %v1020 = vmul.f32 %v988, %v988
        %v1021 = vmul.f32 %v989, %v989
        %v1022 = vmul.f32 %v990, %v990
        %v1023 = vmul.f32 %v991, %v991
        %v1024 = vmul.f32 %v992, %v992
        %v1025 = vmul.f32 %v993, %v993
        %v1026 = vmul.f32 %v994, %v994
        %v1027 = vmul.f32 %v995, %v995
        %v1028 = vmul.f32 %v996, %v996
        %v1029 = vmul.f32 %v997, %v997
        %v1030 = vmul.f32 %v998, %v998
        %v1031 = vmul.f32 %v999, %v999
        %v1032 = vadd.f32 %v1000, %v1001
        %1033 = vadd.xlane.f32.xlu0 %v1032
        %v1034 = vpop.xlane.xlu0 %1033
        %v1035 = vadd.f32 %v1002, %v1003
        %1036 = vadd.xlane.f32.xlu0 %v1035
        %v1037 = vpop.xlane.xlu0 %1036
        %v1038 = vadd.f32 %v1004, %v1005
        %1039 = vadd.xlane.f32.xlu0 %v1038
        %v1040 = vpop.xlane.xlu0 %1039
        %v1041 = vadd.f32 %v1006, %v1007
        %1042 = vadd.xlane.f32.xlu0 %v1041
        %v1043 = vpop.xlane.xlu0 %1042
        %v1044 = vadd.f32 %v1008, %v1009
        %1045 = vadd.xlane.f32.xlu0 %v1044
        %v1046 = vpop.xlane.xlu0 %1045
        %v1047 = vadd.f32 %v1010, %v1011
        %1048 = vadd.xlane.f32.xlu0 %v1047
        %v1049 = vpop.xlane.xlu0 %1048
        %v1050 = vadd.f32 %v1012, %v1013
        %1051 = vadd.xlane.f32.xlu0 %v1050
        %v1052 = vpop.xlane.xlu0 %1051
        %v1053 = vadd.f32 %v1014, %v1015
        %1054 = vadd.xlane.f32.xlu0 %v1053
        %v1055 = vpop.xlane.xlu0 %1054
        %v1056 = vadd.f32 %v1016, %v1017
        %1057 = vadd.xlane.f32.xlu0 %v1056
        %v1058 = vpop.xlane.xlu0 %1057
        %v1059 = vadd.f32 %v1018, %v1019
        %1060 = vadd.xlane.f32.xlu0 %v1059
        %v1061 = vpop.xlane.xlu0 %1060
        %v1062 = vadd.f32 %v1020, %v1021
        %1063 = vadd.xlane.f32.xlu0 %v1062
        %v1064 = vpop.xlane.xlu0 %1063
        %v1065 = vadd.f32 %v1022, %v1023
        %1066 = vadd.xlane.f32.xlu0 %v1065
        %v1067 = vpop.xlane.xlu0 %1066
        %v1068 = vadd.f32 %v1024, %v1025
        %1069 = vadd.xlane.f32.xlu0 %v1068
        %v1070 = vpop.xlane.xlu0 %1069
        %v1071 = vadd.f32 %v1026, %v1027
        %1072 = vadd.xlane.f32.xlu0 %v1071
        %v1073 = vpop.xlane.xlu0 %1072
        %v1074 = vadd.f32 %v1028, %v1029
        %1075 = vadd.xlane.f32.xlu0 %v1074
        %v1076 = vpop.xlane.xlu0 %1075
        %v1077 = vadd.f32 %v1030, %v1031
        %1078 = vadd.xlane.f32.xlu0 %v1077
        %v1079 = vpop.xlane.xlu0 %1078
        %v1080 = vmul.f32 %v1034, %v951
        %v1081 = vmul.f32 %v1037, %v951
        %v1082 = vmul.f32 %v1040, %v951
        %v1083 = vmul.f32 %v1043, %v951
        %v1084 = vmul.f32 %v1046, %v951
        %v1085 = vmul.f32 %v1049, %v951
        %v1086 = vmul.f32 %v1052, %v951
        %v1087 = vmul.f32 %v1055, %v951
        %v1088 = vmul.f32 %v1058, %v951
        %v1089 = vmul.f32 %v1061, %v951
        %v1090 = vmul.f32 %v1064, %v951
        %v1091 = vmul.f32 %v1067, %v951
        %v1092 = vmul.f32 %v1070, %v951
        %v1093 = vmul.f32 %v1073, %v951
        %v1094 = vmul.f32 %v1076, %v951
        %v1095 = vmul.f32 %v1079, %v951
        %v1096 = vadd.f32 %v1080, 1e-05
        %v1097 = vadd.f32 %v1081, 1e-05
        %v1098 = vadd.f32 %v1082, 1e-05
        %v1099 = vadd.f32 %v1083, 1e-05
        %v1100 = vadd.f32 %v1084, 1e-05
        %v1101 = vadd.f32 %v1085, 1e-05
        %v1102 = vadd.f32 %v1086, 1e-05
        %v1103 = vadd.f32 %v1087, 1e-05
        %v1104 = vadd.f32 %v1088, 1e-05
        %v1105 = vadd.f32 %v1089, 1e-05
        %v1106 = vadd.f32 %v1090, 1e-05
        %v1107 = vadd.f32 %v1091, 1e-05
        %v1108 = vadd.f32 %v1092, 1e-05
        %v1109 = vadd.f32 %v1093, 1e-05
        %v1110 = vadd.f32 %v1094, 1e-05
        %v1111 = vadd.f32 %v1095, 1e-05
        %v1112 = vrsqrt.pop %v1096
        %v1113 = vmul.f32 %v1112, %v1096
        %v1114 = vmul.f32 %v1113, %v1112
        %v1115 = vmul.f32 0.5, %v1114
        %v1116 = vsub.f32 1.5, %v1115
        %v1117 = vmul.f32 %v1112, %v1116
        %vm1118 = vweird.f32 %v1096
        %vm1119 = vweird.f32 %v1112
        %vm1120 = vmor %vm1118, %vm1119
        %v1121 = vsel %vm1120, %v1112, %v1117
        %v1122 = vrsqrt.pop %v1097
        %v1123 = vmul.f32 %v1122, %v1097
        %v1124 = vmul.f32 %v1123, %v1122
        %v1125 = vmul.f32 0.5, %v1124
        %v1126 = vsub.f32 1.5, %v1125
        %v1127 = vmul.f32 %v1122, %v1126
        %vm1128 = vweird.f32 %v1097
        %vm1129 = vweird.f32 %v1122
        %vm1130 = vmor %vm1128, %vm1129
        %v1131 = vsel %vm1130, %v1122, %v1127
        %v1132 = vrsqrt.pop %v1098
        %v1133 = vmul.f32 %v1132, %v1098
        %v1134 = vmul.f32 %v1133, %v1132
        %v1135 = vmul.f32 0.5, %v1134
        %v1136 = vsub.f32 1.5, %v1135
        %v1137 = vmul.f32 %v1132, %v1136
        %vm1138 = vweird.f32 %v1098
        %vm1139 = vweird.f32 %v1132
        %vm1140 = vmor %vm1138, %vm1139
        %v1141 = vsel %vm1140, %v1132, %v1137
        %v1142 = vrsqrt.pop %v1099
        %v1143 = vmul.f32 %v1142, %v1099
        %v1144 = vmul.f32 %v1143, %v1142
        %v1145 = vmul.f32 0.5, %v1144
        %v1146 = vsub.f32 1.5, %v1145
        %v1147 = vmul.f32 %v1142, %v1146
        %vm1148 = vweird.f32 %v1099
        %vm1149 = vweird.f32 %v1142
        %vm1150 = vmor %vm1148, %vm1149
        %v1151 = vsel %vm1150, %v1142, %v1147
        %v1152 = vrsqrt.pop %v1100
        %v1153 = vmul.f32 %v1152, %v1100
        %v1154 = vmul.f32 %v1153, %v1152
        %v1155 = vmul.f32 0.5, %v1154
        %v1156 = vsub.f32 1.5, %v1155
        %v1157 = vmul.f32 %v1152, %v1156
        %vm1158 = vweird.f32 %v1100
        %vm1159 = vweird.f32 %v1152
        %vm1160 = vmor %vm1158, %vm1159
        %v1161 = vsel %vm1160, %v1152, %v1157
        %v1162 = vrsqrt.pop %v1101
        %v1163 = vmul.f32 %v1162, %v1101
        %v1164 = vmul.f32 %v1163, %v1162
        %v1165 = vmul.f32 0.5, %v1164
        %v1166 = vsub.f32 1.5, %v1165
        %v1167 = vmul.f32 %v1162, %v1166
        %vm1168 = vweird.f32 %v1101
        %vm1169 = vweird.f32 %v1162
        %vm1170 = vmor %vm1168, %vm1169
        %v1171 = vsel %vm1170, %v1162, %v1167
        %v1172 = vrsqrt.pop %v1102
        %v1173 = vmul.f32 %v1172, %v1102
        %v1174 = vmul.f32 %v1173, %v1172
        %v1175 = vmul.f32 0.5, %v1174
        %v1176 = vsub.f32 1.5, %v1175
        %v1177 = vmul.f32 %v1172, %v1176
        %vm1178 = vweird.f32 %v1102
        %vm1179 = vweird.f32 %v1172
        %vm1180 = vmor %vm1178, %vm1179
        %v1181 = vsel %vm1180, %v1172, %v1177
        %v1182 = vrsqrt.pop %v1103
        %v1183 = vmul.f32 %v1182, %v1103
        %v1184 = vmul.f32 %v1183, %v1182
        %v1185 = vmul.f32 0.5, %v1184
        %v1186 = vsub.f32 1.5, %v1185
        %v1187 = vmul.f32 %v1182, %v1186
        %vm1188 = vweird.f32 %v1103
        %vm1189 = vweird.f32 %v1182
        %vm1190 = vmor %vm1188, %vm1189
        %v1191 = vsel %vm1190, %v1182, %v1187
        %v1192 = vrsqrt.pop %v1104
        %v1193 = vmul.f32 %v1192, %v1104
        %v1194 = vmul.f32 %v1193, %v1192
        %v1195 = vmul.f32 0.5, %v1194
        %v1196 = vsub.f32 1.5, %v1195
        %v1197 = vmul.f32 %v1192, %v1196
        %vm1198 = vweird.f32 %v1104
        %vm1199 = vweird.f32 %v1192
        %vm1200 = vmor %vm1198, %vm1199
        %v1201 = vsel %vm1200, %v1192, %v1197
        %v1202 = vrsqrt.pop %v1105
        %v1203 = vmul.f32 %v1202, %v1105
        %v1204 = vmul.f32 %v1203, %v1202
        %v1205 = vmul.f32 0.5, %v1204
        %v1206 = vsub.f32 1.5, %v1205
        %v1207 = vmul.f32 %v1202, %v1206
        %vm1208 = vweird.f32 %v1105
        %vm1209 = vweird.f32 %v1202
        %vm1210 = vmor %vm1208, %vm1209
        %v1211 = vsel %vm1210, %v1202, %v1207
        %v1212 = vrsqrt.pop %v1106
        %v1213 = vmul.f32 %v1212, %v1106
        %v1214 = vmul.f32 %v1213, %v1212
        %v1215 = vmul.f32 0.5, %v1214
        %v1216 = vsub.f32 1.5, %v1215
        %v1217 = vmul.f32 %v1212, %v1216
        %vm1218 = vweird.f32 %v1106
        %vm1219 = vweird.f32 %v1212
        %vm1220 = vmor %vm1218, %vm1219
        %v1221 = vsel %vm1220, %v1212, %v1217
        %v1222 = vrsqrt.pop %v1107
        %v1223 = vmul.f32 %v1222, %v1107
        %v1224 = vmul.f32 %v1223, %v1222
        %v1225 = vmul.f32 0.5, %v1224
        %v1226 = vsub.f32 1.5, %v1225
        %v1227 = vmul.f32 %v1222, %v1226
        %vm1228 = vweird.f32 %v1107
        %vm1229 = vweird.f32 %v1222
        %vm1230 = vmor %vm1228, %vm1229
        %v1231 = vsel %vm1230, %v1222, %v1227
        %v1232 = vrsqrt.pop %v1108
        %v1233 = vmul.f32 %v1232, %v1108
        %v1234 = vmul.f32 %v1233, %v1232
        %v1235 = vmul.f32 0.5, %v1234
        %v1236 = vsub.f32 1.5, %v1235
        %v1237 = vmul.f32 %v1232, %v1236
        %vm1238 = vweird.f32 %v1108
        %vm1239 = vweird.f32 %v1232
        %vm1240 = vmor %vm1238, %vm1239
        %v1241 = vsel %vm1240, %v1232, %v1237
        %v1242 = vrsqrt.pop %v1109
        %v1243 = vmul.f32 %v1242, %v1109
        %v1244 = vmul.f32 %v1243, %v1242
        %v1245 = vmul.f32 0.5, %v1244
        %v1246 = vsub.f32 1.5, %v1245
        %v1247 = vmul.f32 %v1242, %v1246
        %vm1248 = vweird.f32 %v1109
        %vm1249 = vweird.f32 %v1242
        %vm1250 = vmor %vm1248, %vm1249
        %v1251 = vsel %vm1250, %v1242, %v1247
        %v1252 = vrsqrt.pop %v1110
        %v1253 = vmul.f32 %v1252, %v1110
        %v1254 = vmul.f32 %v1253, %v1252
        %v1255 = vmul.f32 0.5, %v1254
        %v1256 = vsub.f32 1.5, %v1255
        %v1257 = vmul.f32 %v1252, %v1256
        %vm1258 = vweird.f32 %v1110
        %vm1259 = vweird.f32 %v1252
        %vm1260 = vmor %vm1258, %vm1259
        %v1261 = vsel %vm1260, %v1252, %v1257
        %v1262 = vrsqrt.pop %v1111
        %v1263 = vmul.f32 %v1262, %v1111
        %v1264 = vmul.f32 %v1263, %v1262
        %v1265 = vmul.f32 0.5, %v1264
        %v1266 = vsub.f32 1.5, %v1265
        %v1267 = vmul.f32 %v1262, %v1266
        %vm1268 = vweird.f32 %v1111
        %vm1269 = vweird.f32 %v1262
        %vm1270 = vmor %vm1268, %vm1269
        %v1271 = vsel %vm1270, %v1262, %v1267
        %v1272 = vmul.f32 %v968, %v1121
        %v1273 = vmul.f32 %v969, %v1121
        %v1274 = vmul.f32 %v970, %v1131
        %v1275 = vmul.f32 %v971, %v1131
        %v1276 = vmul.f32 %v972, %v1141
        %v1277 = vmul.f32 %v973, %v1141
        %v1278 = vmul.f32 %v974, %v1151
        %v1279 = vmul.f32 %v975, %v1151
        %v1280 = vmul.f32 %v976, %v1161
        %v1281 = vmul.f32 %v977, %v1161
        %v1282 = vmul.f32 %v978, %v1171
        %v1283 = vmul.f32 %v979, %v1171
        %v1284 = vmul.f32 %v980, %v1181
        %v1285 = vmul.f32 %v981, %v1181
        %v1286 = vmul.f32 %v982, %v1191
        %v1287 = vmul.f32 %v983, %v1191
        %v1288 = vmul.f32 %v984, %v1201
        %v1289 = vmul.f32 %v985, %v1201
        %v1290 = vmul.f32 %v986, %v1211
        %v1291 = vmul.f32 %v987, %v1211
        %v1292 = vmul.f32 %v988, %v1221
        %v1293 = vmul.f32 %v989, %v1221
        %v1294 = vmul.f32 %v990, %v1231
        %v1295 = vmul.f32 %v991, %v1231
        %v1296 = vmul.f32 %v992, %v1241
        %v1297 = vmul.f32 %v993, %v1241
        %v1298 = vmul.f32 %v994, %v1251
        %v1299 = vmul.f32 %v995, %v1251
        %v1300 = vmul.f32 %v996, %v1261
        %v1301 = vmul.f32 %v997, %v1261
        %v1302 = vmul.f32 %v998, %v1271
        %v1303 = vmul.f32 %v999, %v1271
        %v1304 = vpack.c.bf16 %v1274, %v1272
        %v1305 = vpack.c.bf16 %v1275, %v1273
        %v1306 = vpack.c.bf16 %v1278, %v1276
        %v1307 = vpack.c.bf16 %v1279, %v1277
        %v1308 = vpack.c.bf16 %v1282, %v1280
        %v1309 = vpack.c.bf16 %v1283, %v1281
        %v1310 = vpack.c.bf16 %v1286, %v1284
        %v1311 = vpack.c.bf16 %v1287, %v1285
        %v1312 = vpack.c.bf16 %v1290, %v1288
        %v1313 = vpack.c.bf16 %v1291, %v1289
        %v1314 = vpack.c.bf16 %v1294, %v1292
        %v1315 = vpack.c.bf16 %v1295, %v1293
        %v1316 = vpack.c.bf16 %v1298, %v1296
        %v1317 = vpack.c.bf16 %v1299, %v1297
        %v1318 = vpack.c.bf16 %v1302, %v1300
        %v1319 = vpack.c.bf16 %v1303, %v1301
        %v1320 = vld [vmem:[#allocation6] sm:$0xf]
        %v1321 = vld [vmem:[#allocation6 + $0x4] sm:$0xf]
        %v1322 = vld [vmem:[#allocation6 + $0x8] sm:$0xf]
        %v1323 = vld [vmem:[#allocation6 + $0xc] sm:$0xf]
        %v1324 = vld [vmem:[#allocation6 + $0x10] sm:$0xf]
        %v1325 = vld [vmem:[#allocation6 + $0x14] sm:$0xf]
        %v1326 = vld [vmem:[#allocation6 + $0x18] sm:$0xf]
        %v1327 = vld [vmem:[#allocation6 + $0x1c] sm:$0xf]
        %v1328 = vld [vmem:[#allocation6 + $0x20] sm:$0xf]
        %v1329 = vld [vmem:[#allocation6 + $0x24] sm:$0xf]
        %v1330 = vld [vmem:[#allocation6 + $0x28] sm:$0xf]
        %v1331 = vld [vmem:[#allocation6 + $0x2c] sm:$0xf]
        %v1332 = vld [vmem:[#allocation6 + $0x30] sm:$0xf]
        %v1333 = vld [vmem:[#allocation6 + $0x34] sm:$0xf]
        %v1334 = vld [vmem:[#allocation6 + $0x38] sm:$0xf]
        %v1335 = vld [vmem:[#allocation6 + $0x3c] sm:$0xf]
        %v1352 = vunpack.c.l.b16 %v1320
        %v1353 = vunpack.c.l.b16 %v1321
        %v1354 = vunpack.c.l.b16 %v1322
        %v1355 = vunpack.c.l.b16 %v1323
        %v1356 = vunpack.c.l.b16 %v1324
        %v1357 = vunpack.c.l.b16 %v1325
        %v1358 = vunpack.c.l.b16 %v1326
        %v1359 = vunpack.c.l.b16 %v1327
        %v1360 = vunpack.c.l.b16 %v1328
        %v1361 = vunpack.c.l.b16 %v1329
        %v1362 = vunpack.c.l.b16 %v1330
        %v1363 = vunpack.c.l.b16 %v1331
        %v1364 = vunpack.c.l.b16 %v1332
        %v1365 = vunpack.c.l.b16 %v1333
        %v1366 = vunpack.c.l.b16 %v1334
        %v1367 = vunpack.c.l.b16 %v1335
        %v1368 = vpack.c.b16 %v1353, %v1352
        %v1369 = vpack.c.b16 %v1355, %v1354
        %v1370 = vpack.c.b16 %v1357, %v1356
        %v1371 = vpack.c.b16 %v1359, %v1358
        %v1372 = vpack.c.b16 %v1361, %v1360
        %v1373 = vpack.c.b16 %v1363, %v1362
        %v1374 = vpack.c.b16 %v1365, %v1364
        %v1375 = vpack.c.b16 %v1367, %v1366
        %1384 = vmatpush.bf16.msra.mxu0 %v1375
        %1385 = vmatpush.bf16.msra.mxu0 %v1374
        %1386 = vmatpush.bf16.msra.mxu0 %v1373
        %1387 = vmatpush.bf16.msra.mxu0 %v1372
        %1388 = vmatpush.bf16.msra.mxu0 %v1371
        %1389 = vmatpush.bf16.msra.mxu0 %v1370
        %1390 = vmatpush.bf16.msra.mxu0 %v1369
        %1391 = vmatpush.bf16.msra.mxu0 %v1368
        %1392 = vmatmul.bf16.gmra.mxu0 %v889
        %v1393 = vpop.f32.mrf.mxu0
        %v1394 = vadd.f32 0.0, %v1393
        %v1395 = vpop.f32.mrf.mxu0
        %v1396 = vadd.f32 0.0, %v1395
        %1397 = vmatmul.bf16.gmra.mxu0 %v890
        %v1398 = vpop.f32.mrf.mxu0
        %v1399 = vadd.f32 0.0, %v1398
        %v1400 = vpop.f32.mrf.mxu0
        %v1401 = vadd.f32 0.0, %v1400
        %1402 = vmatmul.bf16.gmra.mxu0 %v891
        %v1403 = vpop.f32.mrf.mxu0
        %v1404 = vadd.f32 0.0, %v1403
        %v1405 = vpop.f32.mrf.mxu0
        %v1406 = vadd.f32 0.0, %v1405
        %1407 = vmatmul.bf16.gmra.mxu0 %v892
        %v1408 = vpop.f32.mrf.mxu0
        %v1409 = vadd.f32 0.0, %v1408
        %v1410 = vpop.f32.mrf.mxu0
        %v1411 = vadd.f32 0.0, %v1410
        %1412 = vmatmul.bf16.gmra.mxu0 %v893
        %v1413 = vpop.f32.mrf.mxu0
        %v1414 = vadd.f32 0.0, %v1413
        %v1415 = vpop.f32.mrf.mxu0
        %v1416 = vadd.f32 0.0, %v1415
        %1417 = vmatmul.bf16.gmra.mxu0 %v894
        %v1418 = vpop.f32.mrf.mxu0
        %v1419 = vadd.f32 0.0, %v1418
        %v1420 = vpop.f32.mrf.mxu0
        %v1421 = vadd.f32 0.0, %v1420
        %1422 = vmatmul.bf16.gmra.mxu0 %v895
        %v1423 = vpop.f32.mrf.mxu0
        %v1424 = vadd.f32 0.0, %v1423
        %v1425 = vpop.f32.mrf.mxu0
        %v1426 = vadd.f32 0.0, %v1425
        %1427 = vmatmul.bf16.gmra.mxu0 %v896
        %v1428 = vpop.f32.mrf.mxu0
        %v1429 = vadd.f32 0.0, %v1428
        %v1430 = vpop.f32.mrf.mxu0
        %v1431 = vadd.f32 0.0, %v1430
        %1432 = vdwg.mxu0
        %v1433 = vld [vmem:[#allocation7] sm:$0xf]
        %v1434 = vld [vmem:[#allocation7 + $0x4] sm:$0xf]
        %v1435 = vld [vmem:[#allocation7 + $0x8] sm:$0xf]
        %v1436 = vld [vmem:[#allocation7 + $0xc] sm:$0xf]
        %v1437 = vld [vmem:[#allocation7 + $0x10] sm:$0xf]
        %v1438 = vld [vmem:[#allocation7 + $0x14] sm:$0xf]
        %v1439 = vld [vmem:[#allocation7 + $0x18] sm:$0xf]
        %v1440 = vld [vmem:[#allocation7 + $0x1c] sm:$0xf]
        %v1441 = vld [vmem:[#allocation7 + $0x20] sm:$0xf]
        %v1442 = vld [vmem:[#allocation7 + $0x24] sm:$0xf]
        %v1443 = vld [vmem:[#allocation7 + $0x28] sm:$0xf]
        %v1444 = vld [vmem:[#allocation7 + $0x2c] sm:$0xf]
        %v1445 = vld [vmem:[#allocation7 + $0x30] sm:$0xf]
        %v1446 = vld [vmem:[#allocation7 + $0x34] sm:$0xf]
        %v1447 = vld [vmem:[#allocation7 + $0x38] sm:$0xf]
        %v1448 = vld [vmem:[#allocation7 + $0x3c] sm:$0xf]
        %v1449 = vld [vmem:[#allocation7 + $0x40] sm:$0xf]
        %v1450 = vld [vmem:[#allocation7 + $0x44] sm:$0xf]
        %v1451 = vld [vmem:[#allocation7 + $0x48] sm:$0xf]
        %v1452 = vld [vmem:[#allocation7 + $0x4c] sm:$0xf]
        %v1453 = vld [vmem:[#allocation7 + $0x50] sm:$0xf]
        %v1454 = vld [vmem:[#allocation7 + $0x54] sm:$0xf]
        %v1455 = vld [vmem:[#allocation7 + $0x58] sm:$0xf]
        %v1456 = vld [vmem:[#allocation7 + $0x5c] sm:$0xf]
        %v1457 = vld [vmem:[#allocation7 + $0x60] sm:$0xf]
        %v1458 = vld [vmem:[#allocation7 + $0x64] sm:$0xf]
        %v1459 = vld [vmem:[#allocation7 + $0x68] sm:$0xf]
        %v1460 = vld [vmem:[#allocation7 + $0x6c] sm:$0xf]
        %v1461 = vld [vmem:[#allocation7 + $0x70] sm:$0xf]
        %v1462 = vld [vmem:[#allocation7 + $0x74] sm:$0xf]
        %v1463 = vld [vmem:[#allocation7 + $0x78] sm:$0xf]
        %v1464 = vld [vmem:[#allocation7 + $0x7c] sm:$0xf]
        %v1497 = vunpack.c.l.b16 %v1433
        %v1498 = vunpack.c.l.b16 %v1434
        %v1499 = vunpack.c.l.b16 %v1435
        %v1500 = vunpack.c.l.b16 %v1436
        %v1501 = vunpack.c.l.b16 %v1437
        %v1502 = vunpack.c.l.b16 %v1438
        %v1503 = vunpack.c.l.b16 %v1439
        %v1504 = vunpack.c.l.b16 %v1440
        %v1505 = vunpack.c.l.b16 %v1441
        %v1506 = vunpack.c.l.b16 %v1442
        %v1507 = vunpack.c.l.b16 %v1443
        %v1508 = vunpack.c.l.b16 %v1444
        %v1509 = vunpack.c.l.b16 %v1445
        %v1510 = vunpack.c.l.b16 %v1446
        %v1511 = vunpack.c.l.b16 %v1447
        %v1512 = vunpack.c.l.b16 %v1448
        %v1513 = vunpack.c.l.b16 %v1449
        %v1514 = vunpack.c.l.b16 %v1450
        %v1515 = vunpack.c.l.b16 %v1451
        %v1516 = vunpack.c.l.b16 %v1452
        %v1517 = vunpack.c.l.b16 %v1453
        %v1518 = vunpack.c.l.b16 %v1454
        %v1519 = vunpack.c.l.b16 %v1455
        %v1520 = vunpack.c.l.b16 %v1456
        %v1521 = vunpack.c.l.b16 %v1457
        %v1522 = vunpack.c.l.b16 %v1458
        %v1523 = vunpack.c.l.b16 %v1459
        %v1524 = vunpack.c.l.b16 %v1460
        %v1525 = vunpack.c.l.b16 %v1461
        %v1526 = vunpack.c.l.b16 %v1462
        %v1527 = vunpack.c.l.b16 %v1463
        %v1528 = vunpack.c.l.b16 %v1464
        %v1529 = vpack.c.b16 %v1498, %v1497
        %v1530 = vpack.c.b16 %v1500, %v1499
        %v1531 = vpack.c.b16 %v1502, %v1501
        %v1532 = vpack.c.b16 %v1504, %v1503
        %v1533 = vpack.c.b16 %v1506, %v1505
        %v1534 = vpack.c.b16 %v1508, %v1507
        %v1535 = vpack.c.b16 %v1510, %v1509
        %v1536 = vpack.c.b16 %v1512, %v1511
        %v1537 = vpack.c.b16 %v1514, %v1513
        %v1538 = vpack.c.b16 %v1516, %v1515
        %v1539 = vpack.c.b16 %v1518, %v1517
        %v1540 = vpack.c.b16 %v1520, %v1519
        %v1541 = vpack.c.b16 %v1522, %v1521
        %v1542 = vpack.c.b16 %v1524, %v1523
        %v1543 = vpack.c.b16 %v1526, %v1525
        %v1544 = vpack.c.b16 %v1528, %v1527
        %1561 = vmatpush.bf16.msra.mxu0 %v1536
        %1562 = vmatpush.bf16.msra.mxu0 %v1535
        %1563 = vmatpush.bf16.msra.mxu0 %v1534
        %1564 = vmatpush.bf16.msra.mxu0 %v1533
        %1565 = vmatpush.bf16.msra.mxu0 %v1532
        %1566 = vmatpush.bf16.msra.mxu0 %v1531
        %1567 = vmatpush.bf16.msra.mxu0 %v1530
        %1568 = vmatpush.bf16.msra.mxu0 %v1529
        %1569 = vmatmul.bf16.gmra.mxu0 %v1304
        %v1570 = vpop.f32.mrf.mxu0
        %v1571 = vadd.f32 0.0, %v1570
        %v1572 = vpop.f32.mrf.mxu0
        %v1573 = vadd.f32 0.0, %v1572
        %1574 = vmatmul.bf16.gmra.mxu0 %v1306
        %v1575 = vpop.f32.mrf.mxu0
        %v1576 = vadd.f32 0.0, %v1575
        %v1577 = vpop.f32.mrf.mxu0
        %v1578 = vadd.f32 0.0, %v1577
        %1579 = vmatmul.bf16.gmra.mxu0 %v1308
        %v1580 = vpop.f32.mrf.mxu0
        %v1581 = vadd.f32 0.0, %v1580
        %v1582 = vpop.f32.mrf.mxu0
        %v1583 = vadd.f32 0.0, %v1582
        %1584 = vmatmul.bf16.gmra.mxu0 %v1310
        %v1585 = vpop.f32.mrf.mxu0
        %v1586 = vadd.f32 0.0, %v1585
        %v1587 = vpop.f32.mrf.mxu0
        %v1588 = vadd.f32 0.0, %v1587
        %1589 = vmatmul.bf16.gmra.mxu0 %v1312
        %v1590 = vpop.f32.mrf.mxu0
        %v1591 = vadd.f32 0.0, %v1590
        %v1592 = vpop.f32.mrf.mxu0
        %v1593 = vadd.f32 0.0, %v1592
        %1594 = vmatmul.bf16.gmra.mxu0 %v1314
        %v1595 = vpop.f32.mrf.mxu0
        %v1596 = vadd.f32 0.0, %v1595
        %v1597 = vpop.f32.mrf.mxu0
        %v1598 = vadd.f32 0.0, %v1597
        %1599 = vmatmul.bf16.gmra.mxu0 %v1316
        %v1600 = vpop.f32.mrf.mxu0
        %v1601 = vadd.f32 0.0, %v1600
        %v1602 = vpop.f32.mrf.mxu0
        %v1603 = vadd.f32 0.0, %v1602
        %1604 = vmatmul.bf16.gmra.mxu0 %v1318
        %v1605 = vpop.f32.mrf.mxu0
        %v1606 = vadd.f32 0.0, %v1605
        %v1607 = vpop.f32.mrf.mxu0
        %v1608 = vadd.f32 0.0, %v1607
        %1609 = vdwg.mxu0
        %1610 = vmatpush.bf16.msra.mxu0 %v1544
        %1611 = vmatpush.bf16.msra.mxu0 %v1543
        %1612 = vmatpush.bf16.msra.mxu0 %v1542
        %1613 = vmatpush.bf16.msra.mxu0 %v1541
        %1614 = vmatpush.bf16.msra.mxu0 %v1540
        %1615 = vmatpush.bf16.msra.mxu0 %v1539
        %1616 = vmatpush.bf16.msra.mxu0 %v1538
        %1617 = vmatpush.bf16.msra.mxu0 %v1537
        %1618 = vmatmul.bf16.gmra.mxu0 %v1305
        %v1619 = vpop.f32.mrf.mxu0
        %v1620 = vadd.f32 %v1571, %v1619
        %v1621 = vpop.f32.mrf.mxu0
        %v1622 = vadd.f32 %v1573, %v1621
        %1623 = vmatmul.bf16.gmra.mxu0 %v1307
        %v1624 = vpop.f32.mrf.mxu0
        %v1625 = vadd.f32 %v1576, %v1624
        %v1626 = vpop.f32.mrf.mxu0
        %v1627 = vadd.f32 %v1578, %v1626
        %1628 = vmatmul.bf16.gmra.mxu0 %v1309
        %v1629 = vpop.f32.mrf.mxu0
        %v1630 = vadd.f32 %v1581, %v1629
        %v1631 = vpop.f32.mrf.mxu0
        %v1632 = vadd.f32 %v1583, %v1631
        %1633 = vmatmul.bf16.gmra.mxu0 %v1311
        %v1634 = vpop.f32.mrf.mxu0
        %v1635 = vadd.f32 %v1586, %v1634
        %v1636 = vpop.f32.mrf.mxu0
        %v1637 = vadd.f32 %v1588, %v1636
        %1638 = vmatmul.bf16.gmra.mxu0 %v1313
        %v1639 = vpop.f32.mrf.mxu0
        %v1640 = vadd.f32 %v1591, %v1639
        %v1641 = vpop.f32.mrf.mxu0
        %v1642 = vadd.f32 %v1593, %v1641
        %1643 = vmatmul.bf16.gmra.mxu0 %v1315
        %v1644 = vpop.f32.mrf.mxu0
        %v1645 = vadd.f32 %v1596, %v1644
        %v1646 = vpop.f32.mrf.mxu0
        %v1647 = vadd.f32 %v1598, %v1646
        %1648 = vmatmul.bf16.gmra.mxu0 %v1317
        %v1649 = vpop.f32.mrf.mxu0
        %v1650 = vadd.f32 %v1601, %v1649
        %v1651 = vpop.f32.mrf.mxu0
        %v1652 = vadd.f32 %v1603, %v1651
        %1653 = vmatmul.bf16.gmra.mxu0 %v1319
        %v1654 = vpop.f32.mrf.mxu0
        %v1655 = vadd.f32 %v1606, %v1654
        %v1656 = vpop.f32.mrf.mxu0
        %v1657 = vadd.f32 %v1608, %v1656
        %1658 = vdwg.mxu0
        %v1659 = vpack.c.bf16 %v1396, %v1394
        %v1660 = vpack.c.bf16 %v1401, %v1399
        %v1661 = vpack.c.bf16 %v1406, %v1404
        %v1662 = vpack.c.bf16 %v1411, %v1409
        %v1663 = vpack.c.bf16 %v1416, %v1414
        %v1664 = vpack.c.bf16 %v1421, %v1419
        %v1665 = vpack.c.bf16 %v1426, %v1424
        %v1666 = vpack.c.bf16 %v1431, %v1429
        %v1667 = vld [vmem:[#allocation9] sm:$0xff]
        %v1668 = vld [vmem:[#allocation9 + $0x8] sm:$0xff]
        %v1669 = vld [vmem:[#allocation9 + $0x10] sm:$0xff]
        %v1670 = vld [vmem:[#allocation9 + $0x18] sm:$0xff]
        %v1671 = vld [vmem:[#allocation9 + $0x20] sm:$0xff]
        %v1672 = vld [vmem:[#allocation9 + $0x28] sm:$0xff]
        %v1673 = vld [vmem:[#allocation9 + $0x30] sm:$0xff]
        %v1674 = vld [vmem:[#allocation9 + $0x38] sm:$0xff]
        %v1675 = vld [vmem:[#allocation9 + $0x40] sm:$0xff]
        %v1676 = vld [vmem:[#allocation9 + $0x48] sm:$0xff]
        %v1677 = vld [vmem:[#allocation9 + $0x50] sm:$0xff]
        %v1678 = vld [vmem:[#allocation9 + $0x58] sm:$0xff]
        %v1679 = vld [vmem:[#allocation9 + $0x60] sm:$0xff]
        %v1680 = vld [vmem:[#allocation9 + $0x68] sm:$0xff]
        %v1681 = vld [vmem:[#allocation9 + $0x70] sm:$0xff]
        %v1682 = vld [vmem:[#allocation9 + $0x78] sm:$0xff]
        %v1683 = vpack.c.bf16 %v1622, %v1620
        %v1684 = vpack.c.bf16 %v1627, %v1625
        %v1685 = vpack.c.bf16 %v1632, %v1630
        %v1686 = vpack.c.bf16 %v1637, %v1635
        %v1687 = vpack.c.bf16 %v1642, %v1640
        %v1688 = vpack.c.bf16 %v1647, %v1645
        %v1689 = vpack.c.bf16 %v1652, %v1650
        %v1690 = vpack.c.bf16 %v1657, %v1655
        %v1691 = vld [vmem:[#allocation10] sm:$0xff]
        %v1692 = vld [vmem:[#allocation10 + $0x8] sm:$0xff]
        %v1693 = vld [vmem:[#allocation10 + $0x10] sm:$0xff]
        %v1694 = vld [vmem:[#allocation10 + $0x18] sm:$0xff]
        %v1695 = vld [vmem:[#allocation10 + $0x20] sm:$0xff]
        %v1696 = vld [vmem:[#allocation10 + $0x28] sm:$0xff]
        %v1697 = vld [vmem:[#allocation10 + $0x30] sm:$0xff]
        %v1698 = vld [vmem:[#allocation10 + $0x38] sm:$0xff]
        %v1699 = vld [vmem:[#allocation10 + $0x40] sm:$0xff]
        %v1700 = vld [vmem:[#allocation10 + $0x48] sm:$0xff]
        %v1701 = vld [vmem:[#allocation10 + $0x50] sm:$0xff]
        %v1702 = vld [vmem:[#allocation10 + $0x58] sm:$0xff]
        %v1703 = vld [vmem:[#allocation10 + $0x60] sm:$0xff]
        %v1704 = vld [vmem:[#allocation10 + $0x68] sm:$0xff]
        %v1705 = vld [vmem:[#allocation10 + $0x70] sm:$0xff]
        %v1706 = vld [vmem:[#allocation10 + $0x78] sm:$0xff]
        %v1723 = vunpack.c.l.b16 %v1691
        %v1724 = vunpack.c.h.b16 %v1691
        %v1725 = vunpack.c.l.b16 %v1692
        %v1726 = vunpack.c.h.b16 %v1692
        %v1727 = vunpack.c.l.b16 %v1693
        %v1728 = vunpack.c.h.b16 %v1693
        %v1729 = vunpack.c.l.b16 %v1694
        %v1730 = vunpack.c.h.b16 %v1694
        %v1731 = vunpack.c.l.b16 %v1695
        %v1732 = vunpack.c.h.b16 %v1695
        %v1733 = vunpack.c.l.b16 %v1696
        %v1734 = vunpack.c.h.b16 %v1696
        %v1735 = vunpack.c.l.b16 %v1697
        %v1736 = vunpack.c.h.b16 %v1697
        %v1737 = vunpack.c.l.b16 %v1698
        %v1738 = vunpack.c.h.b16 %v1698
        %v1739 = vunpack.c.l.b16 %v1699
        %v1740 = vunpack.c.h.b16 %v1699
        %v1741 = vunpack.c.l.b16 %v1700
        %v1742 = vunpack.c.h.b16 %v1700
        %v1743 = vunpack.c.l.b16 %v1701
        %v1744 = vunpack.c.h.b16 %v1701
        %v1745 = vunpack.c.l.b16 %v1702
        %v1746 = vunpack.c.h.b16 %v1702
        %v1747 = vunpack.c.l.b16 %v1703
        %v1748 = vunpack.c.h.b16 %v1703
        %v1749 = vunpack.c.l.b16 %v1704
        %v1750 = vunpack.c.h.b16 %v1704
        %v1751 = vunpack.c.l.b16 %v1705
        %v1752 = vunpack.c.h.b16 %v1705
        %v1753 = vunpack.c.l.b16 %v1706
        %v1754 = vunpack.c.h.b16 %v1706
        %v1755 = vpack.c.b16 %v1725, %v1723
        %v1756 = vpack.c.b16 %v1726, %v1724
        %v1757 = vpack.c.b16 %v1729, %v1727
        %v1758 = vpack.c.b16 %v1730, %v1728
        %v1759 = vpack.c.b16 %v1733, %v1731
        %v1760 = vpack.c.b16 %v1734, %v1732
        %v1761 = vpack.c.b16 %v1737, %v1735
        %v1762 = vpack.c.b16 %v1738, %v1736
        %v1763 = vpack.c.b16 %v1741, %v1739
        %v1764 = vpack.c.b16 %v1742, %v1740
        %v1765 = vpack.c.b16 %v1745, %v1743
        %v1766 = vpack.c.b16 %v1746, %v1744
        %v1767 = vpack.c.b16 %v1749, %v1747
        %v1768 = vpack.c.b16 %v1750, %v1748
        %v1769 = vpack.c.b16 %v1753, %v1751
        %v1770 = vpack.c.b16 %v1754, %v1752
        %1787 = vmatpush.bf16.msra.mxu0 %v1769
        %1788 = vmatpush.bf16.msra.mxu0 %v1767
        %1789 = vmatpush.bf16.msra.mxu0 %v1765
        %1790 = vmatpush.bf16.msra.mxu0 %v1763
        %1791 = vmatpush.bf16.msra.mxu0 %v1761
        %1792 = vmatpush.bf16.msra.mxu0 %v1759
        %1793 = vmatpush.bf16.msra.mxu0 %v1757
        %1794 = vmatpush.bf16.msra.mxu0 %v1755
        %1795 = vmatmul.bf16.gmra.mxu0 %v1683
        %v1796 = vpop.f32.mrf.mxu0
        %v1797 = vadd.f32 0.0, %v1796
        %v1798 = vpop.f32.mrf.mxu0
        %v1799 = vadd.f32 0.0, %v1798
        %1800 = vmatmul.bf16.gmra.mxu0 %v1684
        %v1801 = vpop.f32.mrf.mxu0
        %v1802 = vadd.f32 0.0, %v1801
        %v1803 = vpop.f32.mrf.mxu0
        %v1804 = vadd.f32 0.0, %v1803
        %1805 = vmatmul.bf16.gmra.mxu0 %v1685
        %v1806 = vpop.f32.mrf.mxu0
        %v1807 = vadd.f32 0.0, %v1806
        %v1808 = vpop.f32.mrf.mxu0
        %v1809 = vadd.f32 0.0, %v1808
        %1810 = vmatmul.bf16.gmra.mxu0 %v1686
        %v1811 = vpop.f32.mrf.mxu0
        %v1812 = vadd.f32 0.0, %v1811
        %v1813 = vpop.f32.mrf.mxu0
        %v1814 = vadd.f32 0.0, %v1813
        %1815 = vmatmul.bf16.gmra.mxu0 %v1687
        %v1816 = vpop.f32.mrf.mxu0
        %v1817 = vadd.f32 0.0, %v1816
        %v1818 = vpop.f32.mrf.mxu0
        %v1819 = vadd.f32 0.0, %v1818
        %1820 = vmatmul.bf16.gmra.mxu0 %v1688
        %v1821 = vpop.f32.mrf.mxu0
        %v1822 = vadd.f32 0.0, %v1821
        %v1823 = vpop.f32.mrf.mxu0
        %v1824 = vadd.f32 0.0, %v1823
        %1825 = vmatmul.bf16.gmra.mxu0 %v1689
        %v1826 = vpop.f32.mrf.mxu0
        %v1827 = vadd.f32 0.0, %v1826
        %v1828 = vpop.f32.mrf.mxu0
        %v1829 = vadd.f32 0.0, %v1828
        %1830 = vmatmul.bf16.gmra.mxu0 %v1690
        %v1831 = vpop.f32.mrf.mxu0
        %v1832 = vadd.f32 0.0, %v1831
        %v1833 = vpop.f32.mrf.mxu0
        %v1834 = vadd.f32 0.0, %v1833
        %1835 = vdwg.mxu0
        %1836 = vmatpush.bf16.msra.mxu0 %v1770
        %1837 = vmatpush.bf16.msra.mxu0 %v1768
        %1838 = vmatpush.bf16.msra.mxu0 %v1766
        %1839 = vmatpush.bf16.msra.mxu0 %v1764
        %1840 = vmatpush.bf16.msra.mxu0 %v1762
        %1841 = vmatpush.bf16.msra.mxu0 %v1760
        %1842 = vmatpush.bf16.msra.mxu0 %v1758
        %1843 = vmatpush.bf16.msra.mxu0 %v1756
        %1844 = vmatmul.bf16.gmra.mxu0 %v1683
        %v1845 = vpop.f32.mrf.mxu0
        %v1846 = vadd.f32 0.0, %v1845
        %v1847 = vpop.f32.mrf.mxu0
        %v1848 = vadd.f32 0.0, %v1847
        %1849 = vmatmul.bf16.gmra.mxu0 %v1684
        %v1850 = vpop.f32.mrf.mxu0
        %v1851 = vadd.f32 0.0, %v1850
        %v1852 = vpop.f32.mrf.mxu0
        %v1853 = vadd.f32 0.0, %v1852
        %1854 = vmatmul.bf16.gmra.mxu0 %v1685
        %v1855 = vpop.f32.mrf.mxu0
        %v1856 = vadd.f32 0.0, %v1855
        %v1857 = vpop.f32.mrf.mxu0
        %v1858 = vadd.f32 0.0, %v1857
        %1859 = vmatmul.bf16.gmra.mxu0 %v1686
        %v1860 = vpop.f32.mrf.mxu0
        %v1861 = vadd.f32 0.0, %v1860
        %v1862 = vpop.f32.mrf.mxu0
        %v1863 = vadd.f32 0.0, %v1862
        %1864 = vmatmul.bf16.gmra.mxu0 %v1687
        %v1865 = vpop.f32.mrf.mxu0
        %v1866 = vadd.f32 0.0, %v1865
        %v1867 = vpop.f32.mrf.mxu0
        %v1868 = vadd.f32 0.0, %v1867
        %1869 = vmatmul.bf16.gmra.mxu0 %v1688
        %v1870 = vpop.f32.mrf.mxu0
        %v1871 = vadd.f32 0.0, %v1870
        %v1872 = vpop.f32.mrf.mxu0
        %v1873 = vadd.f32 0.0, %v1872
        %1874 = vmatmul.bf16.gmra.mxu0 %v1689
        %v1875 = vpop.f32.mrf.mxu0
        %v1876 = vadd.f32 0.0, %v1875
        %v1877 = vpop.f32.mrf.mxu0
        %v1878 = vadd.f32 0.0, %v1877
        %1879 = vmatmul.bf16.gmra.mxu0 %v1690
        %v1880 = vpop.f32.mrf.mxu0
        %v1881 = vadd.f32 0.0, %v1880
        %v1882 = vpop.f32.mrf.mxu0
        %v1883 = vadd.f32 0.0, %v1882
        %1884 = vdwg.mxu0
        %v1901 = vunpack.c.l.b16 %v1667
        %v1902 = vunpack.c.h.b16 %v1667
        %v1903 = vunpack.c.l.b16 %v1668
        %v1904 = vunpack.c.h.b16 %v1668
        %v1905 = vunpack.c.l.b16 %v1669
        %v1906 = vunpack.c.h.b16 %v1669
        %v1907 = vunpack.c.l.b16 %v1670
        %v1908 = vunpack.c.h.b16 %v1670
        %v1909 = vunpack.c.l.b16 %v1671
        %v1910 = vunpack.c.h.b16 %v1671
        %v1911 = vunpack.c.l.b16 %v1672
        %v1912 = vunpack.c.h.b16 %v1672
        %v1913 = vunpack.c.l.b16 %v1673
        %v1914 = vunpack.c.h.b16 %v1673
        %v1915 = vunpack.c.l.b16 %v1674
        %v1916 = vunpack.c.h.b16 %v1674
        %v1917 = vunpack.c.l.b16 %v1675
        %v1918 = vunpack.c.h.b16 %v1675
        %v1919 = vunpack.c.l.b16 %v1676
        %v1920 = vunpack.c.h.b16 %v1676
        %v1921 = vunpack.c.l.b16 %v1677
        %v1922 = vunpack.c.h.b16 %v1677
        %v1923 = vunpack.c.l.b16 %v1678
        %v1924 = vunpack.c.h.b16 %v1678
        %v1925 = vunpack.c.l.b16 %v1679
        %v1926 = vunpack.c.h.b16 %v1679
        %v1927 = vunpack.c.l.b16 %v1680
        %v1928 = vunpack.c.h.b16 %v1680
        %v1929 = vunpack.c.l.b16 %v1681
        %v1930 = vunpack.c.h.b16 %v1681
        %v1931 = vunpack.c.l.b16 %v1682
        %v1932 = vunpack.c.h.b16 %v1682
        %v1933 = vpack.c.b16 %v1903, %v1901
        %v1934 = vpack.c.b16 %v1904, %v1902
        %v1935 = vpack.c.b16 %v1907, %v1905
        %v1936 = vpack.c.b16 %v1908, %v1906
        %v1937 = vpack.c.b16 %v1911, %v1909
        %v1938 = vpack.c.b16 %v1912, %v1910
        %v1939 = vpack.c.b16 %v1915, %v1913
        %v1940 = vpack.c.b16 %v1916, %v1914
        %v1941 = vpack.c.b16 %v1919, %v1917
        %v1942 = vpack.c.b16 %v1920, %v1918
        %v1943 = vpack.c.b16 %v1923, %v1921
        %v1944 = vpack.c.b16 %v1924, %v1922
        %v1945 = vpack.c.b16 %v1927, %v1925
        %v1946 = vpack.c.b16 %v1928, %v1926
        %v1947 = vpack.c.b16 %v1931, %v1929
        %v1948 = vpack.c.b16 %v1932, %v1930
        %1965 = vmatpush.bf16.msra.mxu0 %v1947
        %1966 = vmatpush.bf16.msra.mxu0 %v1945
        %1967 = vmatpush.bf16.msra.mxu0 %v1943
        %1968 = vmatpush.bf16.msra.mxu0 %v1941
        %1969 = vmatpush.bf16.msra.mxu0 %v1939
        %1970 = vmatpush.bf16.msra.mxu0 %v1937
        %1971 = vmatpush.bf16.msra.mxu0 %v1935
        %1972 = vmatpush.bf16.msra.mxu0 %v1933
        %1973 = vmatmul.bf16.gmra.mxu0 %v1659
        %v1974 = vpop.f32.mrf.mxu0
        %v1975 = vadd.f32 %v1797, %v1974
        %v1976 = vpop.f32.mrf.mxu0
        %v1977 = vadd.f32 %v1799, %v1976
        %1978 = vmatmul.bf16.gmra.mxu0 %v1660
        %v1979 = vpop.f32.mrf.mxu0
        %v1980 = vadd.f32 %v1802, %v1979
        %v1981 = vpop.f32.mrf.mxu0
        %v1982 = vadd.f32 %v1804, %v1981
        %1983 = vmatmul.bf16.gmra.mxu0 %v1661
        %v1984 = vpop.f32.mrf.mxu0
        %v1985 = vadd.f32 %v1807, %v1984
        %v1986 = vpop.f32.mrf.mxu0
        %v1987 = vadd.f32 %v1809, %v1986
        %1988 = vmatmul.bf16.gmra.mxu0 %v1662
        %v1989 = vpop.f32.mrf.mxu0
        %v1990 = vadd.f32 %v1812, %v1989
        %v1991 = vpop.f32.mrf.mxu0
        %v1992 = vadd.f32 %v1814, %v1991
        %1993 = vmatmul.bf16.gmra.mxu0 %v1663
        %v1994 = vpop.f32.mrf.mxu0
        %v1995 = vadd.f32 %v1817, %v1994
        %v1996 = vpop.f32.mrf.mxu0
        %v1997 = vadd.f32 %v1819, %v1996
        %1998 = vmatmul.bf16.gmra.mxu0 %v1664
        %v1999 = vpop.f32.mrf.mxu0
        %v2000 = vadd.f32 %v1822, %v1999
        %v2001 = vpop.f32.mrf.mxu0
        %v2002 = vadd.f32 %v1824, %v2001
        %2003 = vmatmul.bf16.gmra.mxu0 %v1665
        %v2004 = vpop.f32.mrf.mxu0
        %v2005 = vadd.f32 %v1827, %v2004
        %v2006 = vpop.f32.mrf.mxu0
        %v2007 = vadd.f32 %v1829, %v2006
        %2008 = vmatmul.bf16.gmra.mxu0 %v1666
        %v2009 = vpop.f32.mrf.mxu0
        %v2010 = vadd.f32 %v1832, %v2009
        %v2011 = vpop.f32.mrf.mxu0
        %v2012 = vadd.f32 %v1834, %v2011
        %2013 = vdwg.mxu0
        %2014 = vmatpush.bf16.msra.mxu0 %v1948
        %2015 = vmatpush.bf16.msra.mxu0 %v1946
        %2016 = vmatpush.bf16.msra.mxu0 %v1944
        %2017 = vmatpush.bf16.msra.mxu0 %v1942
        %2018 = vmatpush.bf16.msra.mxu0 %v1940
        %2019 = vmatpush.bf16.msra.mxu0 %v1938
        %2020 = vmatpush.bf16.msra.mxu0 %v1936
        %2021 = vmatpush.bf16.msra.mxu0 %v1934
        %2022 = vmatmul.bf16.gmra.mxu0 %v1659
        %v2023 = vpop.f32.mrf.mxu0
        %v2024 = vadd.f32 %v1846, %v2023
        %v2025 = vpop.f32.mrf.mxu0
        %v2026 = vadd.f32 %v1848, %v2025
        %2027 = vmatmul.bf16.gmra.mxu0 %v1660
        %v2028 = vpop.f32.mrf.mxu0
        %v2029 = vadd.f32 %v1851, %v2028
        %v2030 = vpop.f32.mrf.mxu0
        %v2031 = vadd.f32 %v1853, %v2030
        %2032 = vmatmul.bf16.gmra.mxu0 %v1661
        %v2033 = vpop.f32.mrf.mxu0
        %v2034 = vadd.f32 %v1856, %v2033
        %v2035 = vpop.f32.mrf.mxu0
        %v2036 = vadd.f32 %v1858, %v2035
        %2037 = vmatmul.bf16.gmra.mxu0 %v1662
        %v2038 = vpop.f32.mrf.mxu0
        %v2039 = vadd.f32 %v1861, %v2038
        %v2040 = vpop.f32.mrf.mxu0
        %v2041 = vadd.f32 %v1863, %v2040
        %2042 = vmatmul.bf16.gmra.mxu0 %v1663
        %v2043 = vpop.f32.mrf.mxu0
        %v2044 = vadd.f32 %v1866, %v2043
        %v2045 = vpop.f32.mrf.mxu0
        %v2046 = vadd.f32 %v1868, %v2045
        %2047 = vmatmul.bf16.gmra.mxu0 %v1664
        %v2048 = vpop.f32.mrf.mxu0
        %v2049 = vadd.f32 %v1871, %v2048
        %v2050 = vpop.f32.mrf.mxu0
        %v2051 = vadd.f32 %v1873, %v2050
        %2052 = vmatmul.bf16.gmra.mxu0 %v1665
        %v2053 = vpop.f32.mrf.mxu0
        %v2054 = vadd.f32 %v1876, %v2053
        %v2055 = vpop.f32.mrf.mxu0
        %v2056 = vadd.f32 %v1878, %v2055
        %2057 = vmatmul.bf16.gmra.mxu0 %v1666
        %v2058 = vpop.f32.mrf.mxu0
        %v2059 = vadd.f32 %v1881, %v2058
        %v2060 = vpop.f32.mrf.mxu0
        %v2061 = vadd.f32 %v1883, %v2060
        %2062 = vdwg.mxu0
        %v2063 = vld [vmem:[#allocation15] ss:$8 sm:$0x3]
        %v2065 = vperm.slane %v2063, 0
        %v2066 = vperm.slane %v2063, 1
        %v2069 = vadd.f32 %v1975, %v2065
        %v2070 = vadd.f32 %v2024, %v2066
        %v2071 = vadd.f32 %v1977, %v2065
        %v2072 = vadd.f32 %v2026, %v2066
        %v2073 = vadd.f32 %v1980, %v2065
        %v2074 = vadd.f32 %v2029, %v2066
        %v2075 = vadd.f32 %v1982, %v2065
        %v2076 = vadd.f32 %v2031, %v2066
        %v2077 = vadd.f32 %v1985, %v2065
        %v2078 = vadd.f32 %v2034, %v2066
        %v2079 = vadd.f32 %v1987, %v2065
        %v2080 = vadd.f32 %v2036, %v2066
        %v2081 = vadd.f32 %v1990, %v2065
        %v2082 = vadd.f32 %v2039, %v2066
        %v2083 = vadd.f32 %v1992, %v2065
        %v2084 = vadd.f32 %v2041, %v2066
        %v2085 = vadd.f32 %v1995, %v2065
        %v2086 = vadd.f32 %v2044, %v2066
        %v2087 = vadd.f32 %v1997, %v2065
        %v2088 = vadd.f32 %v2046, %v2066
        %v2089 = vadd.f32 %v2000, %v2065
        %v2090 = vadd.f32 %v2049, %v2066
        %v2091 = vadd.f32 %v2002, %v2065
        %v2092 = vadd.f32 %v2051, %v2066
        %v2093 = vadd.f32 %v2005, %v2065
        %v2094 = vadd.f32 %v2054, %v2066
        %v2095 = vadd.f32 %v2007, %v2065
        %v2096 = vadd.f32 %v2056, %v2066
        %v2097 = vadd.f32 %v2010, %v2065
        %v2098 = vadd.f32 %v2059, %v2066
        %v2099 = vadd.f32 %v2012, %v2065
        %v2100 = vadd.f32 %v2061, %v2066
        %v2101 = vmul.f32 %v2069, 0.5
        %v2102 = vmul.f32 %v2070, 0.5
        %v2103 = vmul.f32 %v2071, 0.5
        %v2104 = vmul.f32 %v2072, 0.5
        %v2105 = vmul.f32 %v2073, 0.5
        %v2106 = vmul.f32 %v2074, 0.5
        %v2107 = vmul.f32 %v2075, 0.5
        %v2108 = vmul.f32 %v2076, 0.5
        %v2109 = vmul.f32 %v2077, 0.5
        %v2110 = vmul.f32 %v2078, 0.5
        %v2111 = vmul.f32 %v2079, 0.5
        %v2112 = vmul.f32 %v2080, 0.5
        %v2113 = vmul.f32 %v2081, 0.5
        %v2114 = vmul.f32 %v2082, 0.5
        %v2115 = vmul.f32 %v2083, 0.5
        %v2116 = vmul.f32 %v2084, 0.5
        %v2117 = vmul.f32 %v2085, 0.5
        %v2118 = vmul.f32 %v2086, 0.5
        %v2119 = vmul.f32 %v2087, 0.5
        %v2120 = vmul.f32 %v2088, 0.5
        %v2121 = vmul.f32 %v2089, 0.5
        %v2122 = vmul.f32 %v2090, 0.5
        %v2123 = vmul.f32 %v2091, 0.5
        %v2124 = vmul.f32 %v2092, 0.5
        %v2125 = vmul.f32 %v2093, 0.5
        %v2126 = vmul.f32 %v2094, 0.5
        %v2127 = vmul.f32 %v2095, 0.5
        %v2128 = vmul.f32 %v2096, 0.5
        %v2129 = vmul.f32 %v2097, 0.5
        %v2130 = vmul.f32 %v2098, 0.5
        %v2131 = vmul.f32 %v2099, 0.5
        %v2132 = vmul.f32 %v2100, 0.5
        %v2133 = vmul.f32 %v2069, 0.70710677
        %v2134 = vmul.f32 %v2070, 0.70710677
        %v2135 = vmul.f32 %v2071, 0.70710677
        %v2136 = vmul.f32 %v2072, 0.70710677
        %v2137 = vmul.f32 %v2073, 0.70710677
        %v2138 = vmul.f32 %v2074, 0.70710677
        %v2139 = vmul.f32 %v2075, 0.70710677
        %v2140 = vmul.f32 %v2076, 0.70710677
        %v2141 = vmul.f32 %v2077, 0.70710677
        %v2142 = vmul.f32 %v2078, 0.70710677
        %v2143 = vmul.f32 %v2079, 0.70710677
        %v2144 = vmul.f32 %v2080, 0.70710677
        %v2145 = vmul.f32 %v2081, 0.70710677
        %v2146 = vmul.f32 %v2082, 0.70710677
        %v2147 = vmul.f32 %v2083, 0.70710677
        %v2148 = vmul.f32 %v2084, 0.70710677
        %v2149 = vmul.f32 %v2085, 0.70710677
        %v2150 = vmul.f32 %v2086, 0.70710677
        %v2151 = vmul.f32 %v2087, 0.70710677
        %v2152 = vmul.f32 %v2088, 0.70710677
        %v2153 = vmul.f32 %v2089, 0.70710677
        %v2154 = vmul.f32 %v2090, 0.70710677
        %v2155 = vmul.f32 %v2091, 0.70710677
        %v2156 = vmul.f32 %v2092, 0.70710677
        %v2157 = vmul.f32 %v2093, 0.70710677
        %v2158 = vmul.f32 %v2094, 0.70710677
        %v2159 = vmul.f32 %v2095, 0.70710677
        %v2160 = vmul.f32 %v2096, 0.70710677
        %v2161 = vmul.f32 %v2097, 0.70710677
        %v2162 = vmul.f32 %v2098, 0.70710677
        %v2163 = vmul.f32 %v2099, 0.70710677
        %v2164 = vmul.f32 %v2100, 0.70710677
        %v2165 = vmul.f32 %v2133, %v2133
        %v2166 = vmin.f32 16.0, %v2165
        %v2167 = vmul.f32 %v2166, 2.1237322e-06
        %v2168 = vadd.f32 %v2167, 0.00028619796
        %v2169 = vmul.f32 %v2166, %v2168
        %v2170 = vadd.f32 %v2169, 0.0036580483
        %v2171 = vmul.f32 %v2166, %v2170
        %v2172 = vadd.f32 %v2171, 0.05243302
        %v2173 = vmul.f32 %v2166, %v2172
        %v2174 = vadd.f32 %v2173, 0.18741608
        %v2175 = vmul.f32 %v2166, %v2174
        %v2176 = vadd.f32 %v2175, 1.1283791
        %v2177 = vmul.f32 %v2133, %v2176
        %v2178 = vmul.f32 %v2166, 3.8918573e-05
        %v2179 = vadd.f32 %v2178, 0.001143296
        %v2180 = vmul.f32 %v2166, %v2179
        %v2181 = vadd.f32 %v2180, 0.014752088
        %v2182 = vmul.f32 %v2166, %v2181
        %v2183 = vadd.f32 %v2182, 0.112945676
        %v2184 = vmul.f32 %v2166, %v2183
        %v2185 = vadd.f32 %v2184, 0.4994258
        %v2186 = vmul.f32 %v2166, %v2185
        %v2187 = vadd.f32 %v2186, 1.0
        %v2188 = vrcp.pop %v2187
        %v2189 = vmul.f32 %v2187, %v2188
        %v2190 = vsub.f32 1.0, %v2189
        %v2191 = vmul.f32 %v2188, %v2190
        %v2192 = vadd.f32 %v2188, %v2191
        %vm2193 = vweird.f32 %v2187
        %vm2194 = vweird.f32 %v2188
        %vm2195 = vmor %vm2193, %vm2194
        %v2196 = vsel %vm2195, %v2188, %v2192
        %v2197 = vand.u32 2147483647, %v2187
        %vm2198 = vcmp.eq.f32.partialorder %v2197, 8.507059e+37
        %v2199 = vand.u32 %v2187, 2147483648
        %v2200 = vor.u32 1.1754944e-38, %v2199
        %v2201 = vsel %vm2198, %v2200, %v2196
        %v2202 = vmul.f32 %v2177, %v2201
        %v2203 = vmin.f32 %v2202, 1.0
        %v2204 = vmax.f32 %v2203, -1.0
        %v2205 = vmul.f32 %v2134, %v2134
        %v2206 = vmin.f32 16.0, %v2205
        %v2207 = vmul.f32 %v2206, 2.1237322e-06
        %v2208 = vadd.f32 %v2207, 0.00028619796
        %v2209 = vmul.f32 %v2206, %v2208
        %v2210 = vadd.f32 %v2209, 0.0036580483
        %v2211 = vmul.f32 %v2206, %v2210
        %v2212 = vadd.f32 %v2211, 0.05243302
        %v2213 = vmul.f32 %v2206, %v2212
        %v2214 = vadd.f32 %v2213, 0.18741608
        %v2215 = vmul.f32 %v2206, %v2214
        %v2216 = vadd.f32 %v2215, 1.1283791
        %v2217 = vmul.f32 %v2134, %v2216
        %v2218 = vmul.f32 %v2206, 3.8918573e-05
        %v2219 = vadd.f32 %v2218, 0.001143296
        %v2220 = vmul.f32 %v2206, %v2219
        %v2221 = vadd.f32 %v2220, 0.014752088
        %v2222 = vmul.f32 %v2206, %v2221
        %v2223 = vadd.f32 %v2222, 0.112945676
        %v2224 = vmul.f32 %v2206, %v2223
        %v2225 = vadd.f32 %v2224, 0.4994258
        %v2226 = vmul.f32 %v2206, %v2225
        %v2227 = vadd.f32 %v2226, 1.0
        %v2228 = vrcp.pop %v2227
        %v2229 = vmul.f32 %v2227, %v2228
        %v2230 = vsub.f32 1.0, %v2229
        %v2231 = vmul.f32 %v2228, %v2230
        %v2232 = vadd.f32 %v2228, %v2231
        %vm2233 = vweird.f32 %v2227
        %vm2234 = vweird.f32 %v2228
        %vm2235 = vmor %vm2233, %vm2234
        %v2236 = vsel %vm2235, %v2228, %v2232
        %v2237 = vand.u32 2147483647, %v2227
        %vm2238 = vcmp.eq.f32.partialorder %v2237, 8.507059e+37
        %v2239 = vand.u32 %v2227, 2147483648
        %v2240 = vor.u32 1.1754944e-38, %v2239
        %v2241 = vsel %vm2238, %v2240, %v2236
        %v2242 = vmul.f32 %v2217, %v2241
        %v2243 = vmin.f32 %v2242, 1.0
        %v2244 = vmax.f32 %v2243, -1.0
        %v2245 = vmul.f32 %v2135, %v2135
        %v2246 = vmin.f32 16.0, %v2245
        %v2247 = vmul.f32 %v2246, 2.1237322e-06
        %v2248 = vadd.f32 %v2247, 0.00028619796
        %v2249 = vmul.f32 %v2246, %v2248
        %v2250 = vadd.f32 %v2249, 0.0036580483
        %v2251 = vmul.f32 %v2246, %v2250
        %v2252 = vadd.f32 %v2251, 0.05243302
        %v2253 = vmul.f32 %v2246, %v2252
        %v2254 = vadd.f32 %v2253, 0.18741608
        %v2255 = vmul.f32 %v2246, %v2254
        %v2256 = vadd.f32 %v2255, 1.1283791
        %v2257 = vmul.f32 %v2135, %v2256
        %v2258 = vmul.f32 %v2246, 3.8918573e-05
        %v2259 = vadd.f32 %v2258, 0.001143296
        %v2260 = vmul.f32 %v2246, %v2259
        %v2261 = vadd.f32 %v2260, 0.014752088
        %v2262 = vmul.f32 %v2246, %v2261
        %v2263 = vadd.f32 %v2262, 0.112945676
        %v2264 = vmul.f32 %v2246, %v2263
        %v2265 = vadd.f32 %v2264, 0.4994258
        %v2266 = vmul.f32 %v2246, %v2265
        %v2267 = vadd.f32 %v2266, 1.0
        %v2268 = vrcp.pop %v2267
        %v2269 = vmul.f32 %v2267, %v2268
        %v2270 = vsub.f32 1.0, %v2269
        %v2271 = vmul.f32 %v2268, %v2270
        %v2272 = vadd.f32 %v2268, %v2271
        %vm2273 = vweird.f32 %v2267
        %vm2274 = vweird.f32 %v2268
        %vm2275 = vmor %vm2273, %vm2274
        %v2276 = vsel %vm2275, %v2268, %v2272
        %v2277 = vand.u32 2147483647, %v2267
        %vm2278 = vcmp.eq.f32.partialorder %v2277, 8.507059e+37
        %v2279 = vand.u32 %v2267, 2147483648
        %v2280 = vor.u32 1.1754944e-38, %v2279
        %v2281 = vsel %vm2278, %v2280, %v2276
        %v2282 = vmul.f32 %v2257, %v2281
        %v2283 = vmin.f32 %v2282, 1.0
        %v2284 = vmax.f32 %v2283, -1.0
        %v2285 = vmul.f32 %v2136, %v2136
        %v2286 = vmin.f32 16.0, %v2285
        %v2287 = vmul.f32 %v2286, 2.1237322e-06
        %v2288 = vadd.f32 %v2287, 0.00028619796
        %v2289 = vmul.f32 %v2286, %v2288
        %v2290 = vadd.f32 %v2289, 0.0036580483
        %v2291 = vmul.f32 %v2286, %v2290
        %v2292 = vadd.f32 %v2291, 0.05243302
        %v2293 = vmul.f32 %v2286, %v2292
        %v2294 = vadd.f32 %v2293, 0.18741608
        %v2295 = vmul.f32 %v2286, %v2294
        %v2296 = vadd.f32 %v2295, 1.1283791
        %v2297 = vmul.f32 %v2136, %v2296
        %v2298 = vmul.f32 %v2286, 3.8918573e-05
        %v2299 = vadd.f32 %v2298, 0.001143296
        %v2300 = vmul.f32 %v2286, %v2299
        %v2301 = vadd.f32 %v2300, 0.014752088
        %v2302 = vmul.f32 %v2286, %v2301
        %v2303 = vadd.f32 %v2302, 0.112945676
        %v2304 = vmul.f32 %v2286, %v2303
        %v2305 = vadd.f32 %v2304, 0.4994258
        %v2306 = vmul.f32 %v2286, %v2305
        %v2307 = vadd.f32 %v2306, 1.0
        %v2308 = vrcp.pop %v2307
        %v2309 = vmul.f32 %v2307, %v2308
        %v2310 = vsub.f32 1.0, %v2309
        %v2311 = vmul.f32 %v2308, %v2310
        %v2312 = vadd.f32 %v2308, %v2311
        %vm2313 = vweird.f32 %v2307
        %vm2314 = vweird.f32 %v2308
        %vm2315 = vmor %vm2313, %vm2314
        %v2316 = vsel %vm2315, %v2308, %v2312
        %v2317 = vand.u32 2147483647, %v2307
        %vm2318 = vcmp.eq.f32.partialorder %v2317, 8.507059e+37
        %v2319 = vand.u32 %v2307, 2147483648
        %v2320 = vor.u32 1.1754944e-38, %v2319
        %v2321 = vsel %vm2318, %v2320, %v2316
        %v2322 = vmul.f32 %v2297, %v2321
        %v2323 = vmin.f32 %v2322, 1.0
        %v2324 = vmax.f32 %v2323, -1.0
        %v2325 = vmul.f32 %v2137, %v2137
        %v2326 = vmin.f32 16.0, %v2325
        %v2327 = vmul.f32 %v2326, 2.1237322e-06
        %v2328 = vadd.f32 %v2327, 0.00028619796
        %v2329 = vmul.f32 %v2326, %v2328
        %v2330 = vadd.f32 %v2329, 0.0036580483
        %v2331 = vmul.f32 %v2326, %v2330
        %v2332 = vadd.f32 %v2331, 0.05243302
        %v2333 = vmul.f32 %v2326, %v2332
        %v2334 = vadd.f32 %v2333, 0.18741608
        %v2335 = vmul.f32 %v2326, %v2334
        %v2336 = vadd.f32 %v2335, 1.1283791
        %v2337 = vmul.f32 %v2137, %v2336
        %v2338 = vmul.f32 %v2326, 3.8918573e-05
        %v2339 = vadd.f32 %v2338, 0.001143296
        %v2340 = vmul.f32 %v2326, %v2339
        %v2341 = vadd.f32 %v2340, 0.014752088
        %v2342 = vmul.f32 %v2326, %v2341
        %v2343 = vadd.f32 %v2342, 0.112945676
        %v2344 = vmul.f32 %v2326, %v2343
        %v2345 = vadd.f32 %v2344, 0.4994258
        %v2346 = vmul.f32 %v2326, %v2345
        %v2347 = vadd.f32 %v2346, 1.0
        %v2348 = vrcp.pop %v2347
        %v2349 = vmul.f32 %v2347, %v2348
        %v2350 = vsub.f32 1.0, %v2349
        %v2351 = vmul.f32 %v2348, %v2350
        %v2352 = vadd.f32 %v2348, %v2351
        %vm2353 = vweird.f32 %v2347
        %vm2354 = vweird.f32 %v2348
        %vm2355 = vmor %vm2353, %vm2354
        %v2356 = vsel %vm2355, %v2348, %v2352
        %v2357 = vand.u32 2147483647, %v2347
        %vm2358 = vcmp.eq.f32.partialorder %v2357, 8.507059e+37
        %v2359 = vand.u32 %v2347, 2147483648
        %v2360 = vor.u32 1.1754944e-38, %v2359
        %v2361 = vsel %vm2358, %v2360, %v2356
        %v2362 = vmul.f32 %v2337, %v2361
        %v2363 = vmin.f32 %v2362, 1.0
        %v2364 = vmax.f32 %v2363, -1.0
        %v2365 = vmul.f32 %v2138, %v2138
        %v2366 = vmin.f32 16.0, %v2365
        %v2367 = vmul.f32 %v2366, 2.1237322e-06
        %v2368 = vadd.f32 %v2367, 0.00028619796
        %v2369 = vmul.f32 %v2366, %v2368
        %v2370 = vadd.f32 %v2369, 0.0036580483
        %v2371 = vmul.f32 %v2366, %v2370
        %v2372 = vadd.f32 %v2371, 0.05243302
        %v2373 = vmul.f32 %v2366, %v2372
        %v2374 = vadd.f32 %v2373, 0.18741608
        %v2375 = vmul.f32 %v2366, %v2374
        %v2376 = vadd.f32 %v2375, 1.1283791
        %v2377 = vmul.f32 %v2138, %v2376
        %v2378 = vmul.f32 %v2366, 3.8918573e-05
        %v2379 = vadd.f32 %v2378, 0.001143296
        %v2380 = vmul.f32 %v2366, %v2379
        %v2381 = vadd.f32 %v2380, 0.014752088
        %v2382 = vmul.f32 %v2366, %v2381
        %v2383 = vadd.f32 %v2382, 0.112945676
        %v2384 = vmul.f32 %v2366, %v2383
        %v2385 = vadd.f32 %v2384, 0.4994258
        %v2386 = vmul.f32 %v2366, %v2385
        %v2387 = vadd.f32 %v2386, 1.0
        %v2388 = vrcp.pop %v2387
        %v2389 = vmul.f32 %v2387, %v2388
        %v2390 = vsub.f32 1.0, %v2389
        %v2391 = vmul.f32 %v2388, %v2390
        %v2392 = vadd.f32 %v2388, %v2391
        %vm2393 = vweird.f32 %v2387
        %vm2394 = vweird.f32 %v2388
        %vm2395 = vmor %vm2393, %vm2394
        %v2396 = vsel %vm2395, %v2388, %v2392
        %v2397 = vand.u32 2147483647, %v2387
        %vm2398 = vcmp.eq.f32.partialorder %v2397, 8.507059e+37
        %v2399 = vand.u32 %v2387, 2147483648
        %v2400 = vor.u32 1.1754944e-38, %v2399
        %v2401 = vsel %vm2398, %v2400, %v2396
        %v2402 = vmul.f32 %v2377, %v2401
        %v2403 = vmin.f32 %v2402, 1.0
        %v2404 = vmax.f32 %v2403, -1.0
        %v2405 = vmul.f32 %v2139, %v2139
        %v2406 = vmin.f32 16.0, %v2405
        %v2407 = vmul.f32 %v2406, 2.1237322e-06
        %v2408 = vadd.f32 %v2407, 0.00028619796
        %v2409 = vmul.f32 %v2406, %v2408
        %v2410 = vadd.f32 %v2409, 0.0036580483
        %v2411 = vmul.f32 %v2406, %v2410
        %v2412 = vadd.f32 %v2411, 0.05243302
        %v2413 = vmul.f32 %v2406, %v2412
        %v2414 = vadd.f32 %v2413, 0.18741608
        %v2415 = vmul.f32 %v2406, %v2414
        %v2416 = vadd.f32 %v2415, 1.1283791
        %v2417 = vmul.f32 %v2139, %v2416
        %v2418 = vmul.f32 %v2406, 3.8918573e-05
        %v2419 = vadd.f32 %v2418, 0.001143296
        %v2420 = vmul.f32 %v2406, %v2419
        %v2421 = vadd.f32 %v2420, 0.014752088
        %v2422 = vmul.f32 %v2406, %v2421
        %v2423 = vadd.f32 %v2422, 0.112945676
        %v2424 = vmul.f32 %v2406, %v2423
        %v2425 = vadd.f32 %v2424, 0.4994258
        %v2426 = vmul.f32 %v2406, %v2425
        %v2427 = vadd.f32 %v2426, 1.0
        %v2428 = vrcp.pop %v2427
        %v2429 = vmul.f32 %v2427, %v2428
        %v2430 = vsub.f32 1.0, %v2429
        %v2431 = vmul.f32 %v2428, %v2430
        %v2432 = vadd.f32 %v2428, %v2431
        %vm2433 = vweird.f32 %v2427
        %vm2434 = vweird.f32 %v2428
        %vm2435 = vmor %vm2433, %vm2434
        %v2436 = vsel %vm2435, %v2428, %v2432
        %v2437 = vand.u32 2147483647, %v2427
        %vm2438 = vcmp.eq.f32.partialorder %v2437, 8.507059e+37
        %v2439 = vand.u32 %v2427, 2147483648
        %v2440 = vor.u32 1.1754944e-38, %v2439
        %v2441 = vsel %vm2438, %v2440, %v2436
        %v2442 = vmul.f32 %v2417, %v2441
        %v2443 = vmin.f32 %v2442, 1.0
        %v2444 = vmax.f32 %v2443, -1.0
        %v2445 = vmul.f32 %v2140, %v2140
        %v2446 = vmin.f32 16.0, %v2445
        %v2447 = vmul.f32 %v2446, 2.1237322e-06
        %v2448 = vadd.f32 %v2447, 0.00028619796
        %v2449 = vmul.f32 %v2446, %v2448
        %v2450 = vadd.f32 %v2449, 0.0036580483
        %v2451 = vmul.f32 %v2446, %v2450
        %v2452 = vadd.f32 %v2451, 0.05243302
        %v2453 = vmul.f32 %v2446, %v2452
        %v2454 = vadd.f32 %v2453, 0.18741608
        %v2455 = vmul.f32 %v2446, %v2454
        %v2456 = vadd.f32 %v2455, 1.1283791
        %v2457 = vmul.f32 %v2140, %v2456
        %v2458 = vmul.f32 %v2446, 3.8918573e-05
        %v2459 = vadd.f32 %v2458, 0.001143296
        %v2460 = vmul.f32 %v2446, %v2459
        %v2461 = vadd.f32 %v2460, 0.014752088
        %v2462 = vmul.f32 %v2446, %v2461
        %v2463 = vadd.f32 %v2462, 0.112945676
        %v2464 = vmul.f32 %v2446, %v2463
        %v2465 = vadd.f32 %v2464, 0.4994258
        %v2466 = vmul.f32 %v2446, %v2465
        %v2467 = vadd.f32 %v2466, 1.0
        %v2468 = vrcp.pop %v2467
        %v2469 = vmul.f32 %v2467, %v2468
        %v2470 = vsub.f32 1.0, %v2469
        %v2471 = vmul.f32 %v2468, %v2470
        %v2472 = vadd.f32 %v2468, %v2471
        %vm2473 = vweird.f32 %v2467
        %vm2474 = vweird.f32 %v2468
        %vm2475 = vmor %vm2473, %vm2474
        %v2476 = vsel %vm2475, %v2468, %v2472
        %v2477 = vand.u32 2147483647, %v2467
        %vm2478 = vcmp.eq.f32.partialorder %v2477, 8.507059e+37
        %v2479 = vand.u32 %v2467, 2147483648
        %v2480 = vor.u32 1.1754944e-38, %v2479
        %v2481 = vsel %vm2478, %v2480, %v2476
        %v2482 = vmul.f32 %v2457, %v2481
        %v2483 = vmin.f32 %v2482, 1.0
        %v2484 = vmax.f32 %v2483, -1.0
        %v2485 = vmul.f32 %v2141, %v2141
        %v2486 = vmin.f32 16.0, %v2485
        %v2487 = vmul.f32 %v2486, 2.1237322e-06
        %v2488 = vadd.f32 %v2487, 0.00028619796
        %v2489 = vmul.f32 %v2486, %v2488
        %v2490 = vadd.f32 %v2489, 0.0036580483
        %v2491 = vmul.f32 %v2486, %v2490
        %v2492 = vadd.f32 %v2491, 0.05243302
        %v2493 = vmul.f32 %v2486, %v2492
        %v2494 = vadd.f32 %v2493, 0.18741608
        %v2495 = vmul.f32 %v2486, %v2494
        %v2496 = vadd.f32 %v2495, 1.1283791
        %v2497 = vmul.f32 %v2141, %v2496
        %v2498 = vmul.f32 %v2486, 3.8918573e-05
        %v2499 = vadd.f32 %v2498, 0.001143296
        %v2500 = vmul.f32 %v2486, %v2499
        %v2501 = vadd.f32 %v2500, 0.014752088
        %v2502 = vmul.f32 %v2486, %v2501
        %v2503 = vadd.f32 %v2502, 0.112945676
        %v2504 = vmul.f32 %v2486, %v2503
        %v2505 = vadd.f32 %v2504, 0.4994258
        %v2506 = vmul.f32 %v2486, %v2505
        %v2507 = vadd.f32 %v2506, 1.0
        %v2508 = vrcp.pop %v2507
        %v2509 = vmul.f32 %v2507, %v2508
        %v2510 = vsub.f32 1.0, %v2509
        %v2511 = vmul.f32 %v2508, %v2510
        %v2512 = vadd.f32 %v2508, %v2511
        %vm2513 = vweird.f32 %v2507
        %vm2514 = vweird.f32 %v2508
        %vm2515 = vmor %vm2513, %vm2514
        %v2516 = vsel %vm2515, %v2508, %v2512
        %v2517 = vand.u32 2147483647, %v2507
        %vm2518 = vcmp.eq.f32.partialorder %v2517, 8.507059e+37
        %v2519 = vand.u32 %v2507, 2147483648
        %v2520 = vor.u32 1.1754944e-38, %v2519
        %v2521 = vsel %vm2518, %v2520, %v2516
        %v2522 = vmul.f32 %v2497, %v2521
        %v2523 = vmin.f32 %v2522, 1.0
        %v2524 = vmax.f32 %v2523, -1.0
        %v2525 = vmul.f32 %v2142, %v2142
        %v2526 = vmin.f32 16.0, %v2525
        %v2527 = vmul.f32 %v2526, 2.1237322e-06
        %v2528 = vadd.f32 %v2527, 0.00028619796
        %v2529 = vmul.f32 %v2526, %v2528
        %v2530 = vadd.f32 %v2529, 0.0036580483
        %v2531 = vmul.f32 %v2526, %v2530
        %v2532 = vadd.f32 %v2531, 0.05243302
        %v2533 = vmul.f32 %v2526, %v2532
        %v2534 = vadd.f32 %v2533, 0.18741608
        %v2535 = vmul.f32 %v2526, %v2534
        %v2536 = vadd.f32 %v2535, 1.1283791
        %v2537 = vmul.f32 %v2142, %v2536
        %v2538 = vmul.f32 %v2526, 3.8918573e-05
        %v2539 = vadd.f32 %v2538, 0.001143296
        %v2540 = vmul.f32 %v2526, %v2539
        %v2541 = vadd.f32 %v2540, 0.014752088
        %v2542 = vmul.f32 %v2526, %v2541
        %v2543 = vadd.f32 %v2542, 0.112945676
        %v2544 = vmul.f32 %v2526, %v2543
        %v2545 = vadd.f32 %v2544, 0.4994258
        %v2546 = vmul.f32 %v2526, %v2545
        %v2547 = vadd.f32 %v2546, 1.0
        %v2548 = vrcp.pop %v2547
        %v2549 = vmul.f32 %v2547, %v2548
        %v2550 = vsub.f32 1.0, %v2549
        %v2551 = vmul.f32 %v2548, %v2550
        %v2552 = vadd.f32 %v2548, %v2551
        %vm2553 = vweird.f32 %v2547
        %vm2554 = vweird.f32 %v2548
        %vm2555 = vmor %vm2553, %vm2554
        %v2556 = vsel %vm2555, %v2548, %v2552
        %v2557 = vand.u32 2147483647, %v2547
        %vm2558 = vcmp.eq.f32.partialorder %v2557, 8.507059e+37
        %v2559 = vand.u32 %v2547, 2147483648
        %v2560 = vor.u32 1.1754944e-38, %v2559
        %v2561 = vsel %vm2558, %v2560, %v2556
        %v2562 = vmul.f32 %v2537, %v2561
        %v2563 = vmin.f32 %v2562, 1.0
        %v2564 = vmax.f32 %v2563, -1.0
        %v2565 = vmul.f32 %v2143, %v2143
        %v2566 = vmin.f32 16.0, %v2565
        %v2567 = vmul.f32 %v2566, 2.1237322e-06
        %v2568 = vadd.f32 %v2567, 0.00028619796
        %v2569 = vmul.f32 %v2566, %v2568
        %v2570 = vadd.f32 %v2569, 0.0036580483
        %v2571 = vmul.f32 %v2566, %v2570
        %v2572 = vadd.f32 %v2571, 0.05243302
        %v2573 = vmul.f32 %v2566, %v2572
        %v2574 = vadd.f32 %v2573, 0.18741608
        %v2575 = vmul.f32 %v2566, %v2574
        %v2576 = vadd.f32 %v2575, 1.1283791
        %v2577 = vmul.f32 %v2143, %v2576
        %v2578 = vmul.f32 %v2566, 3.8918573e-05
        %v2579 = vadd.f32 %v2578, 0.001143296
        %v2580 = vmul.f32 %v2566, %v2579
        %v2581 = vadd.f32 %v2580, 0.014752088
        %v2582 = vmul.f32 %v2566, %v2581
        %v2583 = vadd.f32 %v2582, 0.112945676
        %v2584 = vmul.f32 %v2566, %v2583
        %v2585 = vadd.f32 %v2584, 0.4994258
        %v2586 = vmul.f32 %v2566, %v2585
        %v2587 = vadd.f32 %v2586, 1.0
        %v2588 = vrcp.pop %v2587
        %v2589 = vmul.f32 %v2587, %v2588
        %v2590 = vsub.f32 1.0, %v2589
        %v2591 = vmul.f32 %v2588, %v2590
        %v2592 = vadd.f32 %v2588, %v2591
        %vm2593 = vweird.f32 %v2587
        %vm2594 = vweird.f32 %v2588
        %vm2595 = vmor %vm2593, %vm2594
        %v2596 = vsel %vm2595, %v2588, %v2592
        %v2597 = vand.u32 2147483647, %v2587
        %vm2598 = vcmp.eq.f32.partialorder %v2597, 8.507059e+37
        %v2599 = vand.u32 %v2587, 2147483648
        %v2600 = vor.u32 1.1754944e-38, %v2599
        %v2601 = vsel %vm2598, %v2600, %v2596
        %v2602 = vmul.f32 %v2577, %v2601
        %v2603 = vmin.f32 %v2602, 1.0
        %v2604 = vmax.f32 %v2603, -1.0
        %v2605 = vmul.f32 %v2144, %v2144
        %v2606 = vmin.f32 16.0, %v2605
        %v2607 = vmul.f32 %v2606, 2.1237322e-06
        %v2608 = vadd.f32 %v2607, 0.00028619796
        %v2609 = vmul.f32 %v2606, %v2608
        %v2610 = vadd.f32 %v2609, 0.0036580483
        %v2611 = vmul.f32 %v2606, %v2610
        %v2612 = vadd.f32 %v2611, 0.05243302
        %v2613 = vmul.f32 %v2606, %v2612
        %v2614 = vadd.f32 %v2613, 0.18741608
        %v2615 = vmul.f32 %v2606, %v2614
        %v2616 = vadd.f32 %v2615, 1.1283791
        %v2617 = vmul.f32 %v2144, %v2616
        %v2618 = vmul.f32 %v2606, 3.8918573e-05
        %v2619 = vadd.f32 %v2618, 0.001143296
        %v2620 = vmul.f32 %v2606, %v2619
        %v2621 = vadd.f32 %v2620, 0.014752088
        %v2622 = vmul.f32 %v2606, %v2621
        %v2623 = vadd.f32 %v2622, 0.112945676
        %v2624 = vmul.f32 %v2606, %v2623
        %v2625 = vadd.f32 %v2624, 0.4994258
        %v2626 = vmul.f32 %v2606, %v2625
        %v2627 = vadd.f32 %v2626, 1.0
        %v2628 = vrcp.pop %v2627
        %v2629 = vmul.f32 %v2627, %v2628
        %v2630 = vsub.f32 1.0, %v2629
        %v2631 = vmul.f32 %v2628, %v2630
        %v2632 = vadd.f32 %v2628, %v2631
        %vm2633 = vweird.f32 %v2627
        %vm2634 = vweird.f32 %v2628
        %vm2635 = vmor %vm2633, %vm2634
        %v2636 = vsel %vm2635, %v2628, %v2632
        %v2637 = vand.u32 2147483647, %v2627
        %vm2638 = vcmp.eq.f32.partialorder %v2637, 8.507059e+37
        %v2639 = vand.u32 %v2627, 2147483648
        %v2640 = vor.u32 1.1754944e-38, %v2639
        %v2641 = vsel %vm2638, %v2640, %v2636
        %v2642 = vmul.f32 %v2617, %v2641
        %v2643 = vmin.f32 %v2642, 1.0
        %v2644 = vmax.f32 %v2643, -1.0
        %v2645 = vmul.f32 %v2145, %v2145
        %v2646 = vmin.f32 16.0, %v2645
        %v2647 = vmul.f32 %v2646, 2.1237322e-06
        %v2648 = vadd.f32 %v2647, 0.00028619796
        %v2649 = vmul.f32 %v2646, %v2648
        %v2650 = vadd.f32 %v2649, 0.0036580483
        %v2651 = vmul.f32 %v2646, %v2650
        %v2652 = vadd.f32 %v2651, 0.05243302
        %v2653 = vmul.f32 %v2646, %v2652
        %v2654 = vadd.f32 %v2653, 0.18741608
        %v2655 = vmul.f32 %v2646, %v2654
        %v2656 = vadd.f32 %v2655, 1.1283791
        %v2657 = vmul.f32 %v2145, %v2656
        %v2658 = vmul.f32 %v2646, 3.8918573e-05
        %v2659 = vadd.f32 %v2658, 0.001143296
        %v2660 = vmul.f32 %v2646, %v2659
        %v2661 = vadd.f32 %v2660, 0.014752088
        %v2662 = vmul.f32 %v2646, %v2661
        %v2663 = vadd.f32 %v2662, 0.112945676
        %v2664 = vmul.f32 %v2646, %v2663
        %v2665 = vadd.f32 %v2664, 0.4994258
        %v2666 = vmul.f32 %v2646, %v2665
        %v2667 = vadd.f32 %v2666, 1.0
        %v2668 = vrcp.pop %v2667
        %v2669 = vmul.f32 %v2667, %v2668
        %v2670 = vsub.f32 1.0, %v2669
        %v2671 = vmul.f32 %v2668, %v2670
        %v2672 = vadd.f32 %v2668, %v2671
        %vm2673 = vweird.f32 %v2667
        %vm2674 = vweird.f32 %v2668
        %vm2675 = vmor %vm2673, %vm2674
        %v2676 = vsel %vm2675, %v2668, %v2672
        %v2677 = vand.u32 2147483647, %v2667
        %vm2678 = vcmp.eq.f32.partialorder %v2677, 8.507059e+37
        %v2679 = vand.u32 %v2667, 2147483648
        %v2680 = vor.u32 1.1754944e-38, %v2679
        %v2681 = vsel %vm2678, %v2680, %v2676
        %v2682 = vmul.f32 %v2657, %v2681
        %v2683 = vmin.f32 %v2682, 1.0
        %v2684 = vmax.f32 %v2683, -1.0
        %v2685 = vmul.f32 %v2146, %v2146
        %v2686 = vmin.f32 16.0, %v2685
        %v2687 = vmul.f32 %v2686, 2.1237322e-06
        %v2688 = vadd.f32 %v2687, 0.00028619796
        %v2689 = vmul.f32 %v2686, %v2688
        %v2690 = vadd.f32 %v2689, 0.0036580483
        %v2691 = vmul.f32 %v2686, %v2690
        %v2692 = vadd.f32 %v2691, 0.05243302
        %v2693 = vmul.f32 %v2686, %v2692
        %v2694 = vadd.f32 %v2693, 0.18741608
        %v2695 = vmul.f32 %v2686, %v2694
        %v2696 = vadd.f32 %v2695, 1.1283791
        %v2697 = vmul.f32 %v2146, %v2696
        %v2698 = vmul.f32 %v2686, 3.8918573e-05
        %v2699 = vadd.f32 %v2698, 0.001143296
        %v2700 = vmul.f32 %v2686, %v2699
        %v2701 = vadd.f32 %v2700, 0.014752088
        %v2702 = vmul.f32 %v2686, %v2701
        %v2703 = vadd.f32 %v2702, 0.112945676
        %v2704 = vmul.f32 %v2686, %v2703
        %v2705 = vadd.f32 %v2704, 0.4994258
        %v2706 = vmul.f32 %v2686, %v2705
        %v2707 = vadd.f32 %v2706, 1.0
        %v2708 = vrcp.pop %v2707
        %v2709 = vmul.f32 %v2707, %v2708
        %v2710 = vsub.f32 1.0, %v2709
        %v2711 = vmul.f32 %v2708, %v2710
        %v2712 = vadd.f32 %v2708, %v2711
        %vm2713 = vweird.f32 %v2707
        %vm2714 = vweird.f32 %v2708
        %vm2715 = vmor %vm2713, %vm2714
        %v2716 = vsel %vm2715, %v2708, %v2712
        %v2717 = vand.u32 2147483647, %v2707
        %vm2718 = vcmp.eq.f32.partialorder %v2717, 8.507059e+37
        %v2719 = vand.u32 %v2707, 2147483648
        %v2720 = vor.u32 1.1754944e-38, %v2719
        %v2721 = vsel %vm2718, %v2720, %v2716
        %v2722 = vmul.f32 %v2697, %v2721
        %v2723 = vmin.f32 %v2722, 1.0
        %v2724 = vmax.f32 %v2723, -1.0
        %v2725 = vmul.f32 %v2147, %v2147
        %v2726 = vmin.f32 16.0, %v2725
        %v2727 = vmul.f32 %v2726, 2.1237322e-06
        %v2728 = vadd.f32 %v2727, 0.00028619796
        %v2729 = vmul.f32 %v2726, %v2728
        %v2730 = vadd.f32 %v2729, 0.0036580483
        %v2731 = vmul.f32 %v2726, %v2730
        %v2732 = vadd.f32 %v2731, 0.05243302
        %v2733 = vmul.f32 %v2726, %v2732
        %v2734 = vadd.f32 %v2733, 0.18741608
        %v2735 = vmul.f32 %v2726, %v2734
        %v2736 = vadd.f32 %v2735, 1.1283791
        %v2737 = vmul.f32 %v2147, %v2736
        %v2738 = vmul.f32 %v2726, 3.8918573e-05
        %v2739 = vadd.f32 %v2738, 0.001143296
        %v2740 = vmul.f32 %v2726, %v2739
        %v2741 = vadd.f32 %v2740, 0.014752088
        %v2742 = vmul.f32 %v2726, %v2741
        %v2743 = vadd.f32 %v2742, 0.112945676
        %v2744 = vmul.f32 %v2726, %v2743
        %v2745 = vadd.f32 %v2744, 0.4994258
        %v2746 = vmul.f32 %v2726, %v2745
        %v2747 = vadd.f32 %v2746, 1.0
        %v2748 = vrcp.pop %v2747
        %v2749 = vmul.f32 %v2747, %v2748
        %v2750 = vsub.f32 1.0, %v2749
        %v2751 = vmul.f32 %v2748, %v2750
        %v2752 = vadd.f32 %v2748, %v2751
        %vm2753 = vweird.f32 %v2747
        %vm2754 = vweird.f32 %v2748
        %vm2755 = vmor %vm2753, %vm2754
        %v2756 = vsel %vm2755, %v2748, %v2752
        %v2757 = vand.u32 2147483647, %v2747
        %vm2758 = vcmp.eq.f32.partialorder %v2757, 8.507059e+37
        %v2759 = vand.u32 %v2747, 2147483648
        %v2760 = vor.u32 1.1754944e-38, %v2759
        %v2761 = vsel %vm2758, %v2760, %v2756
        %v2762 = vmul.f32 %v2737, %v2761
        %v2763 = vmin.f32 %v2762, 1.0
        %v2764 = vmax.f32 %v2763, -1.0
        %v2765 = vmul.f32 %v2148, %v2148
        %v2766 = vmin.f32 16.0, %v2765
        %v2767 = vmul.f32 %v2766, 2.1237322e-06
        %v2768 = vadd.f32 %v2767, 0.00028619796
        %v2769 = vmul.f32 %v2766, %v2768
        %v2770 = vadd.f32 %v2769, 0.0036580483
        %v2771 = vmul.f32 %v2766, %v2770
        %v2772 = vadd.f32 %v2771, 0.05243302
        %v2773 = vmul.f32 %v2766, %v2772
        %v2774 = vadd.f32 %v2773, 0.18741608
        %v2775 = vmul.f32 %v2766, %v2774
        %v2776 = vadd.f32 %v2775, 1.1283791
        %v2777 = vmul.f32 %v2148, %v2776
        %v2778 = vmul.f32 %v2766, 3.8918573e-05
        %v2779 = vadd.f32 %v2778, 0.001143296
        %v2780 = vmul.f32 %v2766, %v2779
        %v2781 = vadd.f32 %v2780, 0.014752088
        %v2782 = vmul.f32 %v2766, %v2781
        %v2783 = vadd.f32 %v2782, 0.112945676
        %v2784 = vmul.f32 %v2766, %v2783
        %v2785 = vadd.f32 %v2784, 0.4994258
        %v2786 = vmul.f32 %v2766, %v2785
        %v2787 = vadd.f32 %v2786, 1.0
        %v2788 = vrcp.pop %v2787
        %v2789 = vmul.f32 %v2787, %v2788
        %v2790 = vsub.f32 1.0, %v2789
        %v2791 = vmul.f32 %v2788, %v2790
        %v2792 = vadd.f32 %v2788, %v2791
        %vm2793 = vweird.f32 %v2787
        %vm2794 = vweird.f32 %v2788
        %vm2795 = vmor %vm2793, %vm2794
        %v2796 = vsel %vm2795, %v2788, %v2792
        %v2797 = vand.u32 2147483647, %v2787
        %vm2798 = vcmp.eq.f32.partialorder %v2797, 8.507059e+37
        %v2799 = vand.u32 %v2787, 2147483648
        %v2800 = vor.u32 1.1754944e-38, %v2799
        %v2801 = vsel %vm2798, %v2800, %v2796
        %v2802 = vmul.f32 %v2777, %v2801
        %v2803 = vmin.f32 %v2802, 1.0
        %v2804 = vmax.f32 %v2803, -1.0
        %v2805 = vmul.f32 %v2149, %v2149
        %v2806 = vmin.f32 16.0, %v2805
        %v2807 = vmul.f32 %v2806, 2.1237322e-06
        %v2808 = vadd.f32 %v2807, 0.00028619796
        %v2809 = vmul.f32 %v2806, %v2808
        %v2810 = vadd.f32 %v2809, 0.0036580483
        %v2811 = vmul.f32 %v2806, %v2810
        %v2812 = vadd.f32 %v2811, 0.05243302
        %v2813 = vmul.f32 %v2806, %v2812
        %v2814 = vadd.f32 %v2813, 0.18741608
        %v2815 = vmul.f32 %v2806, %v2814
        %v2816 = vadd.f32 %v2815, 1.1283791
        %v2817 = vmul.f32 %v2149, %v2816
        %v2818 = vmul.f32 %v2806, 3.8918573e-05
        %v2819 = vadd.f32 %v2818, 0.001143296
        %v2820 = vmul.f32 %v2806, %v2819
        %v2821 = vadd.f32 %v2820, 0.014752088
        %v2822 = vmul.f32 %v2806, %v2821
        %v2823 = vadd.f32 %v2822, 0.112945676
        %v2824 = vmul.f32 %v2806, %v2823
        %v2825 = vadd.f32 %v2824, 0.4994258
        %v2826 = vmul.f32 %v2806, %v2825
        %v2827 = vadd.f32 %v2826, 1.0
        %v2828 = vrcp.pop %v2827
        %v2829 = vmul.f32 %v2827, %v2828
        %v2830 = vsub.f32 1.0, %v2829
        %v2831 = vmul.f32 %v2828, %v2830
        %v2832 = vadd.f32 %v2828, %v2831
        %vm2833 = vweird.f32 %v2827
        %vm2834 = vweird.f32 %v2828
        %vm2835 = vmor %vm2833, %vm2834
        %v2836 = vsel %vm2835, %v2828, %v2832
        %v2837 = vand.u32 2147483647, %v2827
        %vm2838 = vcmp.eq.f32.partialorder %v2837, 8.507059e+37
        %v2839 = vand.u32 %v2827, 2147483648
        %v2840 = vor.u32 1.1754944e-38, %v2839
        %v2841 = vsel %vm2838, %v2840, %v2836
        %v2842 = vmul.f32 %v2817, %v2841
        %v2843 = vmin.f32 %v2842, 1.0
        %v2844 = vmax.f32 %v2843, -1.0
        %v2845 = vmul.f32 %v2150, %v2150
        %v2846 = vmin.f32 16.0, %v2845
        %v2847 = vmul.f32 %v2846, 2.1237322e-06
        %v2848 = vadd.f32 %v2847, 0.00028619796
        %v2849 = vmul.f32 %v2846, %v2848
        %v2850 = vadd.f32 %v2849, 0.0036580483
        %v2851 = vmul.f32 %v2846, %v2850
        %v2852 = vadd.f32 %v2851, 0.05243302
        %v2853 = vmul.f32 %v2846, %v2852
        %v2854 = vadd.f32 %v2853, 0.18741608
        %v2855 = vmul.f32 %v2846, %v2854
        %v2856 = vadd.f32 %v2855, 1.1283791
        %v2857 = vmul.f32 %v2150, %v2856
        %v2858 = vmul.f32 %v2846, 3.8918573e-05
        %v2859 = vadd.f32 %v2858, 0.001143296
        %v2860 = vmul.f32 %v2846, %v2859
        %v2861 = vadd.f32 %v2860, 0.014752088
        %v2862 = vmul.f32 %v2846, %v2861
        %v2863 = vadd.f32 %v2862, 0.112945676
        %v2864 = vmul.f32 %v2846, %v2863
        %v2865 = vadd.f32 %v2864, 0.4994258
        %v2866 = vmul.f32 %v2846, %v2865
        %v2867 = vadd.f32 %v2866, 1.0
        %v2868 = vrcp.pop %v2867
        %v2869 = vmul.f32 %v2867, %v2868
        %v2870 = vsub.f32 1.0, %v2869
        %v2871 = vmul.f32 %v2868, %v2870
        %v2872 = vadd.f32 %v2868, %v2871
        %vm2873 = vweird.f32 %v2867
        %vm2874 = vweird.f32 %v2868
        %vm2875 = vmor %vm2873, %vm2874
        %v2876 = vsel %vm2875, %v2868, %v2872
        %v2877 = vand.u32 2147483647, %v2867
        %vm2878 = vcmp.eq.f32.partialorder %v2877, 8.507059e+37
        %v2879 = vand.u32 %v2867, 2147483648
        %v2880 = vor.u32 1.1754944e-38, %v2879
        %v2881 = vsel %vm2878, %v2880, %v2876
        %v2882 = vmul.f32 %v2857, %v2881
        %v2883 = vmin.f32 %v2882, 1.0
        %v2884 = vmax.f32 %v2883, -1.0
        %v2885 = vmul.f32 %v2151, %v2151
        %v2886 = vmin.f32 16.0, %v2885
        %v2887 = vmul.f32 %v2886, 2.1237322e-06
        %v2888 = vadd.f32 %v2887, 0.00028619796
        %v2889 = vmul.f32 %v2886, %v2888
        %v2890 = vadd.f32 %v2889, 0.0036580483
        %v2891 = vmul.f32 %v2886, %v2890
        %v2892 = vadd.f32 %v2891, 0.05243302
        %v2893 = vmul.f32 %v2886, %v2892
        %v2894 = vadd.f32 %v2893, 0.18741608
        %v2895 = vmul.f32 %v2886, %v2894
        %v2896 = vadd.f32 %v2895, 1.1283791
        %v2897 = vmul.f32 %v2151, %v2896
        %v2898 = vmul.f32 %v2886, 3.8918573e-05
        %v2899 = vadd.f32 %v2898, 0.001143296
        %v2900 = vmul.f32 %v2886, %v2899
        %v2901 = vadd.f32 %v2900, 0.014752088
        %v2902 = vmul.f32 %v2886, %v2901
        %v2903 = vadd.f32 %v2902, 0.112945676
        %v2904 = vmul.f32 %v2886, %v2903
        %v2905 = vadd.f32 %v2904, 0.4994258
        %v2906 = vmul.f32 %v2886, %v2905
        %v2907 = vadd.f32 %v2906, 1.0
        %v2908 = vrcp.pop %v2907
        %v2909 = vmul.f32 %v2907, %v2908
        %v2910 = vsub.f32 1.0, %v2909
        %v2911 = vmul.f32 %v2908, %v2910
        %v2912 = vadd.f32 %v2908, %v2911
        %vm2913 = vweird.f32 %v2907
        %vm2914 = vweird.f32 %v2908
        %vm2915 = vmor %vm2913, %vm2914
        %v2916 = vsel %vm2915, %v2908, %v2912
        %v2917 = vand.u32 2147483647, %v2907
        %vm2918 = vcmp.eq.f32.partialorder %v2917, 8.507059e+37
        %v2919 = vand.u32 %v2907, 2147483648
        %v2920 = vor.u32 1.1754944e-38, %v2919
        %v2921 = vsel %vm2918, %v2920, %v2916
        %v2922 = vmul.f32 %v2897, %v2921
        %v2923 = vmin.f32 %v2922, 1.0
        %v2924 = vmax.f32 %v2923, -1.0
        %v2925 = vmul.f32 %v2152, %v2152
        %v2926 = vmin.f32 16.0, %v2925
        %v2927 = vmul.f32 %v2926, 2.1237322e-06
        %v2928 = vadd.f32 %v2927, 0.00028619796
        %v2929 = vmul.f32 %v2926, %v2928
        %v2930 = vadd.f32 %v2929, 0.0036580483
        %v2931 = vmul.f32 %v2926, %v2930
        %v2932 = vadd.f32 %v2931, 0.05243302
        %v2933 = vmul.f32 %v2926, %v2932
        %v2934 = vadd.f32 %v2933, 0.18741608
        %v2935 = vmul.f32 %v2926, %v2934
        %v2936 = vadd.f32 %v2935, 1.1283791
        %v2937 = vmul.f32 %v2152, %v2936
        %v2938 = vmul.f32 %v2926, 3.8918573e-05
        %v2939 = vadd.f32 %v2938, 0.001143296
        %v2940 = vmul.f32 %v2926, %v2939
        %v2941 = vadd.f32 %v2940, 0.014752088
        %v2942 = vmul.f32 %v2926, %v2941
        %v2943 = vadd.f32 %v2942, 0.112945676
        %v2944 = vmul.f32 %v2926, %v2943
        %v2945 = vadd.f32 %v2944, 0.4994258
        %v2946 = vmul.f32 %v2926, %v2945
        %v2947 = vadd.f32 %v2946, 1.0
        %v2948 = vrcp.pop %v2947
        %v2949 = vmul.f32 %v2947, %v2948
        %v2950 = vsub.f32 1.0, %v2949
        %v2951 = vmul.f32 %v2948, %v2950
        %v2952 = vadd.f32 %v2948, %v2951
        %vm2953 = vweird.f32 %v2947
        %vm2954 = vweird.f32 %v2948
        %vm2955 = vmor %vm2953, %vm2954
        %v2956 = vsel %vm2955, %v2948, %v2952
        %v2957 = vand.u32 2147483647, %v2947
        %vm2958 = vcmp.eq.f32.partialorder %v2957, 8.507059e+37
        %v2959 = vand.u32 %v2947, 2147483648
        %v2960 = vor.u32 1.1754944e-38, %v2959
        %v2961 = vsel %vm2958, %v2960, %v2956
        %v2962 = vmul.f32 %v2937, %v2961
        %v2963 = vmin.f32 %v2962, 1.0
        %v2964 = vmax.f32 %v2963, -1.0
        %v2965 = vmul.f32 %v2153, %v2153
        %v2966 = vmin.f32 16.0, %v2965
        %v2967 = vmul.f32 %v2966, 2.1237322e-06
        %v2968 = vadd.f32 %v2967, 0.00028619796
        %v2969 = vmul.f32 %v2966, %v2968
        %v2970 = vadd.f32 %v2969, 0.0036580483
        %v2971 = vmul.f32 %v2966, %v2970
        %v2972 = vadd.f32 %v2971, 0.05243302
        %v2973 = vmul.f32 %v2966, %v2972
        %v2974 = vadd.f32 %v2973, 0.18741608
        %v2975 = vmul.f32 %v2966, %v2974
        %v2976 = vadd.f32 %v2975, 1.1283791
        %v2977 = vmul.f32 %v2153, %v2976
        %v2978 = vmul.f32 %v2966, 3.8918573e-05
        %v2979 = vadd.f32 %v2978, 0.001143296
        %v2980 = vmul.f32 %v2966, %v2979
        %v2981 = vadd.f32 %v2980, 0.014752088
        %v2982 = vmul.f32 %v2966, %v2981
        %v2983 = vadd.f32 %v2982, 0.112945676
        %v2984 = vmul.f32 %v2966, %v2983
        %v2985 = vadd.f32 %v2984, 0.4994258
        %v2986 = vmul.f32 %v2966, %v2985
        %v2987 = vadd.f32 %v2986, 1.0
        %v2988 = vrcp.pop %v2987
        %v2989 = vmul.f32 %v2987, %v2988
        %v2990 = vsub.f32 1.0, %v2989
        %v2991 = vmul.f32 %v2988, %v2990
        %v2992 = vadd.f32 %v2988, %v2991
        %vm2993 = vweird.f32 %v2987
        %vm2994 = vweird.f32 %v2988
        %vm2995 = vmor %vm2993, %vm2994
        %v2996 = vsel %vm2995, %v2988, %v2992
        %v2997 = vand.u32 2147483647, %v2987
        %vm2998 = vcmp.eq.f32.partialorder %v2997, 8.507059e+37
        %v2999 = vand.u32 %v2987, 2147483648
        %v3000 = vor.u32 1.1754944e-38, %v2999
        %v3001 = vsel %vm2998, %v3000, %v2996
        %v3002 = vmul.f32 %v2977, %v3001
        %v3003 = vmin.f32 %v3002, 1.0
        %v3004 = vmax.f32 %v3003, -1.0
        %v3005 = vmul.f32 %v2154, %v2154
        %v3006 = vmin.f32 16.0, %v3005
        %v3007 = vmul.f32 %v3006, 2.1237322e-06
        %v3008 = vadd.f32 %v3007, 0.00028619796
        %v3009 = vmul.f32 %v3006, %v3008
        %v3010 = vadd.f32 %v3009, 0.0036580483
        %v3011 = vmul.f32 %v3006, %v3010
        %v3012 = vadd.f32 %v3011, 0.05243302
        %v3013 = vmul.f32 %v3006, %v3012
        %v3014 = vadd.f32 %v3013, 0.18741608
        %v3015 = vmul.f32 %v3006, %v3014
        %v3016 = vadd.f32 %v3015, 1.1283791
        %v3017 = vmul.f32 %v2154, %v3016
        %v3018 = vmul.f32 %v3006, 3.8918573e-05
        %v3019 = vadd.f32 %v3018, 0.001143296
        %v3020 = vmul.f32 %v3006, %v3019
        %v3021 = vadd.f32 %v3020, 0.014752088
        %v3022 = vmul.f32 %v3006, %v3021
        %v3023 = vadd.f32 %v3022, 0.112945676
        %v3024 = vmul.f32 %v3006, %v3023
        %v3025 = vadd.f32 %v3024, 0.4994258
        %v3026 = vmul.f32 %v3006, %v3025
        %v3027 = vadd.f32 %v3026, 1.0
        %v3028 = vrcp.pop %v3027
        %v3029 = vmul.f32 %v3027, %v3028
        %v3030 = vsub.f32 1.0, %v3029
        %v3031 = vmul.f32 %v3028, %v3030
        %v3032 = vadd.f32 %v3028, %v3031
        %vm3033 = vweird.f32 %v3027
        %vm3034 = vweird.f32 %v3028
        %vm3035 = vmor %vm3033, %vm3034
        %v3036 = vsel %vm3035, %v3028, %v3032
        %v3037 = vand.u32 2147483647, %v3027
        %vm3038 = vcmp.eq.f32.partialorder %v3037, 8.507059e+37
        %v3039 = vand.u32 %v3027, 2147483648
        %v3040 = vor.u32 1.1754944e-38, %v3039
        %v3041 = vsel %vm3038, %v3040, %v3036
        %v3042 = vmul.f32 %v3017, %v3041
        %v3043 = vmin.f32 %v3042, 1.0
        %v3044 = vmax.f32 %v3043, -1.0
        %v3045 = vmul.f32 %v2155, %v2155
        %v3046 = vmin.f32 16.0, %v3045
        %v3047 = vmul.f32 %v3046, 2.1237322e-06
        %v3048 = vadd.f32 %v3047, 0.00028619796
        %v3049 = vmul.f32 %v3046, %v3048
        %v3050 = vadd.f32 %v3049, 0.0036580483
        %v3051 = vmul.f32 %v3046, %v3050
        %v3052 = vadd.f32 %v3051, 0.05243302
        %v3053 = vmul.f32 %v3046, %v3052
        %v3054 = vadd.f32 %v3053, 0.18741608
        %v3055 = vmul.f32 %v3046, %v3054
        %v3056 = vadd.f32 %v3055, 1.1283791
        %v3057 = vmul.f32 %v2155, %v3056
        %v3058 = vmul.f32 %v3046, 3.8918573e-05
        %v3059 = vadd.f32 %v3058, 0.001143296
        %v3060 = vmul.f32 %v3046, %v3059
        %v3061 = vadd.f32 %v3060, 0.014752088
        %v3062 = vmul.f32 %v3046, %v3061
        %v3063 = vadd.f32 %v3062, 0.112945676
        %v3064 = vmul.f32 %v3046, %v3063
        %v3065 = vadd.f32 %v3064, 0.4994258
        %v3066 = vmul.f32 %v3046, %v3065
        %v3067 = vadd.f32 %v3066, 1.0
        %v3068 = vrcp.pop %v3067
        %v3069 = vmul.f32 %v3067, %v3068
        %v3070 = vsub.f32 1.0, %v3069
        %v3071 = vmul.f32 %v3068, %v3070
        %v3072 = vadd.f32 %v3068, %v3071
        %vm3073 = vweird.f32 %v3067
        %vm3074 = vweird.f32 %v3068
        %vm3075 = vmor %vm3073, %vm3074
        %v3076 = vsel %vm3075, %v3068, %v3072
        %v3077 = vand.u32 2147483647, %v3067
        %vm3078 = vcmp.eq.f32.partialorder %v3077, 8.507059e+37
        %v3079 = vand.u32 %v3067, 2147483648
        %v3080 = vor.u32 1.1754944e-38, %v3079
        %v3081 = vsel %vm3078, %v3080, %v3076
        %v3082 = vmul.f32 %v3057, %v3081
        %v3083 = vmin.f32 %v3082, 1.0
        %v3084 = vmax.f32 %v3083, -1.0
        %v3085 = vmul.f32 %v2156, %v2156
        %v3086 = vmin.f32 16.0, %v3085
        %v3087 = vmul.f32 %v3086, 2.1237322e-06
        %v3088 = vadd.f32 %v3087, 0.00028619796
        %v3089 = vmul.f32 %v3086, %v3088
        %v3090 = vadd.f32 %v3089, 0.0036580483
        %v3091 = vmul.f32 %v3086, %v3090
        %v3092 = vadd.f32 %v3091, 0.05243302
        %v3093 = vmul.f32 %v3086, %v3092
        %v3094 = vadd.f32 %v3093, 0.18741608
        %v3095 = vmul.f32 %v3086, %v3094
        %v3096 = vadd.f32 %v3095, 1.1283791
        %v3097 = vmul.f32 %v2156, %v3096
        %v3098 = vmul.f32 %v3086, 3.8918573e-05
        %v3099 = vadd.f32 %v3098, 0.001143296
        %v3100 = vmul.f32 %v3086, %v3099
        %v3101 = vadd.f32 %v3100, 0.014752088
        %v3102 = vmul.f32 %v3086, %v3101
        %v3103 = vadd.f32 %v3102, 0.112945676
        %v3104 = vmul.f32 %v3086, %v3103
        %v3105 = vadd.f32 %v3104, 0.4994258
        %v3106 = vmul.f32 %v3086, %v3105
        %v3107 = vadd.f32 %v3106, 1.0
        %v3108 = vrcp.pop %v3107
        %v3109 = vmul.f32 %v3107, %v3108
        %v3110 = vsub.f32 1.0, %v3109
        %v3111 = vmul.f32 %v3108, %v3110
        %v3112 = vadd.f32 %v3108, %v3111
        %vm3113 = vweird.f32 %v3107
        %vm3114 = vweird.f32 %v3108
        %vm3115 = vmor %vm3113, %vm3114
        %v3116 = vsel %vm3115, %v3108, %v3112
        %v3117 = vand.u32 2147483647, %v3107
        %vm3118 = vcmp.eq.f32.partialorder %v3117, 8.507059e+37
        %v3119 = vand.u32 %v3107, 2147483648
        %v3120 = vor.u32 1.1754944e-38, %v3119
        %v3121 = vsel %vm3118, %v3120, %v3116
        %v3122 = vmul.f32 %v3097, %v3121
        %v3123 = vmin.f32 %v3122, 1.0
        %v3124 = vmax.f32 %v3123, -1.0
        %v3125 = vmul.f32 %v2157, %v2157
        %v3126 = vmin.f32 16.0, %v3125
        %v3127 = vmul.f32 %v3126, 2.1237322e-06
        %v3128 = vadd.f32 %v3127, 0.00028619796
        %v3129 = vmul.f32 %v3126, %v3128
        %v3130 = vadd.f32 %v3129, 0.0036580483
        %v3131 = vmul.f32 %v3126, %v3130
        %v3132 = vadd.f32 %v3131, 0.05243302
        %v3133 = vmul.f32 %v3126, %v3132
        %v3134 = vadd.f32 %v3133, 0.18741608
        %v3135 = vmul.f32 %v3126, %v3134
        %v3136 = vadd.f32 %v3135, 1.1283791
        %v3137 = vmul.f32 %v2157, %v3136
        %v3138 = vmul.f32 %v3126, 3.8918573e-05
        %v3139 = vadd.f32 %v3138, 0.001143296
        %v3140 = vmul.f32 %v3126, %v3139
        %v3141 = vadd.f32 %v3140, 0.014752088
        %v3142 = vmul.f32 %v3126, %v3141
        %v3143 = vadd.f32 %v3142, 0.112945676
        %v3144 = vmul.f32 %v3126, %v3143
        %v3145 = vadd.f32 %v3144, 0.4994258
        %v3146 = vmul.f32 %v3126, %v3145
        %v3147 = vadd.f32 %v3146, 1.0
        %v3148 = vrcp.pop %v3147
        %v3149 = vmul.f32 %v3147, %v3148
        %v3150 = vsub.f32 1.0, %v3149
        %v3151 = vmul.f32 %v3148, %v3150
        %v3152 = vadd.f32 %v3148, %v3151
        %vm3153 = vweird.f32 %v3147
        %vm3154 = vweird.f32 %v3148
        %vm3155 = vmor %vm3153, %vm3154
        %v3156 = vsel %vm3155, %v3148, %v3152
        %v3157 = vand.u32 2147483647, %v3147
        %vm3158 = vcmp.eq.f32.partialorder %v3157, 8.507059e+37
        %v3159 = vand.u32 %v3147, 2147483648
        %v3160 = vor.u32 1.1754944e-38, %v3159
        %v3161 = vsel %vm3158, %v3160, %v3156
        %v3162 = vmul.f32 %v3137, %v3161
        %v3163 = vmin.f32 %v3162, 1.0
        %v3164 = vmax.f32 %v3163, -1.0
        %v3165 = vmul.f32 %v2158, %v2158
        %v3166 = vmin.f32 16.0, %v3165
        %v3167 = vmul.f32 %v3166, 2.1237322e-06
        %v3168 = vadd.f32 %v3167, 0.00028619796
        %v3169 = vmul.f32 %v3166, %v3168
        %v3170 = vadd.f32 %v3169, 0.0036580483
        %v3171 = vmul.f32 %v3166, %v3170
        %v3172 = vadd.f32 %v3171, 0.05243302
        %v3173 = vmul.f32 %v3166, %v3172
        %v3174 = vadd.f32 %v3173, 0.18741608
        %v3175 = vmul.f32 %v3166, %v3174
        %v3176 = vadd.f32 %v3175, 1.1283791
        %v3177 = vmul.f32 %v2158, %v3176
        %v3178 = vmul.f32 %v3166, 3.8918573e-05
        %v3179 = vadd.f32 %v3178, 0.001143296
        %v3180 = vmul.f32 %v3166, %v3179
        %v3181 = vadd.f32 %v3180, 0.014752088
        %v3182 = vmul.f32 %v3166, %v3181
        %v3183 = vadd.f32 %v3182, 0.112945676
        %v3184 = vmul.f32 %v3166, %v3183
        %v3185 = vadd.f32 %v3184, 0.4994258
        %v3186 = vmul.f32 %v3166, %v3185
        %v3187 = vadd.f32 %v3186, 1.0
        %v3188 = vrcp.pop %v3187
        %v3189 = vmul.f32 %v3187, %v3188
        %v3190 = vsub.f32 1.0, %v3189
        %v3191 = vmul.f32 %v3188, %v3190
        %v3192 = vadd.f32 %v3188, %v3191
        %vm3193 = vweird.f32 %v3187
        %vm3194 = vweird.f32 %v3188
        %vm3195 = vmor %vm3193, %vm3194
        %v3196 = vsel %vm3195, %v3188, %v3192
        %v3197 = vand.u32 2147483647, %v3187
        %vm3198 = vcmp.eq.f32.partialorder %v3197, 8.507059e+37
        %v3199 = vand.u32 %v3187, 2147483648
        %v3200 = vor.u32 1.1754944e-38, %v3199
        %v3201 = vsel %vm3198, %v3200, %v3196
        %v3202 = vmul.f32 %v3177, %v3201
        %v3203 = vmin.f32 %v3202, 1.0
        %v3204 = vmax.f32 %v3203, -1.0
        %v3205 = vmul.f32 %v2159, %v2159
        %v3206 = vmin.f32 16.0, %v3205
        %v3207 = vmul.f32 %v3206, 2.1237322e-06
        %v3208 = vadd.f32 %v3207, 0.00028619796
        %v3209 = vmul.f32 %v3206, %v3208
        %v3210 = vadd.f32 %v3209, 0.0036580483
        %v3211 = vmul.f32 %v3206, %v3210
        %v3212 = vadd.f32 %v3211, 0.05243302
        %v3213 = vmul.f32 %v3206, %v3212
        %v3214 = vadd.f32 %v3213, 0.18741608
        %v3215 = vmul.f32 %v3206, %v3214
        %v3216 = vadd.f32 %v3215, 1.1283791
        %v3217 = vmul.f32 %v2159, %v3216
        %v3218 = vmul.f32 %v3206, 3.8918573e-05
        %v3219 = vadd.f32 %v3218, 0.001143296
        %v3220 = vmul.f32 %v3206, %v3219
        %v3221 = vadd.f32 %v3220, 0.014752088
        %v3222 = vmul.f32 %v3206, %v3221
        %v3223 = vadd.f32 %v3222, 0.112945676
        %v3224 = vmul.f32 %v3206, %v3223
        %v3225 = vadd.f32 %v3224, 0.4994258
        %v3226 = vmul.f32 %v3206, %v3225
        %v3227 = vadd.f32 %v3226, 1.0
        %v3228 = vrcp.pop %v3227
        %v3229 = vmul.f32 %v3227, %v3228
        %v3230 = vsub.f32 1.0, %v3229
        %v3231 = vmul.f32 %v3228, %v3230
        %v3232 = vadd.f32 %v3228, %v3231
        %vm3233 = vweird.f32 %v3227
        %vm3234 = vweird.f32 %v3228
        %vm3235 = vmor %vm3233, %vm3234
        %v3236 = vsel %vm3235, %v3228, %v3232
        %v3237 = vand.u32 2147483647, %v3227
        %vm3238 = vcmp.eq.f32.partialorder %v3237, 8.507059e+37
        %v3239 = vand.u32 %v3227, 2147483648
        %v3240 = vor.u32 1.1754944e-38, %v3239
        %v3241 = vsel %vm3238, %v3240, %v3236
        %v3242 = vmul.f32 %v3217, %v3241
        %v3243 = vmin.f32 %v3242, 1.0
        %v3244 = vmax.f32 %v3243, -1.0
        %v3245 = vmul.f32 %v2160, %v2160
        %v3246 = vmin.f32 16.0, %v3245
        %v3247 = vmul.f32 %v3246, 2.1237322e-06
        %v3248 = vadd.f32 %v3247, 0.00028619796
        %v3249 = vmul.f32 %v3246, %v3248
        %v3250 = vadd.f32 %v3249, 0.0036580483
        %v3251 = vmul.f32 %v3246, %v3250
        %v3252 = vadd.f32 %v3251, 0.05243302
        %v3253 = vmul.f32 %v3246, %v3252
        %v3254 = vadd.f32 %v3253, 0.18741608
        %v3255 = vmul.f32 %v3246, %v3254
        %v3256 = vadd.f32 %v3255, 1.1283791
        %v3257 = vmul.f32 %v2160, %v3256
        %v3258 = vmul.f32 %v3246, 3.8918573e-05
        %v3259 = vadd.f32 %v3258, 0.001143296
        %v3260 = vmul.f32 %v3246, %v3259
        %v3261 = vadd.f32 %v3260, 0.014752088
        %v3262 = vmul.f32 %v3246, %v3261
        %v3263 = vadd.f32 %v3262, 0.112945676
        %v3264 = vmul.f32 %v3246, %v3263
        %v3265 = vadd.f32 %v3264, 0.4994258
        %v3266 = vmul.f32 %v3246, %v3265
        %v3267 = vadd.f32 %v3266, 1.0
        %v3268 = vrcp.pop %v3267
        %v3269 = vmul.f32 %v3267, %v3268
        %v3270 = vsub.f32 1.0, %v3269
        %v3271 = vmul.f32 %v3268, %v3270
        %v3272 = vadd.f32 %v3268, %v3271
        %vm3273 = vweird.f32 %v3267
        %vm3274 = vweird.f32 %v3268
        %vm3275 = vmor %vm3273, %vm3274
        %v3276 = vsel %vm3275, %v3268, %v3272
        %v3277 = vand.u32 2147483647, %v3267
        %vm3278 = vcmp.eq.f32.partialorder %v3277, 8.507059e+37
        %v3279 = vand.u32 %v3267, 2147483648
        %v3280 = vor.u32 1.1754944e-38, %v3279
        %v3281 = vsel %vm3278, %v3280, %v3276
        %v3282 = vmul.f32 %v3257, %v3281
        %v3283 = vmin.f32 %v3282, 1.0
        %v3284 = vmax.f32 %v3283, -1.0
        %v3285 = vmul.f32 %v2161, %v2161
        %v3286 = vmin.f32 16.0, %v3285
        %v3287 = vmul.f32 %v3286, 2.1237322e-06
        %v3288 = vadd.f32 %v3287, 0.00028619796
        %v3289 = vmul.f32 %v3286, %v3288
        %v3290 = vadd.f32 %v3289, 0.0036580483
        %v3291 = vmul.f32 %v3286, %v3290
        %v3292 = vadd.f32 %v3291, 0.05243302
        %v3293 = vmul.f32 %v3286, %v3292
        %v3294 = vadd.f32 %v3293, 0.18741608
        %v3295 = vmul.f32 %v3286, %v3294
        %v3296 = vadd.f32 %v3295, 1.1283791
        %v3297 = vmul.f32 %v2161, %v3296
        %v3298 = vmul.f32 %v3286, 3.8918573e-05
        %v3299 = vadd.f32 %v3298, 0.001143296
        %v3300 = vmul.f32 %v3286, %v3299
        %v3301 = vadd.f32 %v3300, 0.014752088
        %v3302 = vmul.f32 %v3286, %v3301
        %v3303 = vadd.f32 %v3302, 0.112945676
        %v3304 = vmul.f32 %v3286, %v3303
        %v3305 = vadd.f32 %v3304, 0.4994258
        %v3306 = vmul.f32 %v3286, %v3305
        %v3307 = vadd.f32 %v3306, 1.0
        %v3308 = vrcp.pop %v3307
        %v3309 = vmul.f32 %v3307, %v3308
        %v3310 = vsub.f32 1.0, %v3309
        %v3311 = vmul.f32 %v3308, %v3310
        %v3312 = vadd.f32 %v3308, %v3311
        %vm3313 = vweird.f32 %v3307
        %vm3314 = vweird.f32 %v3308
        %vm3315 = vmor %vm3313, %vm3314
        %v3316 = vsel %vm3315, %v3308, %v3312
        %v3317 = vand.u32 2147483647, %v3307
        %vm3318 = vcmp.eq.f32.partialorder %v3317, 8.507059e+37
        %v3319 = vand.u32 %v3307, 2147483648
        %v3320 = vor.u32 1.1754944e-38, %v3319
        %v3321 = vsel %vm3318, %v3320, %v3316
        %v3322 = vmul.f32 %v3297, %v3321
        %v3323 = vmin.f32 %v3322, 1.0
        %v3324 = vmax.f32 %v3323, -1.0
        %v3325 = vmul.f32 %v2162, %v2162
        %v3326 = vmin.f32 16.0, %v3325
        %v3327 = vmul.f32 %v3326, 2.1237322e-06
        %v3328 = vadd.f32 %v3327, 0.00028619796
        %v3329 = vmul.f32 %v3326, %v3328
        %v3330 = vadd.f32 %v3329, 0.0036580483
        %v3331 = vmul.f32 %v3326, %v3330
        %v3332 = vadd.f32 %v3331, 0.05243302
        %v3333 = vmul.f32 %v3326, %v3332
        %v3334 = vadd.f32 %v3333, 0.18741608
        %v3335 = vmul.f32 %v3326, %v3334
        %v3336 = vadd.f32 %v3335, 1.1283791
        %v3337 = vmul.f32 %v2162, %v3336
        %v3338 = vmul.f32 %v3326, 3.8918573e-05
        %v3339 = vadd.f32 %v3338, 0.001143296
        %v3340 = vmul.f32 %v3326, %v3339
        %v3341 = vadd.f32 %v3340, 0.014752088
        %v3342 = vmul.f32 %v3326, %v3341
        %v3343 = vadd.f32 %v3342, 0.112945676
        %v3344 = vmul.f32 %v3326, %v3343
        %v3345 = vadd.f32 %v3344, 0.4994258
        %v3346 = vmul.f32 %v3326, %v3345
        %v3347 = vadd.f32 %v3346, 1.0
        %v3348 = vrcp.pop %v3347
        %v3349 = vmul.f32 %v3347, %v3348
        %v3350 = vsub.f32 1.0, %v3349
        %v3351 = vmul.f32 %v3348, %v3350
        %v3352 = vadd.f32 %v3348, %v3351
        %vm3353 = vweird.f32 %v3347
        %vm3354 = vweird.f32 %v3348
        %vm3355 = vmor %vm3353, %vm3354
        %v3356 = vsel %vm3355, %v3348, %v3352
        %v3357 = vand.u32 2147483647, %v3347
        %vm3358 = vcmp.eq.f32.partialorder %v3357, 8.507059e+37
        %v3359 = vand.u32 %v3347, 2147483648
        %v3360 = vor.u32 1.1754944e-38, %v3359
        %v3361 = vsel %vm3358, %v3360, %v3356
        %v3362 = vmul.f32 %v3337, %v3361
        %v3363 = vmin.f32 %v3362, 1.0
        %v3364 = vmax.f32 %v3363, -1.0
        %v3365 = vmul.f32 %v2163, %v2163
        %v3366 = vmin.f32 16.0, %v3365
        %v3367 = vmul.f32 %v3366, 2.1237322e-06
        %v3368 = vadd.f32 %v3367, 0.00028619796
        %v3369 = vmul.f32 %v3366, %v3368
        %v3370 = vadd.f32 %v3369, 0.0036580483
        %v3371 = vmul.f32 %v3366, %v3370
        %v3372 = vadd.f32 %v3371, 0.05243302
        %v3373 = vmul.f32 %v3366, %v3372
        %v3374 = vadd.f32 %v3373, 0.18741608
        %v3375 = vmul.f32 %v3366, %v3374
        %v3376 = vadd.f32 %v3375, 1.1283791
        %v3377 = vmul.f32 %v2163, %v3376
        %v3378 = vmul.f32 %v3366, 3.8918573e-05
        %v3379 = vadd.f32 %v3378, 0.001143296
        %v3380 = vmul.f32 %v3366, %v3379
        %v3381 = vadd.f32 %v3380, 0.014752088
        %v3382 = vmul.f32 %v3366, %v3381
        %v3383 = vadd.f32 %v3382, 0.112945676
        %v3384 = vmul.f32 %v3366, %v3383
        %v3385 = vadd.f32 %v3384, 0.4994258
        %v3386 = vmul.f32 %v3366, %v3385
        %v3387 = vadd.f32 %v3386, 1.0
        %v3388 = vrcp.pop %v3387
        %v3389 = vmul.f32 %v3387, %v3388
        %v3390 = vsub.f32 1.0, %v3389
        %v3391 = vmul.f32 %v3388, %v3390
        %v3392 = vadd.f32 %v3388, %v3391
        %vm3393 = vweird.f32 %v3387
        %vm3394 = vweird.f32 %v3388
        %vm3395 = vmor %vm3393, %vm3394
        %v3396 = vsel %vm3395, %v3388, %v3392
        %v3397 = vand.u32 2147483647, %v3387
        %vm3398 = vcmp.eq.f32.partialorder %v3397, 8.507059e+37
        %v3399 = vand.u32 %v3387, 2147483648
        %v3400 = vor.u32 1.1754944e-38, %v3399
        %v3401 = vsel %vm3398, %v3400, %v3396
        %v3402 = vmul.f32 %v3377, %v3401
        %v3403 = vmin.f32 %v3402, 1.0
        %v3404 = vmax.f32 %v3403, -1.0
        %v3405 = vmul.f32 %v2164, %v2164
        %v3406 = vmin.f32 16.0, %v3405
        %v3407 = vmul.f32 %v3406, 2.1237322e-06
        %v3408 = vadd.f32 %v3407, 0.00028619796
        %v3409 = vmul.f32 %v3406, %v3408
        %v3410 = vadd.f32 %v3409, 0.0036580483
        %v3411 = vmul.f32 %v3406, %v3410
        %v3412 = vadd.f32 %v3411, 0.05243302
        %v3413 = vmul.f32 %v3406, %v3412
        %v3414 = vadd.f32 %v3413, 0.18741608
        %v3415 = vmul.f32 %v3406, %v3414
        %v3416 = vadd.f32 %v3415, 1.1283791
        %v3417 = vmul.f32 %v2164, %v3416
        %v3418 = vmul.f32 %v3406, 3.8918573e-05
        %v3419 = vadd.f32 %v3418, 0.001143296
        %v3420 = vmul.f32 %v3406, %v3419
        %v3421 = vadd.f32 %v3420, 0.014752088
        %v3422 = vmul.f32 %v3406, %v3421
        %v3423 = vadd.f32 %v3422, 0.112945676
        %v3424 = vmul.f32 %v3406, %v3423
        %v3425 = vadd.f32 %v3424, 0.4994258
        %v3426 = vmul.f32 %v3406, %v3425
        %v3427 = vadd.f32 %v3426, 1.0
        %v3428 = vrcp.pop %v3427
        %v3429 = vmul.f32 %v3427, %v3428
        %v3430 = vsub.f32 1.0, %v3429
        %v3431 = vmul.f32 %v3428, %v3430
        %v3432 = vadd.f32 %v3428, %v3431
        %vm3433 = vweird.f32 %v3427
        %vm3434 = vweird.f32 %v3428
        %vm3435 = vmor %vm3433, %vm3434
        %v3436 = vsel %vm3435, %v3428, %v3432
        %v3437 = vand.u32 2147483647, %v3427
        %vm3438 = vcmp.eq.f32.partialorder %v3437, 8.507059e+37
        %v3439 = vand.u32 %v3427, 2147483648
        %v3440 = vor.u32 1.1754944e-38, %v3439
        %v3441 = vsel %vm3438, %v3440, %v3436
        %v3442 = vmul.f32 %v3417, %v3441
        %v3443 = vmin.f32 %v3442, 1.0
        %v3444 = vmax.f32 %v3443, -1.0
        %v3445 = vadd.f32 %v2204, 1.0
        %v3446 = vadd.f32 %v2244, 1.0
        %v3447 = vadd.f32 %v2284, 1.0
        %v3448 = vadd.f32 %v2324, 1.0
        %v3449 = vadd.f32 %v2364, 1.0
        %v3450 = vadd.f32 %v2404, 1.0
        %v3451 = vadd.f32 %v2444, 1.0
        %v3452 = vadd.f32 %v2484, 1.0
        %v3453 = vadd.f32 %v2524, 1.0
        %v3454 = vadd.f32 %v2564, 1.0
        %v3455 = vadd.f32 %v2604, 1.0
        %v3456 = vadd.f32 %v2644, 1.0
        %v3457 = vadd.f32 %v2684, 1.0
        %v3458 = vadd.f32 %v2724, 1.0
        %v3459 = vadd.f32 %v2764, 1.0
        %v3460 = vadd.f32 %v2804, 1.0
        %v3461 = vadd.f32 %v2844, 1.0
        %v3462 = vadd.f32 %v2884, 1.0
        %v3463 = vadd.f32 %v2924, 1.0
        %v3464 = vadd.f32 %v2964, 1.0
        %v3465 = vadd.f32 %v3004, 1.0
        %v3466 = vadd.f32 %v3044, 1.0
        %v3467 = vadd.f32 %v3084, 1.0
        %v3468 = vadd.f32 %v3124, 1.0
        %v3469 = vadd.f32 %v3164, 1.0
        %v3470 = vadd.f32 %v3204, 1.0
        %v3471 = vadd.f32 %v3244, 1.0
        %v3472 = vadd.f32 %v3284, 1.0
        %v3473 = vadd.f32 %v3324, 1.0
        %v3474 = vadd.f32 %v3364, 1.0
        %v3475 = vadd.f32 %v3404, 1.0
        %v3476 = vadd.f32 %v3444, 1.0
        %v3477 = vmul.f32 %v2101, %v3445
        %v3478 = vmul.f32 %v2102, %v3446
        %v3479 = vmul.f32 %v2103, %v3447
        %v3480 = vmul.f32 %v2104, %v3448
        %v3481 = vmul.f32 %v2105, %v3449
        %v3482 = vmul.f32 %v2106, %v3450
        %v3483 = vmul.f32 %v2107, %v3451
        %v3484 = vmul.f32 %v2108, %v3452
        %v3485 = vmul.f32 %v2109, %v3453
        %v3486 = vmul.f32 %v2110, %v3454
        %v3487 = vmul.f32 %v2111, %v3455
        %v3488 = vmul.f32 %v2112, %v3456
        %v3489 = vmul.f32 %v2113, %v3457
        %v3490 = vmul.f32 %v2114, %v3458
        %v3491 = vmul.f32 %v2115, %v3459
        %v3492 = vmul.f32 %v2116, %v3460
        %v3493 = vmul.f32 %v2117, %v3461
        %v3494 = vmul.f32 %v2118, %v3462
        %v3495 = vmul.f32 %v2119, %v3463
        %v3496 = vmul.f32 %v2120, %v3464
        %v3497 = vmul.f32 %v2121, %v3465
        %v3498 = vmul.f32 %v2122, %v3466
        %v3499 = vmul.f32 %v2123, %v3467
        %v3500 = vmul.f32 %v2124, %v3468
        %v3501 = vmul.f32 %v2125, %v3469
        %v3502 = vmul.f32 %v2126, %v3470
        %v3503 = vmul.f32 %v2127, %v3471
        %v3504 = vmul.f32 %v2128, %v3472
        %v3505 = vmul.f32 %v2129, %v3473
        %v3506 = vmul.f32 %v2130, %v3474
        %v3507 = vmul.f32 %v2131, %v3475
        %v3508 = vmul.f32 %v2132, %v3476
        %v3509 = vpack.c.bf16 %v3479, %v3477
        %v3510 = vpack.c.bf16 %v3480, %v3478
        %v3511 = vpack.c.bf16 %v3483, %v3481
        %v3512 = vpack.c.bf16 %v3484, %v3482
        %v3513 = vpack.c.bf16 %v3487, %v3485
        %v3514 = vpack.c.bf16 %v3488, %v3486
        %v3515 = vpack.c.bf16 %v3491, %v3489
        %v3516 = vpack.c.bf16 %v3492, %v3490
        %v3517 = vpack.c.bf16 %v3495, %v3493
        %v3518 = vpack.c.bf16 %v3496, %v3494
        %v3519 = vpack.c.bf16 %v3499, %v3497
        %v3520 = vpack.c.bf16 %v3500, %v3498
        %v3521 = vpack.c.bf16 %v3503, %v3501
        %v3522 = vpack.c.bf16 %v3504, %v3502
        %v3523 = vpack.c.bf16 %v3507, %v3505
        %v3524 = vpack.c.bf16 %v3508, %v3506
        %v3525 = vld [vmem:[#allocation12] sm:$0xff]
        %v3526 = vld [vmem:[#allocation12 + $0x8] sm:$0xff]
        %v3527 = vld [vmem:[#allocation12 + $0x10] sm:$0xff]
        %v3528 = vld [vmem:[#allocation12 + $0x18] sm:$0xff]
        %v3529 = vld [vmem:[#allocation12 + $0x20] sm:$0xff]
        %v3530 = vld [vmem:[#allocation12 + $0x28] sm:$0xff]
        %v3531 = vld [vmem:[#allocation12 + $0x30] sm:$0xff]
        %v3532 = vld [vmem:[#allocation12 + $0x38] sm:$0xff]
        %v3533 = vld [vmem:[#allocation12 + $0x40] sm:$0xff]
        %v3534 = vld [vmem:[#allocation12 + $0x48] sm:$0xff]
        %v3535 = vld [vmem:[#allocation12 + $0x50] sm:$0xff]
        %v3536 = vld [vmem:[#allocation12 + $0x58] sm:$0xff]
        %v3537 = vld [vmem:[#allocation12 + $0x60] sm:$0xff]
        %v3538 = vld [vmem:[#allocation12 + $0x68] sm:$0xff]
        %v3539 = vld [vmem:[#allocation12 + $0x70] sm:$0xff]
        %v3540 = vld [vmem:[#allocation12 + $0x78] sm:$0xff]
        %v3541 = vld [vmem:[#allocation12 + $0x80] sm:$0xff]
        %v3542 = vld [vmem:[#allocation12 + $0x88] sm:$0xff]
        %v3543 = vld [vmem:[#allocation12 + $0x90] sm:$0xff]
        %v3544 = vld [vmem:[#allocation12 + $0x98] sm:$0xff]
        %v3545 = vld [vmem:[#allocation12 + $0xa0] sm:$0xff]
        %v3546 = vld [vmem:[#allocation12 + $0xa8] sm:$0xff]
        %v3547 = vld [vmem:[#allocation12 + $0xb0] sm:$0xff]
        %v3548 = vld [vmem:[#allocation12 + $0xb8] sm:$0xff]
        %v3549 = vld [vmem:[#allocation12 + $0xc0] sm:$0xff]
        %v3550 = vld [vmem:[#allocation12 + $0xc8] sm:$0xff]
        %v3551 = vld [vmem:[#allocation12 + $0xd0] sm:$0xff]
        %v3552 = vld [vmem:[#allocation12 + $0xd8] sm:$0xff]
        %v3553 = vld [vmem:[#allocation12 + $0xe0] sm:$0xff]
        %v3554 = vld [vmem:[#allocation12 + $0xe8] sm:$0xff]
        %v3555 = vld [vmem:[#allocation12 + $0xf0] sm:$0xff]
        %v3556 = vld [vmem:[#allocation12 + $0xf8] sm:$0xff]
        %s3557 = scalar_lea.vmem [#allocation15], 1
        %v3558 = vld [vmem:[%s3557] ss:$8 sm:$0x3]
        %v3560 = vperm.slane %v3558, 0
        %v3561 = vperm.slane %v3558, 1
        %v3596 = vunpack.c.l.b16 %v3525
        %v3597 = vunpack.c.h.b16 %v3525
        %v3598 = vunpack.c.l.b16 %v3526
        %v3599 = vunpack.c.h.b16 %v3526
        %v3600 = vunpack.c.l.b16 %v3527
        %v3601 = vunpack.c.h.b16 %v3527
        %v3602 = vunpack.c.l.b16 %v3528
        %v3603 = vunpack.c.h.b16 %v3528
        %v3604 = vunpack.c.l.b16 %v3529
        %v3605 = vunpack.c.h.b16 %v3529
        %v3606 = vunpack.c.l.b16 %v3530
        %v3607 = vunpack.c.h.b16 %v3530
        %v3608 = vunpack.c.l.b16 %v3531
        %v3609 = vunpack.c.h.b16 %v3531
        %v3610 = vunpack.c.l.b16 %v3532
        %v3611 = vunpack.c.h.b16 %v3532
        %v3612 = vunpack.c.l.b16 %v3533
        %v3613 = vunpack.c.h.b16 %v3533
        %v3614 = vunpack.c.l.b16 %v3534
        %v3615 = vunpack.c.h.b16 %v3534
        %v3616 = vunpack.c.l.b16 %v3535
        %v3617 = vunpack.c.h.b16 %v3535
        %v3618 = vunpack.c.l.b16 %v3536
        %v3619 = vunpack.c.h.b16 %v3536
        %v3620 = vunpack.c.l.b16 %v3537
        %v3621 = vunpack.c.h.b16 %v3537
        %v3622 = vunpack.c.l.b16 %v3538
        %v3623 = vunpack.c.h.b16 %v3538
        %v3624 = vunpack.c.l.b16 %v3539
        %v3625 = vunpack.c.h.b16 %v3539
        %v3626 = vunpack.c.l.b16 %v3540
        %v3627 = vunpack.c.h.b16 %v3540
        %v3628 = vunpack.c.l.b16 %v3541
        %v3629 = vunpack.c.h.b16 %v3541
        %v3630 = vunpack.c.l.b16 %v3542
        %v3631 = vunpack.c.h.b16 %v3542
        %v3632 = vunpack.c.l.b16 %v3543
        %v3633 = vunpack.c.h.b16 %v3543
        %v3634 = vunpack.c.l.b16 %v3544
        %v3635 = vunpack.c.h.b16 %v3544
        %v3636 = vunpack.c.l.b16 %v3545
        %v3637 = vunpack.c.h.b16 %v3545
        %v3638 = vunpack.c.l.b16 %v3546
        %v3639 = vunpack.c.h.b16 %v3546
        %v3640 = vunpack.c.l.b16 %v3547
        %v3641 = vunpack.c.h.b16 %v3547
        %v3642 = vunpack.c.l.b16 %v3548
        %v3643 = vunpack.c.h.b16 %v3548
        %v3644 = vunpack.c.l.b16 %v3549
        %v3645 = vunpack.c.h.b16 %v3549
        %v3646 = vunpack.c.l.b16 %v3550
        %v3647 = vunpack.c.h.b16 %v3550
        %v3648 = vunpack.c.l.b16 %v3551
        %v3649 = vunpack.c.h.b16 %v3551
        %v3650 = vunpack.c.l.b16 %v3552
        %v3651 = vunpack.c.h.b16 %v3552
        %v3652 = vunpack.c.l.b16 %v3553
        %v3653 = vunpack.c.h.b16 %v3553
        %v3654 = vunpack.c.l.b16 %v3554
        %v3655 = vunpack.c.h.b16 %v3554
        %v3656 = vunpack.c.l.b16 %v3555
        %v3657 = vunpack.c.h.b16 %v3555
        %v3658 = vunpack.c.l.b16 %v3556
        %v3659 = vunpack.c.h.b16 %v3556
        %v3660 = vpack.c.b16 %v3598, %v3596
        %v3661 = vpack.c.b16 %v3599, %v3597
        %v3662 = vpack.c.b16 %v3602, %v3600
        %v3663 = vpack.c.b16 %v3603, %v3601
        %v3664 = vpack.c.b16 %v3606, %v3604
        %v3665 = vpack.c.b16 %v3607, %v3605
        %v3666 = vpack.c.b16 %v3610, %v3608
        %v3667 = vpack.c.b16 %v3611, %v3609
        %v3668 = vpack.c.b16 %v3614, %v3612
        %v3669 = vpack.c.b16 %v3615, %v3613
        %v3670 = vpack.c.b16 %v3618, %v3616
        %v3671 = vpack.c.b16 %v3619, %v3617
        %v3672 = vpack.c.b16 %v3622, %v3620
        %v3673 = vpack.c.b16 %v3623, %v3621
        %v3674 = vpack.c.b16 %v3626, %v3624
        %v3675 = vpack.c.b16 %v3627, %v3625
        %v3676 = vpack.c.b16 %v3630, %v3628
        %v3677 = vpack.c.b16 %v3631, %v3629
        %v3678 = vpack.c.b16 %v3634, %v3632
        %v3679 = vpack.c.b16 %v3635, %v3633
        %v3680 = vpack.c.b16 %v3638, %v3636
        %v3681 = vpack.c.b16 %v3639, %v3637
        %v3682 = vpack.c.b16 %v3642, %v3640
        %v3683 = vpack.c.b16 %v3643, %v3641
        %v3684 = vpack.c.b16 %v3646, %v3644
        %v3685 = vpack.c.b16 %v3647, %v3645
        %v3686 = vpack.c.b16 %v3650, %v3648
        %v3687 = vpack.c.b16 %v3651, %v3649
        %v3688 = vpack.c.b16 %v3654, %v3652
        %v3689 = vpack.c.b16 %v3655, %v3653
        %v3690 = vpack.c.b16 %v3658, %v3656
        %v3691 = vpack.c.b16 %v3659, %v3657
        %3724 = vmatpush.bf16.msra.mxu0 %v3674
        %3725 = vmatpush.bf16.msra.mxu0 %v3672
        %3726 = vmatpush.bf16.msra.mxu0 %v3670
        %3727 = vmatpush.bf16.msra.mxu0 %v3668
        %3728 = vmatpush.bf16.msra.mxu0 %v3666
        %3729 = vmatpush.bf16.msra.mxu0 %v3664
        %3730 = vmatpush.bf16.msra.mxu0 %v3662
        %3731 = vmatpush.bf16.msra.mxu0 %v3660
        %3732 = vmatmul.bf16.gmra.mxu0 %v3509
        %v3733 = vpop.f32.mrf.mxu0
        %v3734 = vadd.f32 %v3560, %v3733
        %v3735 = vpop.f32.mrf.mxu0
        %v3736 = vadd.f32 %v3560, %v3735
        %3737 = vmatmul.bf16.gmra.mxu0 %v3511
        %v3738 = vpop.f32.mrf.mxu0
        %v3739 = vadd.f32 %v3560, %v3738
        %v3740 = vpop.f32.mrf.mxu0
        %v3741 = vadd.f32 %v3560, %v3740
        %3742 = vmatmul.bf16.gmra.mxu0 %v3513
        %v3743 = vpop.f32.mrf.mxu0
        %v3744 = vadd.f32 %v3560, %v3743
        %v3745 = vpop.f32.mrf.mxu0
        %v3746 = vadd.f32 %v3560, %v3745
        %3747 = vmatmul.bf16.gmra.mxu0 %v3515
        %v3748 = vpop.f32.mrf.mxu0
        %v3749 = vadd.f32 %v3560, %v3748
        %v3750 = vpop.f32.mrf.mxu0
        %v3751 = vadd.f32 %v3560, %v3750
        %3752 = vmatmul.bf16.gmra.mxu0 %v3517
        %v3753 = vpop.f32.mrf.mxu0
        %v3754 = vadd.f32 %v3560, %v3753
        %v3755 = vpop.f32.mrf.mxu0
        %v3756 = vadd.f32 %v3560, %v3755
        %3757 = vmatmul.bf16.gmra.mxu0 %v3519
        %v3758 = vpop.f32.mrf.mxu0
        %v3759 = vadd.f32 %v3560, %v3758
        %v3760 = vpop.f32.mrf.mxu0
        %v3761 = vadd.f32 %v3560, %v3760
        %3762 = vmatmul.bf16.gmra.mxu0 %v3521
        %v3763 = vpop.f32.mrf.mxu0
        %v3764 = vadd.f32 %v3560, %v3763
        %v3765 = vpop.f32.mrf.mxu0
        %v3766 = vadd.f32 %v3560, %v3765
        %3767 = vmatmul.bf16.gmra.mxu0 %v3523
        %v3768 = vpop.f32.mrf.mxu0
        %v3769 = vadd.f32 %v3560, %v3768
        %v3770 = vpop.f32.mrf.mxu0
        %v3771 = vadd.f32 %v3560, %v3770
        %3772 = vdwg.mxu0
        %3773 = vmatpush.bf16.msra.mxu0 %v3690
        %3774 = vmatpush.bf16.msra.mxu0 %v3688
        %3775 = vmatpush.bf16.msra.mxu0 %v3686
        %3776 = vmatpush.bf16.msra.mxu0 %v3684
        %3777 = vmatpush.bf16.msra.mxu0 %v3682
        %3778 = vmatpush.bf16.msra.mxu0 %v3680
        %3779 = vmatpush.bf16.msra.mxu0 %v3678
        %3780 = vmatpush.bf16.msra.mxu0 %v3676
        %3781 = vmatmul.bf16.gmra.mxu0 %v3510
        %v3782 = vpop.f32.mrf.mxu0
        %v3783 = vadd.f32 %v3734, %v3782
        %v3784 = vpop.f32.mrf.mxu0
        %v3785 = vadd.f32 %v3736, %v3784
        %3786 = vmatmul.bf16.gmra.mxu0 %v3512
        %v3787 = vpop.f32.mrf.mxu0
        %v3788 = vadd.f32 %v3739, %v3787
        %v3789 = vpop.f32.mrf.mxu0
        %v3790 = vadd.f32 %v3741, %v3789
        %3791 = vmatmul.bf16.gmra.mxu0 %v3514
        %v3792 = vpop.f32.mrf.mxu0
        %v3793 = vadd.f32 %v3744, %v3792
        %v3794 = vpop.f32.mrf.mxu0
        %v3795 = vadd.f32 %v3746, %v3794
        %3796 = vmatmul.bf16.gmra.mxu0 %v3516
        %v3797 = vpop.f32.mrf.mxu0
        %v3798 = vadd.f32 %v3749, %v3797
        %v3799 = vpop.f32.mrf.mxu0
        %v3800 = vadd.f32 %v3751, %v3799
        %3801 = vmatmul.bf16.gmra.mxu0 %v3518
        %v3802 = vpop.f32.mrf.mxu0
        %v3803 = vadd.f32 %v3754, %v3802
        %v3804 = vpop.f32.mrf.mxu0
        %v3805 = vadd.f32 %v3756, %v3804
        %3806 = vmatmul.bf16.gmra.mxu0 %v3520
        %v3807 = vpop.f32.mrf.mxu0
        %v3808 = vadd.f32 %v3759, %v3807
        %v3809 = vpop.f32.mrf.mxu0
        %v3810 = vadd.f32 %v3761, %v3809
        %3811 = vmatmul.bf16.gmra.mxu0 %v3522
        %v3812 = vpop.f32.mrf.mxu0
        %v3813 = vadd.f32 %v3764, %v3812
        %v3814 = vpop.f32.mrf.mxu0
        %v3815 = vadd.f32 %v3766, %v3814
        %3816 = vmatmul.bf16.gmra.mxu0 %v3524
        %v3817 = vpop.f32.mrf.mxu0
        %v3818 = vadd.f32 %v3769, %v3817
        %v3819 = vpop.f32.mrf.mxu0
        %v3820 = vadd.f32 %v3771, %v3819
        %3821 = vdwg.mxu0
        %3822 = vmatpush.bf16.msra.mxu0 %v3675
        %3823 = vmatpush.bf16.msra.mxu0 %v3673
        %3824 = vmatpush.bf16.msra.mxu0 %v3671
        %3825 = vmatpush.bf16.msra.mxu0 %v3669
        %3826 = vmatpush.bf16.msra.mxu0 %v3667
        %3827 = vmatpush.bf16.msra.mxu0 %v3665
        %3828 = vmatpush.bf16.msra.mxu0 %v3663
        %3829 = vmatpush.bf16.msra.mxu0 %v3661
        %3830 = vmatmul.bf16.gmra.mxu0 %v3509
        %v3831 = vpop.f32.mrf.mxu0
        %v3832 = vadd.f32 %v3561, %v3831
        %v3833 = vpop.f32.mrf.mxu0
        %v3834 = vadd.f32 %v3561, %v3833
        %3835 = vmatmul.bf16.gmra.mxu0 %v3511
        %v3836 = vpop.f32.mrf.mxu0
        %v3837 = vadd.f32 %v3561, %v3836
        %v3838 = vpop.f32.mrf.mxu0
        %v3839 = vadd.f32 %v3561, %v3838
        %3840 = vmatmul.bf16.gmra.mxu0 %v3513
        %v3841 = vpop.f32.mrf.mxu0
        %v3842 = vadd.f32 %v3561, %v3841
        %v3843 = vpop.f32.mrf.mxu0
        %v3844 = vadd.f32 %v3561, %v3843
        %3845 = vmatmul.bf16.gmra.mxu0 %v3515
        %v3846 = vpop.f32.mrf.mxu0
        %v3847 = vadd.f32 %v3561, %v3846
        %v3848 = vpop.f32.mrf.mxu0
        %v3849 = vadd.f32 %v3561, %v3848
        %3850 = vmatmul.bf16.gmra.mxu0 %v3517
        %v3851 = vpop.f32.mrf.mxu0
        %v3852 = vadd.f32 %v3561, %v3851
        %v3853 = vpop.f32.mrf.mxu0
        %v3854 = vadd.f32 %v3561, %v3853
        %3855 = vmatmul.bf16.gmra.mxu0 %v3519
        %v3856 = vpop.f32.mrf.mxu0
        %v3857 = vadd.f32 %v3561, %v3856
        %v3858 = vpop.f32.mrf.mxu0
        %v3859 = vadd.f32 %v3561, %v3858
        %3860 = vmatmul.bf16.gmra.mxu0 %v3521
        %v3861 = vpop.f32.mrf.mxu0
        %v3862 = vadd.f32 %v3561, %v3861
        %v3863 = vpop.f32.mrf.mxu0
        %v3864 = vadd.f32 %v3561, %v3863
        %3865 = vmatmul.bf16.gmra.mxu0 %v3523
        %v3866 = vpop.f32.mrf.mxu0
        %v3867 = vadd.f32 %v3561, %v3866
        %v3868 = vpop.f32.mrf.mxu0
        %v3869 = vadd.f32 %v3561, %v3868
        %3870 = vdwg.mxu0
        %3871 = vmatpush.bf16.msra.mxu0 %v3691
        %3872 = vmatpush.bf16.msra.mxu0 %v3689
        %3873 = vmatpush.bf16.msra.mxu0 %v3687
        %3874 = vmatpush.bf16.msra.mxu0 %v3685
        %3875 = vmatpush.bf16.msra.mxu0 %v3683
        %3876 = vmatpush.bf16.msra.mxu0 %v3681
        %3877 = vmatpush.bf16.msra.mxu0 %v3679
        %3878 = vmatpush.bf16.msra.mxu0 %v3677
        %3879 = vmatmul.bf16.gmra.mxu0 %v3510
        %v3880 = vpop.f32.mrf.mxu0
        %v3881 = vadd.f32 %v3832, %v3880
        %v3882 = vpop.f32.mrf.mxu0
        %v3883 = vadd.f32 %v3834, %v3882
        %3884 = vmatmul.bf16.gmra.mxu0 %v3512
        %v3885 = vpop.f32.mrf.mxu0
        %v3886 = vadd.f32 %v3837, %v3885
        %v3887 = vpop.f32.mrf.mxu0
        %v3888 = vadd.f32 %v3839, %v3887
        %3889 = vmatmul.bf16.gmra.mxu0 %v3514
        %v3890 = vpop.f32.mrf.mxu0
        %v3891 = vadd.f32 %v3842, %v3890
        %v3892 = vpop.f32.mrf.mxu0
        %v3893 = vadd.f32 %v3844, %v3892
        %3894 = vmatmul.bf16.gmra.mxu0 %v3516
        %v3895 = vpop.f32.mrf.mxu0
        %v3896 = vadd.f32 %v3847, %v3895
        %v3897 = vpop.f32.mrf.mxu0
        %v3898 = vadd.f32 %v3849, %v3897
        %3899 = vmatmul.bf16.gmra.mxu0 %v3518
        %v3900 = vpop.f32.mrf.mxu0
        %v3901 = vadd.f32 %v3852, %v3900
        %v3902 = vpop.f32.mrf.mxu0
        %v3903 = vadd.f32 %v3854, %v3902
        %3904 = vmatmul.bf16.gmra.mxu0 %v3520
        %v3905 = vpop.f32.mrf.mxu0
        %v3906 = vadd.f32 %v3857, %v3905
        %v3907 = vpop.f32.mrf.mxu0
        %v3908 = vadd.f32 %v3859, %v3907
        %3909 = vmatmul.bf16.gmra.mxu0 %v3522
        %v3910 = vpop.f32.mrf.mxu0
        %v3911 = vadd.f32 %v3862, %v3910
        %v3912 = vpop.f32.mrf.mxu0
        %v3913 = vadd.f32 %v3864, %v3912
        %3914 = vmatmul.bf16.gmra.mxu0 %v3524
        %v3915 = vpop.f32.mrf.mxu0
        %v3916 = vadd.f32 %v3867, %v3915
        %v3917 = vpop.f32.mrf.mxu0
        %v3918 = vadd.f32 %v3869, %v3917
        %3919 = vdwg.mxu0
        %v3920 = vmul.f32 %v3783, 0.5
        %v3921 = vmul.f32 %v3881, 0.5
        %v3922 = vmul.f32 %v3785, 0.5
        %v3923 = vmul.f32 %v3883, 0.5
        %v3924 = vmul.f32 %v3788, 0.5
        %v3925 = vmul.f32 %v3886, 0.5
        %v3926 = vmul.f32 %v3790, 0.5
        %v3927 = vmul.f32 %v3888, 0.5
        %v3928 = vmul.f32 %v3793, 0.5
        %v3929 = vmul.f32 %v3891, 0.5
        %v3930 = vmul.f32 %v3795, 0.5
        %v3931 = vmul.f32 %v3893, 0.5
        %v3932 = vmul.f32 %v3798, 0.5
        %v3933 = vmul.f32 %v3896, 0.5
        %v3934 = vmul.f32 %v3800, 0.5
        %v3935 = vmul.f32 %v3898, 0.5
        %v3936 = vmul.f32 %v3803, 0.5
        %v3937 = vmul.f32 %v3901, 0.5
        %v3938 = vmul.f32 %v3805, 0.5
        %v3939 = vmul.f32 %v3903, 0.5
        %v3940 = vmul.f32 %v3808, 0.5
        %v3941 = vmul.f32 %v3906, 0.5
        %v3942 = vmul.f32 %v3810, 0.5
        %v3943 = vmul.f32 %v3908, 0.5
        %v3944 = vmul.f32 %v3813, 0.5
        %v3945 = vmul.f32 %v3911, 0.5
        %v3946 = vmul.f32 %v3815, 0.5
        %v3947 = vmul.f32 %v3913, 0.5
        %v3948 = vmul.f32 %v3818, 0.5
        %v3949 = vmul.f32 %v3916, 0.5
        %v3950 = vmul.f32 %v3820, 0.5
        %v3951 = vmul.f32 %v3918, 0.5
        %v3952 = vmul.f32 %v3783, 0.70710677
        %v3953 = vmul.f32 %v3881, 0.70710677
        %v3954 = vmul.f32 %v3785, 0.70710677
        %v3955 = vmul.f32 %v3883, 0.70710677
        %v3956 = vmul.f32 %v3788, 0.70710677
        %v3957 = vmul.f32 %v3886, 0.70710677
        %v3958 = vmul.f32 %v3790, 0.70710677
        %v3959 = vmul.f32 %v3888, 0.70710677
        %v3960 = vmul.f32 %v3793, 0.70710677
        %v3961 = vmul.f32 %v3891, 0.70710677
        %v3962 = vmul.f32 %v3795, 0.70710677
        %v3963 = vmul.f32 %v3893, 0.70710677
        %v3964 = vmul.f32 %v3798, 0.70710677
        %v3965 = vmul.f32 %v3896, 0.70710677
        %v3966 = vmul.f32 %v3800, 0.70710677
        %v3967 = vmul.f32 %v3898, 0.70710677
        %v3968 = vmul.f32 %v3803, 0.70710677
        %v3969 = vmul.f32 %v3901, 0.70710677
        %v3970 = vmul.f32 %v3805, 0.70710677
        %v3971 = vmul.f32 %v3903, 0.70710677
        %v3972 = vmul.f32 %v3808, 0.70710677
        %v3973 = vmul.f32 %v3906, 0.70710677
        %v3974 = vmul.f32 %v3810, 0.70710677
        %v3975 = vmul.f32 %v3908, 0.70710677
        %v3976 = vmul.f32 %v3813, 0.70710677
        %v3977 = vmul.f32 %v3911, 0.70710677
        %v3978 = vmul.f32 %v3815, 0.70710677
        %v3979 = vmul.f32 %v3913, 0.70710677
        %v3980 = vmul.f32 %v3818, 0.70710677
        %v3981 = vmul.f32 %v3916, 0.70710677
        %v3982 = vmul.f32 %v3820, 0.70710677
        %v3983 = vmul.f32 %v3918, 0.70710677
        %v3984 = vmul.f32 %v3952, %v3952
        %v3985 = vmin.f32 16.0, %v3984
        %v3986 = vmul.f32 %v3985, 2.1237322e-06
        %v3987 = vadd.f32 %v3986, 0.00028619796
        %v3988 = vmul.f32 %v3985, %v3987
        %v3989 = vadd.f32 %v3988, 0.0036580483
        %v3990 = vmul.f32 %v3985, %v3989
        %v3991 = vadd.f32 %v3990, 0.05243302
        %v3992 = vmul.f32 %v3985, %v3991
        %v3993 = vadd.f32 %v3992, 0.18741608
        %v3994 = vmul.f32 %v3985, %v3993
        %v3995 = vadd.f32 %v3994, 1.1283791
        %v3996 = vmul.f32 %v3952, %v3995
        %v3997 = vmul.f32 %v3985, 3.8918573e-05
        %v3998 = vadd.f32 %v3997, 0.001143296
        %v3999 = vmul.f32 %v3985, %v3998
        %v4000 = vadd.f32 %v3999, 0.014752088
        %v4001 = vmul.f32 %v3985, %v4000
        %v4002 = vadd.f32 %v4001, 0.112945676
        %v4003 = vmul.f32 %v3985, %v4002
        %v4004 = vadd.f32 %v4003, 0.4994258
        %v4005 = vmul.f32 %v3985, %v4004
        %v4006 = vadd.f32 %v4005, 1.0
        %v4007 = vrcp.pop %v4006
        %v4008 = vmul.f32 %v4006, %v4007
        %v4009 = vsub.f32 1.0, %v4008
        %v4010 = vmul.f32 %v4007, %v4009
        %v4011 = vadd.f32 %v4007, %v4010
        %vm4012 = vweird.f32 %v4006
        %vm4013 = vweird.f32 %v4007
        %vm4014 = vmor %vm4012, %vm4013
        %v4015 = vsel %vm4014, %v4007, %v4011
        %v4016 = vand.u32 2147483647, %v4006
        %vm4017 = vcmp.eq.f32.partialorder %v4016, 8.507059e+37
        %v4018 = vand.u32 %v4006, 2147483648
        %v4019 = vor.u32 1.1754944e-38, %v4018
        %v4020 = vsel %vm4017, %v4019, %v4015
        %v4021 = vmul.f32 %v3996, %v4020
        %v4022 = vmin.f32 %v4021, 1.0
        %v4023 = vmax.f32 %v4022, -1.0
        %v4024 = vmul.f32 %v3953, %v3953
        %v4025 = vmin.f32 16.0, %v4024
        %v4026 = vmul.f32 %v4025, 2.1237322e-06
        %v4027 = vadd.f32 %v4026, 0.00028619796
        %v4028 = vmul.f32 %v4025, %v4027
        %v4029 = vadd.f32 %v4028, 0.0036580483
        %v4030 = vmul.f32 %v4025, %v4029
        %v4031 = vadd.f32 %v4030, 0.05243302
        %v4032 = vmul.f32 %v4025, %v4031
        %v4033 = vadd.f32 %v4032, 0.18741608
        %v4034 = vmul.f32 %v4025, %v4033
        %v4035 = vadd.f32 %v4034, 1.1283791
        %v4036 = vmul.f32 %v3953, %v4035
        %v4037 = vmul.f32 %v4025, 3.8918573e-05
        %v4038 = vadd.f32 %v4037, 0.001143296
        %v4039 = vmul.f32 %v4025, %v4038
        %v4040 = vadd.f32 %v4039, 0.014752088
        %v4041 = vmul.f32 %v4025, %v4040
        %v4042 = vadd.f32 %v4041, 0.112945676
        %v4043 = vmul.f32 %v4025, %v4042
        %v4044 = vadd.f32 %v4043, 0.4994258
        %v4045 = vmul.f32 %v4025, %v4044
        %v4046 = vadd.f32 %v4045, 1.0
        %v4047 = vrcp.pop %v4046
        %v4048 = vmul.f32 %v4046, %v4047
        %v4049 = vsub.f32 1.0, %v4048
        %v4050 = vmul.f32 %v4047, %v4049
        %v4051 = vadd.f32 %v4047, %v4050
        %vm4052 = vweird.f32 %v4046
        %vm4053 = vweird.f32 %v4047
        %vm4054 = vmor %vm4052, %vm4053
        %v4055 = vsel %vm4054, %v4047, %v4051
        %v4056 = vand.u32 2147483647, %v4046
        %vm4057 = vcmp.eq.f32.partialorder %v4056, 8.507059e+37
        %v4058 = vand.u32 %v4046, 2147483648
        %v4059 = vor.u32 1.1754944e-38, %v4058
        %v4060 = vsel %vm4057, %v4059, %v4055
        %v4061 = vmul.f32 %v4036, %v4060
        %v4062 = vmin.f32 %v4061, 1.0
        %v4063 = vmax.f32 %v4062, -1.0
        %v4064 = vmul.f32 %v3954, %v3954
        %v4065 = vmin.f32 16.0, %v4064
        %v4066 = vmul.f32 %v4065, 2.1237322e-06
        %v4067 = vadd.f32 %v4066, 0.00028619796
        %v4068 = vmul.f32 %v4065, %v4067
        %v4069 = vadd.f32 %v4068, 0.0036580483
        %v4070 = vmul.f32 %v4065, %v4069
        %v4071 = vadd.f32 %v4070, 0.05243302
        %v4072 = vmul.f32 %v4065, %v4071
        %v4073 = vadd.f32 %v4072, 0.18741608
        %v4074 = vmul.f32 %v4065, %v4073
        %v4075 = vadd.f32 %v4074, 1.1283791
        %v4076 = vmul.f32 %v3954, %v4075
        %v4077 = vmul.f32 %v4065, 3.8918573e-05
        %v4078 = vadd.f32 %v4077, 0.001143296
        %v4079 = vmul.f32 %v4065, %v4078
        %v4080 = vadd.f32 %v4079, 0.014752088
        %v4081 = vmul.f32 %v4065, %v4080
        %v4082 = vadd.f32 %v4081, 0.112945676
        %v4083 = vmul.f32 %v4065, %v4082
        %v4084 = vadd.f32 %v4083, 0.4994258
        %v4085 = vmul.f32 %v4065, %v4084
        %v4086 = vadd.f32 %v4085, 1.0
        %v4087 = vrcp.pop %v4086
        %v4088 = vmul.f32 %v4086, %v4087
        %v4089 = vsub.f32 1.0, %v4088
        %v4090 = vmul.f32 %v4087, %v4089
        %v4091 = vadd.f32 %v4087, %v4090
        %vm4092 = vweird.f32 %v4086
        %vm4093 = vweird.f32 %v4087
        %vm4094 = vmor %vm4092, %vm4093
        %v4095 = vsel %vm4094, %v4087, %v4091
        %v4096 = vand.u32 2147483647, %v4086
        %vm4097 = vcmp.eq.f32.partialorder %v4096, 8.507059e+37
        %v4098 = vand.u32 %v4086, 2147483648
        %v4099 = vor.u32 1.1754944e-38, %v4098
        %v4100 = vsel %vm4097, %v4099, %v4095
        %v4101 = vmul.f32 %v4076, %v4100
        %v4102 = vmin.f32 %v4101, 1.0
        %v4103 = vmax.f32 %v4102, -1.0
        %v4104 = vmul.f32 %v3955, %v3955
        %v4105 = vmin.f32 16.0, %v4104
        %v4106 = vmul.f32 %v4105, 2.1237322e-06
        %v4107 = vadd.f32 %v4106, 0.00028619796
        %v4108 = vmul.f32 %v4105, %v4107
        %v4109 = vadd.f32 %v4108, 0.0036580483
        %v4110 = vmul.f32 %v4105, %v4109
        %v4111 = vadd.f32 %v4110, 0.05243302
        %v4112 = vmul.f32 %v4105, %v4111
        %v4113 = vadd.f32 %v4112, 0.18741608
        %v4114 = vmul.f32 %v4105, %v4113
        %v4115 = vadd.f32 %v4114, 1.1283791
        %v4116 = vmul.f32 %v3955, %v4115
        %v4117 = vmul.f32 %v4105, 3.8918573e-05
        %v4118 = vadd.f32 %v4117, 0.001143296
        %v4119 = vmul.f32 %v4105, %v4118
        %v4120 = vadd.f32 %v4119, 0.014752088
        %v4121 = vmul.f32 %v4105, %v4120
        %v4122 = vadd.f32 %v4121, 0.112945676
        %v4123 = vmul.f32 %v4105, %v4122
        %v4124 = vadd.f32 %v4123, 0.4994258
        %v4125 = vmul.f32 %v4105, %v4124
        %v4126 = vadd.f32 %v4125, 1.0
        %v4127 = vrcp.pop %v4126
        %v4128 = vmul.f32 %v4126, %v4127
        %v4129 = vsub.f32 1.0, %v4128
        %v4130 = vmul.f32 %v4127, %v4129
        %v4131 = vadd.f32 %v4127, %v4130
        %vm4132 = vweird.f32 %v4126
        %vm4133 = vweird.f32 %v4127
        %vm4134 = vmor %vm4132, %vm4133
        %v4135 = vsel %vm4134, %v4127, %v4131
        %v4136 = vand.u32 2147483647, %v4126
        %vm4137 = vcmp.eq.f32.partialorder %v4136, 8.507059e+37
        %v4138 = vand.u32 %v4126, 2147483648
        %v4139 = vor.u32 1.1754944e-38, %v4138
        %v4140 = vsel %vm4137, %v4139, %v4135
        %v4141 = vmul.f32 %v4116, %v4140
        %v4142 = vmin.f32 %v4141, 1.0
        %v4143 = vmax.f32 %v4142, -1.0
        %v4144 = vmul.f32 %v3956, %v3956
        %v4145 = vmin.f32 16.0, %v4144
        %v4146 = vmul.f32 %v4145, 2.1237322e-06
        %v4147 = vadd.f32 %v4146, 0.00028619796
        %v4148 = vmul.f32 %v4145, %v4147
        %v4149 = vadd.f32 %v4148, 0.0036580483
        %v4150 = vmul.f32 %v4145, %v4149
        %v4151 = vadd.f32 %v4150, 0.05243302
        %v4152 = vmul.f32 %v4145, %v4151
        %v4153 = vadd.f32 %v4152, 0.18741608
        %v4154 = vmul.f32 %v4145, %v4153
        %v4155 = vadd.f32 %v4154, 1.1283791
        %v4156 = vmul.f32 %v3956, %v4155
        %v4157 = vmul.f32 %v4145, 3.8918573e-05
        %v4158 = vadd.f32 %v4157, 0.001143296
        %v4159 = vmul.f32 %v4145, %v4158
        %v4160 = vadd.f32 %v4159, 0.014752088
        %v4161 = vmul.f32 %v4145, %v4160
        %v4162 = vadd.f32 %v4161, 0.112945676
        %v4163 = vmul.f32 %v4145, %v4162
        %v4164 = vadd.f32 %v4163, 0.4994258
        %v4165 = vmul.f32 %v4145, %v4164
        %v4166 = vadd.f32 %v4165, 1.0
        %v4167 = vrcp.pop %v4166
        %v4168 = vmul.f32 %v4166, %v4167
        %v4169 = vsub.f32 1.0, %v4168
        %v4170 = vmul.f32 %v4167, %v4169
        %v4171 = vadd.f32 %v4167, %v4170
        %vm4172 = vweird.f32 %v4166
        %vm4173 = vweird.f32 %v4167
        %vm4174 = vmor %vm4172, %vm4173
        %v4175 = vsel %vm4174, %v4167, %v4171
        %v4176 = vand.u32 2147483647, %v4166
        %vm4177 = vcmp.eq.f32.partialorder %v4176, 8.507059e+37
        %v4178 = vand.u32 %v4166, 2147483648
        %v4179 = vor.u32 1.1754944e-38, %v4178
        %v4180 = vsel %vm4177, %v4179, %v4175
        %v4181 = vmul.f32 %v4156, %v4180
        %v4182 = vmin.f32 %v4181, 1.0
        %v4183 = vmax.f32 %v4182, -1.0
        %v4184 = vmul.f32 %v3957, %v3957
        %v4185 = vmin.f32 16.0, %v4184
        %v4186 = vmul.f32 %v4185, 2.1237322e-06
        %v4187 = vadd.f32 %v4186, 0.00028619796
        %v4188 = vmul.f32 %v4185, %v4187
        %v4189 = vadd.f32 %v4188, 0.0036580483
        %v4190 = vmul.f32 %v4185, %v4189
        %v4191 = vadd.f32 %v4190, 0.05243302
        %v4192 = vmul.f32 %v4185, %v4191
        %v4193 = vadd.f32 %v4192, 0.18741608
        %v4194 = vmul.f32 %v4185, %v4193
        %v4195 = vadd.f32 %v4194, 1.1283791
        %v4196 = vmul.f32 %v3957, %v4195
        %v4197 = vmul.f32 %v4185, 3.8918573e-05
        %v4198 = vadd.f32 %v4197, 0.001143296
        %v4199 = vmul.f32 %v4185, %v4198
        %v4200 = vadd.f32 %v4199, 0.014752088
        %v4201 = vmul.f32 %v4185, %v4200
        %v4202 = vadd.f32 %v4201, 0.112945676
        %v4203 = vmul.f32 %v4185, %v4202
        %v4204 = vadd.f32 %v4203, 0.4994258
        %v4205 = vmul.f32 %v4185, %v4204
        %v4206 = vadd.f32 %v4205, 1.0
        %v4207 = vrcp.pop %v4206
        %v4208 = vmul.f32 %v4206, %v4207
        %v4209 = vsub.f32 1.0, %v4208
        %v4210 = vmul.f32 %v4207, %v4209
        %v4211 = vadd.f32 %v4207, %v4210
        %vm4212 = vweird.f32 %v4206
        %vm4213 = vweird.f32 %v4207
        %vm4214 = vmor %vm4212, %vm4213
        %v4215 = vsel %vm4214, %v4207, %v4211
        %v4216 = vand.u32 2147483647, %v4206
        %vm4217 = vcmp.eq.f32.partialorder %v4216, 8.507059e+37
        %v4218 = vand.u32 %v4206, 2147483648
        %v4219 = vor.u32 1.1754944e-38, %v4218
        %v4220 = vsel %vm4217, %v4219, %v4215
        %v4221 = vmul.f32 %v4196, %v4220
        %v4222 = vmin.f32 %v4221, 1.0
        %v4223 = vmax.f32 %v4222, -1.0
        %v4224 = vmul.f32 %v3958, %v3958
        %v4225 = vmin.f32 16.0, %v4224
        %v4226 = vmul.f32 %v4225, 2.1237322e-06
        %v4227 = vadd.f32 %v4226, 0.00028619796
        %v4228 = vmul.f32 %v4225, %v4227
        %v4229 = vadd.f32 %v4228, 0.0036580483
        %v4230 = vmul.f32 %v4225, %v4229
        %v4231 = vadd.f32 %v4230, 0.05243302
        %v4232 = vmul.f32 %v4225, %v4231
        %v4233 = vadd.f32 %v4232, 0.18741608
        %v4234 = vmul.f32 %v4225, %v4233
        %v4235 = vadd.f32 %v4234, 1.1283791
        %v4236 = vmul.f32 %v3958, %v4235
        %v4237 = vmul.f32 %v4225, 3.8918573e-05
        %v4238 = vadd.f32 %v4237, 0.001143296
        %v4239 = vmul.f32 %v4225, %v4238
        %v4240 = vadd.f32 %v4239, 0.014752088
        %v4241 = vmul.f32 %v4225, %v4240
        %v4242 = vadd.f32 %v4241, 0.112945676
        %v4243 = vmul.f32 %v4225, %v4242
        %v4244 = vadd.f32 %v4243, 0.4994258
        %v4245 = vmul.f32 %v4225, %v4244
        %v4246 = vadd.f32 %v4245, 1.0
        %v4247 = vrcp.pop %v4246
        %v4248 = vmul.f32 %v4246, %v4247
        %v4249 = vsub.f32 1.0, %v4248
        %v4250 = vmul.f32 %v4247, %v4249
        %v4251 = vadd.f32 %v4247, %v4250
        %vm4252 = vweird.f32 %v4246
        %vm4253 = vweird.f32 %v4247
        %vm4254 = vmor %vm4252, %vm4253
        %v4255 = vsel %vm4254, %v4247, %v4251
        %v4256 = vand.u32 2147483647, %v4246
        %vm4257 = vcmp.eq.f32.partialorder %v4256, 8.507059e+37
        %v4258 = vand.u32 %v4246, 2147483648
        %v4259 = vor.u32 1.1754944e-38, %v4258
        %v4260 = vsel %vm4257, %v4259, %v4255
        %v4261 = vmul.f32 %v4236, %v4260
        %v4262 = vmin.f32 %v4261, 1.0
        %v4263 = vmax.f32 %v4262, -1.0
        %v4264 = vmul.f32 %v3959, %v3959
        %v4265 = vmin.f32 16.0, %v4264
        %v4266 = vmul.f32 %v4265, 2.1237322e-06
        %v4267 = vadd.f32 %v4266, 0.00028619796
        %v4268 = vmul.f32 %v4265, %v4267
        %v4269 = vadd.f32 %v4268, 0.0036580483
        %v4270 = vmul.f32 %v4265, %v4269
        %v4271 = vadd.f32 %v4270, 0.05243302
        %v4272 = vmul.f32 %v4265, %v4271
        %v4273 = vadd.f32 %v4272, 0.18741608
        %v4274 = vmul.f32 %v4265, %v4273
        %v4275 = vadd.f32 %v4274, 1.1283791
        %v4276 = vmul.f32 %v3959, %v4275
        %v4277 = vmul.f32 %v4265, 3.8918573e-05
        %v4278 = vadd.f32 %v4277, 0.001143296
        %v4279 = vmul.f32 %v4265, %v4278
        %v4280 = vadd.f32 %v4279, 0.014752088
        %v4281 = vmul.f32 %v4265, %v4280
        %v4282 = vadd.f32 %v4281, 0.112945676
        %v4283 = vmul.f32 %v4265, %v4282
        %v4284 = vadd.f32 %v4283, 0.4994258
        %v4285 = vmul.f32 %v4265, %v4284
        %v4286 = vadd.f32 %v4285, 1.0
        %v4287 = vrcp.pop %v4286
        %v4288 = vmul.f32 %v4286, %v4287
        %v4289 = vsub.f32 1.0, %v4288
        %v4290 = vmul.f32 %v4287, %v4289
        %v4291 = vadd.f32 %v4287, %v4290
        %vm4292 = vweird.f32 %v4286
        %vm4293 = vweird.f32 %v4287
        %vm4294 = vmor %vm4292, %vm4293
        %v4295 = vsel %vm4294, %v4287, %v4291
        %v4296 = vand.u32 2147483647, %v4286
        %vm4297 = vcmp.eq.f32.partialorder %v4296, 8.507059e+37
        %v4298 = vand.u32 %v4286, 2147483648
        %v4299 = vor.u32 1.1754944e-38, %v4298
        %v4300 = vsel %vm4297, %v4299, %v4295
        %v4301 = vmul.f32 %v4276, %v4300
        %v4302 = vmin.f32 %v4301, 1.0
        %v4303 = vmax.f32 %v4302, -1.0
        %v4304 = vmul.f32 %v3960, %v3960
        %v4305 = vmin.f32 16.0, %v4304
        %v4306 = vmul.f32 %v4305, 2.1237322e-06
        %v4307 = vadd.f32 %v4306, 0.00028619796
        %v4308 = vmul.f32 %v4305, %v4307
        %v4309 = vadd.f32 %v4308, 0.0036580483
        %v4310 = vmul.f32 %v4305, %v4309
        %v4311 = vadd.f32 %v4310, 0.05243302
        %v4312 = vmul.f32 %v4305, %v4311
        %v4313 = vadd.f32 %v4312, 0.18741608
        %v4314 = vmul.f32 %v4305, %v4313
        %v4315 = vadd.f32 %v4314, 1.1283791
        %v4316 = vmul.f32 %v3960, %v4315
        %v4317 = vmul.f32 %v4305, 3.8918573e-05
        %v4318 = vadd.f32 %v4317, 0.001143296
        %v4319 = vmul.f32 %v4305, %v4318
        %v4320 = vadd.f32 %v4319, 0.014752088
        %v4321 = vmul.f32 %v4305, %v4320
        %v4322 = vadd.f32 %v4321, 0.112945676
        %v4323 = vmul.f32 %v4305, %v4322
        %v4324 = vadd.f32 %v4323, 0.4994258
        %v4325 = vmul.f32 %v4305, %v4324
        %v4326 = vadd.f32 %v4325, 1.0
        %v4327 = vrcp.pop %v4326
        %v4328 = vmul.f32 %v4326, %v4327
        %v4329 = vsub.f32 1.0, %v4328
        %v4330 = vmul.f32 %v4327, %v4329
        %v4331 = vadd.f32 %v4327, %v4330
        %vm4332 = vweird.f32 %v4326
        %vm4333 = vweird.f32 %v4327
        %vm4334 = vmor %vm4332, %vm4333
        %v4335 = vsel %vm4334, %v4327, %v4331
        %v4336 = vand.u32 2147483647, %v4326
        %vm4337 = vcmp.eq.f32.partialorder %v4336, 8.507059e+37
        %v4338 = vand.u32 %v4326, 2147483648
        %v4339 = vor.u32 1.1754944e-38, %v4338
        %v4340 = vsel %vm4337, %v4339, %v4335
        %v4341 = vmul.f32 %v4316, %v4340
        %v4342 = vmin.f32 %v4341, 1.0
        %v4343 = vmax.f32 %v4342, -1.0
        %v4344 = vmul.f32 %v3961, %v3961
        %v4345 = vmin.f32 16.0, %v4344
        %v4346 = vmul.f32 %v4345, 2.1237322e-06
        %v4347 = vadd.f32 %v4346, 0.00028619796
        %v4348 = vmul.f32 %v4345, %v4347
        %v4349 = vadd.f32 %v4348, 0.0036580483
        %v4350 = vmul.f32 %v4345, %v4349
        %v4351 = vadd.f32 %v4350, 0.05243302
        %v4352 = vmul.f32 %v4345, %v4351
        %v4353 = vadd.f32 %v4352, 0.18741608
        %v4354 = vmul.f32 %v4345, %v4353
        %v4355 = vadd.f32 %v4354, 1.1283791
        %v4356 = vmul.f32 %v3961, %v4355
        %v4357 = vmul.f32 %v4345, 3.8918573e-05
        %v4358 = vadd.f32 %v4357, 0.001143296
        %v4359 = vmul.f32 %v4345, %v4358
        %v4360 = vadd.f32 %v4359, 0.014752088
        %v4361 = vmul.f32 %v4345, %v4360
        %v4362 = vadd.f32 %v4361, 0.112945676
        %v4363 = vmul.f32 %v4345, %v4362
        %v4364 = vadd.f32 %v4363, 0.4994258
        %v4365 = vmul.f32 %v4345, %v4364
        %v4366 = vadd.f32 %v4365, 1.0
        %v4367 = vrcp.pop %v4366
        %v4368 = vmul.f32 %v4366, %v4367
        %v4369 = vsub.f32 1.0, %v4368
        %v4370 = vmul.f32 %v4367, %v4369
        %v4371 = vadd.f32 %v4367, %v4370
        %vm4372 = vweird.f32 %v4366
        %vm4373 = vweird.f32 %v4367
        %vm4374 = vmor %vm4372, %vm4373
        %v4375 = vsel %vm4374, %v4367, %v4371
        %v4376 = vand.u32 2147483647, %v4366
        %vm4377 = vcmp.eq.f32.partialorder %v4376, 8.507059e+37
        %v4378 = vand.u32 %v4366, 2147483648
        %v4379 = vor.u32 1.1754944e-38, %v4378
        %v4380 = vsel %vm4377, %v4379, %v4375
        %v4381 = vmul.f32 %v4356, %v4380
        %v4382 = vmin.f32 %v4381, 1.0
        %v4383 = vmax.f32 %v4382, -1.0
        %v4384 = vmul.f32 %v3962, %v3962
        %v4385 = vmin.f32 16.0, %v4384
        %v4386 = vmul.f32 %v4385, 2.1237322e-06
        %v4387 = vadd.f32 %v4386, 0.00028619796
        %v4388 = vmul.f32 %v4385, %v4387
        %v4389 = vadd.f32 %v4388, 0.0036580483
        %v4390 = vmul.f32 %v4385, %v4389
        %v4391 = vadd.f32 %v4390, 0.05243302
        %v4392 = vmul.f32 %v4385, %v4391
        %v4393 = vadd.f32 %v4392, 0.18741608
        %v4394 = vmul.f32 %v4385, %v4393
        %v4395 = vadd.f32 %v4394, 1.1283791
        %v4396 = vmul.f32 %v3962, %v4395
        %v4397 = vmul.f32 %v4385, 3.8918573e-05
        %v4398 = vadd.f32 %v4397, 0.001143296
        %v4399 = vmul.f32 %v4385, %v4398
        %v4400 = vadd.f32 %v4399, 0.014752088
        %v4401 = vmul.f32 %v4385, %v4400
        %v4402 = vadd.f32 %v4401, 0.112945676
        %v4403 = vmul.f32 %v4385, %v4402
        %v4404 = vadd.f32 %v4403, 0.4994258
        %v4405 = vmul.f32 %v4385, %v4404
        %v4406 = vadd.f32 %v4405, 1.0
        %v4407 = vrcp.pop %v4406
        %v4408 = vmul.f32 %v4406, %v4407
        %v4409 = vsub.f32 1.0, %v4408
        %v4410 = vmul.f32 %v4407, %v4409
        %v4411 = vadd.f32 %v4407, %v4410
        %vm4412 = vweird.f32 %v4406
        %vm4413 = vweird.f32 %v4407
        %vm4414 = vmor %vm4412, %vm4413
        %v4415 = vsel %vm4414, %v4407, %v4411
        %v4416 = vand.u32 2147483647, %v4406
        %vm4417 = vcmp.eq.f32.partialorder %v4416, 8.507059e+37
        %v4418 = vand.u32 %v4406, 2147483648
        %v4419 = vor.u32 1.1754944e-38, %v4418
        %v4420 = vsel %vm4417, %v4419, %v4415
        %v4421 = vmul.f32 %v4396, %v4420
        %v4422 = vmin.f32 %v4421, 1.0
        %v4423 = vmax.f32 %v4422, -1.0
        %v4424 = vmul.f32 %v3963, %v3963
        %v4425 = vmin.f32 16.0, %v4424
        %v4426 = vmul.f32 %v4425, 2.1237322e-06
        %v4427 = vadd.f32 %v4426, 0.00028619796
        %v4428 = vmul.f32 %v4425, %v4427
        %v4429 = vadd.f32 %v4428, 0.0036580483
        %v4430 = vmul.f32 %v4425, %v4429
        %v4431 = vadd.f32 %v4430, 0.05243302
        %v4432 = vmul.f32 %v4425, %v4431
        %v4433 = vadd.f32 %v4432, 0.18741608
        %v4434 = vmul.f32 %v4425, %v4433
        %v4435 = vadd.f32 %v4434, 1.1283791
        %v4436 = vmul.f32 %v3963, %v4435
        %v4437 = vmul.f32 %v4425, 3.8918573e-05
        %v4438 = vadd.f32 %v4437, 0.001143296
        %v4439 = vmul.f32 %v4425, %v4438
        %v4440 = vadd.f32 %v4439, 0.014752088
        %v4441 = vmul.f32 %v4425, %v4440
        %v4442 = vadd.f32 %v4441, 0.112945676
        %v4443 = vmul.f32 %v4425, %v4442
        %v4444 = vadd.f32 %v4443, 0.4994258
        %v4445 = vmul.f32 %v4425, %v4444
        %v4446 = vadd.f32 %v4445, 1.0
        %v4447 = vrcp.pop %v4446
        %v4448 = vmul.f32 %v4446, %v4447
        %v4449 = vsub.f32 1.0, %v4448
        %v4450 = vmul.f32 %v4447, %v4449
        %v4451 = vadd.f32 %v4447, %v4450
        %vm4452 = vweird.f32 %v4446
        %vm4453 = vweird.f32 %v4447
        %vm4454 = vmor %vm4452, %vm4453
        %v4455 = vsel %vm4454, %v4447, %v4451
        %v4456 = vand.u32 2147483647, %v4446
        %vm4457 = vcmp.eq.f32.partialorder %v4456, 8.507059e+37
        %v4458 = vand.u32 %v4446, 2147483648
        %v4459 = vor.u32 1.1754944e-38, %v4458
        %v4460 = vsel %vm4457, %v4459, %v4455
        %v4461 = vmul.f32 %v4436, %v4460
        %v4462 = vmin.f32 %v4461, 1.0
        %v4463 = vmax.f32 %v4462, -1.0
        %v4464 = vmul.f32 %v3964, %v3964
        %v4465 = vmin.f32 16.0, %v4464
        %v4466 = vmul.f32 %v4465, 2.1237322e-06
        %v4467 = vadd.f32 %v4466, 0.00028619796
        %v4468 = vmul.f32 %v4465, %v4467
        %v4469 = vadd.f32 %v4468, 0.0036580483
        %v4470 = vmul.f32 %v4465, %v4469
        %v4471 = vadd.f32 %v4470, 0.05243302
        %v4472 = vmul.f32 %v4465, %v4471
        %v4473 = vadd.f32 %v4472, 0.18741608
        %v4474 = vmul.f32 %v4465, %v4473
        %v4475 = vadd.f32 %v4474, 1.1283791
        %v4476 = vmul.f32 %v3964, %v4475
        %v4477 = vmul.f32 %v4465, 3.8918573e-05
        %v4478 = vadd.f32 %v4477, 0.001143296
        %v4479 = vmul.f32 %v4465, %v4478
        %v4480 = vadd.f32 %v4479, 0.014752088
        %v4481 = vmul.f32 %v4465, %v4480
        %v4482 = vadd.f32 %v4481, 0.112945676
        %v4483 = vmul.f32 %v4465, %v4482
        %v4484 = vadd.f32 %v4483, 0.4994258
        %v4485 = vmul.f32 %v4465, %v4484
        %v4486 = vadd.f32 %v4485, 1.0
        %v4487 = vrcp.pop %v4486
        %v4488 = vmul.f32 %v4486, %v4487
        %v4489 = vsub.f32 1.0, %v4488
        %v4490 = vmul.f32 %v4487, %v4489
        %v4491 = vadd.f32 %v4487, %v4490
        %vm4492 = vweird.f32 %v4486
        %vm4493 = vweird.f32 %v4487
        %vm4494 = vmor %vm4492, %vm4493
        %v4495 = vsel %vm4494, %v4487, %v4491
        %v4496 = vand.u32 2147483647, %v4486
        %vm4497 = vcmp.eq.f32.partialorder %v4496, 8.507059e+37
        %v4498 = vand.u32 %v4486, 2147483648
        %v4499 = vor.u32 1.1754944e-38, %v4498
        %v4500 = vsel %vm4497, %v4499, %v4495
        %v4501 = vmul.f32 %v4476, %v4500
        %v4502 = vmin.f32 %v4501, 1.0
        %v4503 = vmax.f32 %v4502, -1.0
        %v4504 = vmul.f32 %v3965, %v3965
        %v4505 = vmin.f32 16.0, %v4504
        %v4506 = vmul.f32 %v4505, 2.1237322e-06
        %v4507 = vadd.f32 %v4506, 0.00028619796
        %v4508 = vmul.f32 %v4505, %v4507
        %v4509 = vadd.f32 %v4508, 0.0036580483
        %v4510 = vmul.f32 %v4505, %v4509
        %v4511 = vadd.f32 %v4510, 0.05243302
        %v4512 = vmul.f32 %v4505, %v4511
        %v4513 = vadd.f32 %v4512, 0.18741608
        %v4514 = vmul.f32 %v4505, %v4513
        %v4515 = vadd.f32 %v4514, 1.1283791
        %v4516 = vmul.f32 %v3965, %v4515
        %v4517 = vmul.f32 %v4505, 3.8918573e-05
        %v4518 = vadd.f32 %v4517, 0.001143296
        %v4519 = vmul.f32 %v4505, %v4518
        %v4520 = vadd.f32 %v4519, 0.014752088
        %v4521 = vmul.f32 %v4505, %v4520
        %v4522 = vadd.f32 %v4521, 0.112945676
        %v4523 = vmul.f32 %v4505, %v4522
        %v4524 = vadd.f32 %v4523, 0.4994258
        %v4525 = vmul.f32 %v4505, %v4524
        %v4526 = vadd.f32 %v4525, 1.0
        %v4527 = vrcp.pop %v4526
        %v4528 = vmul.f32 %v4526, %v4527
        %v4529 = vsub.f32 1.0, %v4528
        %v4530 = vmul.f32 %v4527, %v4529
        %v4531 = vadd.f32 %v4527, %v4530
        %vm4532 = vweird.f32 %v4526
        %vm4533 = vweird.f32 %v4527
        %vm4534 = vmor %vm4532, %vm4533
        %v4535 = vsel %vm4534, %v4527, %v4531
        %v4536 = vand.u32 2147483647, %v4526
        %vm4537 = vcmp.eq.f32.partialorder %v4536, 8.507059e+37
        %v4538 = vand.u32 %v4526, 2147483648
        %v4539 = vor.u32 1.1754944e-38, %v4538
        %v4540 = vsel %vm4537, %v4539, %v4535
        %v4541 = vmul.f32 %v4516, %v4540
        %v4542 = vmin.f32 %v4541, 1.0
        %v4543 = vmax.f32 %v4542, -1.0
        %v4544 = vmul.f32 %v3966, %v3966
        %v4545 = vmin.f32 16.0, %v4544
        %v4546 = vmul.f32 %v4545, 2.1237322e-06
        %v4547 = vadd.f32 %v4546, 0.00028619796
        %v4548 = vmul.f32 %v4545, %v4547
        %v4549 = vadd.f32 %v4548, 0.0036580483
        %v4550 = vmul.f32 %v4545, %v4549
        %v4551 = vadd.f32 %v4550, 0.05243302
        %v4552 = vmul.f32 %v4545, %v4551
        %v4553 = vadd.f32 %v4552, 0.18741608
        %v4554 = vmul.f32 %v4545, %v4553
        %v4555 = vadd.f32 %v4554, 1.1283791
        %v4556 = vmul.f32 %v3966, %v4555
        %v4557 = vmul.f32 %v4545, 3.8918573e-05
        %v4558 = vadd.f32 %v4557, 0.001143296
        %v4559 = vmul.f32 %v4545, %v4558
        %v4560 = vadd.f32 %v4559, 0.014752088
        %v4561 = vmul.f32 %v4545, %v4560
        %v4562 = vadd.f32 %v4561, 0.112945676
        %v4563 = vmul.f32 %v4545, %v4562
        %v4564 = vadd.f32 %v4563, 0.4994258
        %v4565 = vmul.f32 %v4545, %v4564
        %v4566 = vadd.f32 %v4565, 1.0
        %v4567 = vrcp.pop %v4566
        %v4568 = vmul.f32 %v4566, %v4567
        %v4569 = vsub.f32 1.0, %v4568
        %v4570 = vmul.f32 %v4567, %v4569
        %v4571 = vadd.f32 %v4567, %v4570
        %vm4572 = vweird.f32 %v4566
        %vm4573 = vweird.f32 %v4567
        %vm4574 = vmor %vm4572, %vm4573
        %v4575 = vsel %vm4574, %v4567, %v4571
        %v4576 = vand.u32 2147483647, %v4566
        %vm4577 = vcmp.eq.f32.partialorder %v4576, 8.507059e+37
        %v4578 = vand.u32 %v4566, 2147483648
        %v4579 = vor.u32 1.1754944e-38, %v4578
        %v4580 = vsel %vm4577, %v4579, %v4575
        %v4581 = vmul.f32 %v4556, %v4580
        %v4582 = vmin.f32 %v4581, 1.0
        %v4583 = vmax.f32 %v4582, -1.0
        %v4584 = vmul.f32 %v3967, %v3967
        %v4585 = vmin.f32 16.0, %v4584
        %v4586 = vmul.f32 %v4585, 2.1237322e-06
        %v4587 = vadd.f32 %v4586, 0.00028619796
        %v4588 = vmul.f32 %v4585, %v4587
        %v4589 = vadd.f32 %v4588, 0.0036580483
        %v4590 = vmul.f32 %v4585, %v4589
        %v4591 = vadd.f32 %v4590, 0.05243302
        %v4592 = vmul.f32 %v4585, %v4591
        %v4593 = vadd.f32 %v4592, 0.18741608
        %v4594 = vmul.f32 %v4585, %v4593
        %v4595 = vadd.f32 %v4594, 1.1283791
        %v4596 = vmul.f32 %v3967, %v4595
        %v4597 = vmul.f32 %v4585, 3.8918573e-05
        %v4598 = vadd.f32 %v4597, 0.001143296
        %v4599 = vmul.f32 %v4585, %v4598
        %v4600 = vadd.f32 %v4599, 0.014752088
        %v4601 = vmul.f32 %v4585, %v4600
        %v4602 = vadd.f32 %v4601, 0.112945676
        %v4603 = vmul.f32 %v4585, %v4602
        %v4604 = vadd.f32 %v4603, 0.4994258
        %v4605 = vmul.f32 %v4585, %v4604
        %v4606 = vadd.f32 %v4605, 1.0
        %v4607 = vrcp.pop %v4606
        %v4608 = vmul.f32 %v4606, %v4607
        %v4609 = vsub.f32 1.0, %v4608
        %v4610 = vmul.f32 %v4607, %v4609
        %v4611 = vadd.f32 %v4607, %v4610
        %vm4612 = vweird.f32 %v4606
        %vm4613 = vweird.f32 %v4607
        %vm4614 = vmor %vm4612, %vm4613
        %v4615 = vsel %vm4614, %v4607, %v4611
        %v4616 = vand.u32 2147483647, %v4606
        %vm4617 = vcmp.eq.f32.partialorder %v4616, 8.507059e+37
        %v4618 = vand.u32 %v4606, 2147483648
        %v4619 = vor.u32 1.1754944e-38, %v4618
        %v4620 = vsel %vm4617, %v4619, %v4615
        %v4621 = vmul.f32 %v4596, %v4620
        %v4622 = vmin.f32 %v4621, 1.0
        %v4623 = vmax.f32 %v4622, -1.0
        %v4624 = vmul.f32 %v3968, %v3968
        %v4625 = vmin.f32 16.0, %v4624
        %v4626 = vmul.f32 %v4625, 2.1237322e-06
        %v4627 = vadd.f32 %v4626, 0.00028619796
        %v4628 = vmul.f32 %v4625, %v4627
        %v4629 = vadd.f32 %v4628, 0.0036580483
        %v4630 = vmul.f32 %v4625, %v4629
        %v4631 = vadd.f32 %v4630, 0.05243302
        %v4632 = vmul.f32 %v4625, %v4631
        %v4633 = vadd.f32 %v4632, 0.18741608
        %v4634 = vmul.f32 %v4625, %v4633
        %v4635 = vadd.f32 %v4634, 1.1283791
        %v4636 = vmul.f32 %v3968, %v4635
        %v4637 = vmul.f32 %v4625, 3.8918573e-05
        %v4638 = vadd.f32 %v4637, 0.001143296
        %v4639 = vmul.f32 %v4625, %v4638
        %v4640 = vadd.f32 %v4639, 0.014752088
        %v4641 = vmul.f32 %v4625, %v4640
        %v4642 = vadd.f32 %v4641, 0.112945676
        %v4643 = vmul.f32 %v4625, %v4642
        %v4644 = vadd.f32 %v4643, 0.4994258
        %v4645 = vmul.f32 %v4625, %v4644
        %v4646 = vadd.f32 %v4645, 1.0
        %v4647 = vrcp.pop %v4646
        %v4648 = vmul.f32 %v4646, %v4647
        %v4649 = vsub.f32 1.0, %v4648
        %v4650 = vmul.f32 %v4647, %v4649
        %v4651 = vadd.f32 %v4647, %v4650
        %vm4652 = vweird.f32 %v4646
        %vm4653 = vweird.f32 %v4647
        %vm4654 = vmor %vm4652, %vm4653
        %v4655 = vsel %vm4654, %v4647, %v4651
        %v4656 = vand.u32 2147483647, %v4646
        %vm4657 = vcmp.eq.f32.partialorder %v4656, 8.507059e+37
        %v4658 = vand.u32 %v4646, 2147483648
        %v4659 = vor.u32 1.1754944e-38, %v4658
        %v4660 = vsel %vm4657, %v4659, %v4655
        %v4661 = vmul.f32 %v4636, %v4660
        %v4662 = vmin.f32 %v4661, 1.0
        %v4663 = vmax.f32 %v4662, -1.0
        %v4664 = vmul.f32 %v3969, %v3969
        %v4665 = vmin.f32 16.0, %v4664
        %v4666 = vmul.f32 %v4665, 2.1237322e-06
        %v4667 = vadd.f32 %v4666, 0.00028619796
        %v4668 = vmul.f32 %v4665, %v4667
        %v4669 = vadd.f32 %v4668, 0.0036580483
        %v4670 = vmul.f32 %v4665, %v4669
        %v4671 = vadd.f32 %v4670, 0.05243302
        %v4672 = vmul.f32 %v4665, %v4671
        %v4673 = vadd.f32 %v4672, 0.18741608
        %v4674 = vmul.f32 %v4665, %v4673
        %v4675 = vadd.f32 %v4674, 1.1283791
        %v4676 = vmul.f32 %v3969, %v4675
        %v4677 = vmul.f32 %v4665, 3.8918573e-05
        %v4678 = vadd.f32 %v4677, 0.001143296
        %v4679 = vmul.f32 %v4665, %v4678
        %v4680 = vadd.f32 %v4679, 0.014752088
        %v4681 = vmul.f32 %v4665, %v4680
        %v4682 = vadd.f32 %v4681, 0.112945676
        %v4683 = vmul.f32 %v4665, %v4682
        %v4684 = vadd.f32 %v4683, 0.4994258
        %v4685 = vmul.f32 %v4665, %v4684
        %v4686 = vadd.f32 %v4685, 1.0
        %v4687 = vrcp.pop %v4686
        %v4688 = vmul.f32 %v4686, %v4687
        %v4689 = vsub.f32 1.0, %v4688
        %v4690 = vmul.f32 %v4687, %v4689
        %v4691 = vadd.f32 %v4687, %v4690
        %vm4692 = vweird.f32 %v4686
        %vm4693 = vweird.f32 %v4687
        %vm4694 = vmor %vm4692, %vm4693
        %v4695 = vsel %vm4694, %v4687, %v4691
        %v4696 = vand.u32 2147483647, %v4686
        %vm4697 = vcmp.eq.f32.partialorder %v4696, 8.507059e+37
        %v4698 = vand.u32 %v4686, 2147483648
        %v4699 = vor.u32 1.1754944e-38, %v4698
        %v4700 = vsel %vm4697, %v4699, %v4695
        %v4701 = vmul.f32 %v4676, %v4700
        %v4702 = vmin.f32 %v4701, 1.0
        %v4703 = vmax.f32 %v4702, -1.0
        %v4704 = vmul.f32 %v3970, %v3970
        %v4705 = vmin.f32 16.0, %v4704
        %v4706 = vmul.f32 %v4705, 2.1237322e-06
        %v4707 = vadd.f32 %v4706, 0.00028619796
        %v4708 = vmul.f32 %v4705, %v4707
        %v4709 = vadd.f32 %v4708, 0.0036580483
        %v4710 = vmul.f32 %v4705, %v4709
        %v4711 = vadd.f32 %v4710, 0.05243302
        %v4712 = vmul.f32 %v4705, %v4711
        %v4713 = vadd.f32 %v4712, 0.18741608
        %v4714 = vmul.f32 %v4705, %v4713
        %v4715 = vadd.f32 %v4714, 1.1283791
        %v4716 = vmul.f32 %v3970, %v4715
        %v4717 = vmul.f32 %v4705, 3.8918573e-05
        %v4718 = vadd.f32 %v4717, 0.001143296
        %v4719 = vmul.f32 %v4705, %v4718
        %v4720 = vadd.f32 %v4719, 0.014752088
        %v4721 = vmul.f32 %v4705, %v4720
        %v4722 = vadd.f32 %v4721, 0.112945676
        %v4723 = vmul.f32 %v4705, %v4722
        %v4724 = vadd.f32 %v4723, 0.4994258
        %v4725 = vmul.f32 %v4705, %v4724
        %v4726 = vadd.f32 %v4725, 1.0
        %v4727 = vrcp.pop %v4726
        %v4728 = vmul.f32 %v4726, %v4727
        %v4729 = vsub.f32 1.0, %v4728
        %v4730 = vmul.f32 %v4727, %v4729
        %v4731 = vadd.f32 %v4727, %v4730
        %vm4732 = vweird.f32 %v4726
        %vm4733 = vweird.f32 %v4727
        %vm4734 = vmor %vm4732, %vm4733
        %v4735 = vsel %vm4734, %v4727, %v4731
        %v4736 = vand.u32 2147483647, %v4726
        %vm4737 = vcmp.eq.f32.partialorder %v4736, 8.507059e+37
        %v4738 = vand.u32 %v4726, 2147483648
        %v4739 = vor.u32 1.1754944e-38, %v4738
        %v4740 = vsel %vm4737, %v4739, %v4735
        %v4741 = vmul.f32 %v4716, %v4740
        %v4742 = vmin.f32 %v4741, 1.0
        %v4743 = vmax.f32 %v4742, -1.0
        %v4744 = vmul.f32 %v3971, %v3971
        %v4745 = vmin.f32 16.0, %v4744
        %v4746 = vmul.f32 %v4745, 2.1237322e-06
        %v4747 = vadd.f32 %v4746, 0.00028619796
        %v4748 = vmul.f32 %v4745, %v4747
        %v4749 = vadd.f32 %v4748, 0.0036580483
        %v4750 = vmul.f32 %v4745, %v4749
        %v4751 = vadd.f32 %v4750, 0.05243302
        %v4752 = vmul.f32 %v4745, %v4751
        %v4753 = vadd.f32 %v4752, 0.18741608
        %v4754 = vmul.f32 %v4745, %v4753
        %v4755 = vadd.f32 %v4754, 1.1283791
        %v4756 = vmul.f32 %v3971, %v4755
        %v4757 = vmul.f32 %v4745, 3.8918573e-05
        %v4758 = vadd.f32 %v4757, 0.001143296
        %v4759 = vmul.f32 %v4745, %v4758
        %v4760 = vadd.f32 %v4759, 0.014752088
        %v4761 = vmul.f32 %v4745, %v4760
        %v4762 = vadd.f32 %v4761, 0.112945676
        %v4763 = vmul.f32 %v4745, %v4762
        %v4764 = vadd.f32 %v4763, 0.4994258
        %v4765 = vmul.f32 %v4745, %v4764
        %v4766 = vadd.f32 %v4765, 1.0
        %v4767 = vrcp.pop %v4766
        %v4768 = vmul.f32 %v4766, %v4767
        %v4769 = vsub.f32 1.0, %v4768
        %v4770 = vmul.f32 %v4767, %v4769
        %v4771 = vadd.f32 %v4767, %v4770
        %vm4772 = vweird.f32 %v4766
        %vm4773 = vweird.f32 %v4767
        %vm4774 = vmor %vm4772, %vm4773
        %v4775 = vsel %vm4774, %v4767, %v4771
        %v4776 = vand.u32 2147483647, %v4766
        %vm4777 = vcmp.eq.f32.partialorder %v4776, 8.507059e+37
        %v4778 = vand.u32 %v4766, 2147483648
        %v4779 = vor.u32 1.1754944e-38, %v4778
        %v4780 = vsel %vm4777, %v4779, %v4775
        %v4781 = vmul.f32 %v4756, %v4780
        %v4782 = vmin.f32 %v4781, 1.0
        %v4783 = vmax.f32 %v4782, -1.0
        %v4784 = vmul.f32 %v3972, %v3972
        %v4785 = vmin.f32 16.0, %v4784
        %v4786 = vmul.f32 %v4785, 2.1237322e-06
        %v4787 = vadd.f32 %v4786, 0.00028619796
        %v4788 = vmul.f32 %v4785, %v4787
        %v4789 = vadd.f32 %v4788, 0.0036580483
        %v4790 = vmul.f32 %v4785, %v4789
        %v4791 = vadd.f32 %v4790, 0.05243302
        %v4792 = vmul.f32 %v4785, %v4791
        %v4793 = vadd.f32 %v4792, 0.18741608
        %v4794 = vmul.f32 %v4785, %v4793
        %v4795 = vadd.f32 %v4794, 1.1283791
        %v4796 = vmul.f32 %v3972, %v4795
        %v4797 = vmul.f32 %v4785, 3.8918573e-05
        %v4798 = vadd.f32 %v4797, 0.001143296
        %v4799 = vmul.f32 %v4785, %v4798
        %v4800 = vadd.f32 %v4799, 0.014752088
        %v4801 = vmul.f32 %v4785, %v4800
        %v4802 = vadd.f32 %v4801, 0.112945676
        %v4803 = vmul.f32 %v4785, %v4802
        %v4804 = vadd.f32 %v4803, 0.4994258
        %v4805 = vmul.f32 %v4785, %v4804
        %v4806 = vadd.f32 %v4805, 1.0
        %v4807 = vrcp.pop %v4806
        %v4808 = vmul.f32 %v4806, %v4807
        %v4809 = vsub.f32 1.0, %v4808
        %v4810 = vmul.f32 %v4807, %v4809
        %v4811 = vadd.f32 %v4807, %v4810
        %vm4812 = vweird.f32 %v4806
        %vm4813 = vweird.f32 %v4807
        %vm4814 = vmor %vm4812, %vm4813
        %v4815 = vsel %vm4814, %v4807, %v4811
        %v4816 = vand.u32 2147483647, %v4806
        %vm4817 = vcmp.eq.f32.partialorder %v4816, 8.507059e+37
        %v4818 = vand.u32 %v4806, 2147483648
        %v4819 = vor.u32 1.1754944e-38, %v4818
        %v4820 = vsel %vm4817, %v4819, %v4815
        %v4821 = vmul.f32 %v4796, %v4820
        %v4822 = vmin.f32 %v4821, 1.0
        %v4823 = vmax.f32 %v4822, -1.0
        %v4824 = vmul.f32 %v3973, %v3973
        %v4825 = vmin.f32 16.0, %v4824
        %v4826 = vmul.f32 %v4825, 2.1237322e-06
        %v4827 = vadd.f32 %v4826, 0.00028619796
        %v4828 = vmul.f32 %v4825, %v4827
        %v4829 = vadd.f32 %v4828, 0.0036580483
        %v4830 = vmul.f32 %v4825, %v4829
        %v4831 = vadd.f32 %v4830, 0.05243302
        %v4832 = vmul.f32 %v4825, %v4831
        %v4833 = vadd.f32 %v4832, 0.18741608
        %v4834 = vmul.f32 %v4825, %v4833
        %v4835 = vadd.f32 %v4834, 1.1283791
        %v4836 = vmul.f32 %v3973, %v4835
        %v4837 = vmul.f32 %v4825, 3.8918573e-05
        %v4838 = vadd.f32 %v4837, 0.001143296
        %v4839 = vmul.f32 %v4825, %v4838
        %v4840 = vadd.f32 %v4839, 0.014752088
        %v4841 = vmul.f32 %v4825, %v4840
        %v4842 = vadd.f32 %v4841, 0.112945676
        %v4843 = vmul.f32 %v4825, %v4842
        %v4844 = vadd.f32 %v4843, 0.4994258
        %v4845 = vmul.f32 %v4825, %v4844
        %v4846 = vadd.f32 %v4845, 1.0
        %v4847 = vrcp.pop %v4846
        %v4848 = vmul.f32 %v4846, %v4847
        %v4849 = vsub.f32 1.0, %v4848
        %v4850 = vmul.f32 %v4847, %v4849
        %v4851 = vadd.f32 %v4847, %v4850
        %vm4852 = vweird.f32 %v4846
        %vm4853 = vweird.f32 %v4847
        %vm4854 = vmor %vm4852, %vm4853
        %v4855 = vsel %vm4854, %v4847, %v4851
        %v4856 = vand.u32 2147483647, %v4846
        %vm4857 = vcmp.eq.f32.partialorder %v4856, 8.507059e+37
        %v4858 = vand.u32 %v4846, 2147483648
        %v4859 = vor.u32 1.1754944e-38, %v4858
        %v4860 = vsel %vm4857, %v4859, %v4855
        %v4861 = vmul.f32 %v4836, %v4860
        %v4862 = vmin.f32 %v4861, 1.0
        %v4863 = vmax.f32 %v4862, -1.0
        %v4864 = vmul.f32 %v3974, %v3974
        %v4865 = vmin.f32 16.0, %v4864
        %v4866 = vmul.f32 %v4865, 2.1237322e-06
        %v4867 = vadd.f32 %v4866, 0.00028619796
        %v4868 = vmul.f32 %v4865, %v4867
        %v4869 = vadd.f32 %v4868, 0.0036580483
        %v4870 = vmul.f32 %v4865, %v4869
        %v4871 = vadd.f32 %v4870, 0.05243302
        %v4872 = vmul.f32 %v4865, %v4871
        %v4873 = vadd.f32 %v4872, 0.18741608
        %v4874 = vmul.f32 %v4865, %v4873
        %v4875 = vadd.f32 %v4874, 1.1283791
        %v4876 = vmul.f32 %v3974, %v4875
        %v4877 = vmul.f32 %v4865, 3.8918573e-05
        %v4878 = vadd.f32 %v4877, 0.001143296
        %v4879 = vmul.f32 %v4865, %v4878
        %v4880 = vadd.f32 %v4879, 0.014752088
        %v4881 = vmul.f32 %v4865, %v4880
        %v4882 = vadd.f32 %v4881, 0.112945676
        %v4883 = vmul.f32 %v4865, %v4882
        %v4884 = vadd.f32 %v4883, 0.4994258
        %v4885 = vmul.f32 %v4865, %v4884
        %v4886 = vadd.f32 %v4885, 1.0
        %v4887 = vrcp.pop %v4886
        %v4888 = vmul.f32 %v4886, %v4887
        %v4889 = vsub.f32 1.0, %v4888
        %v4890 = vmul.f32 %v4887, %v4889
        %v4891 = vadd.f32 %v4887, %v4890
        %vm4892 = vweird.f32 %v4886
        %vm4893 = vweird.f32 %v4887
        %vm4894 = vmor %vm4892, %vm4893
        %v4895 = vsel %vm4894, %v4887, %v4891
        %v4896 = vand.u32 2147483647, %v4886
        %vm4897 = vcmp.eq.f32.partialorder %v4896, 8.507059e+37
        %v4898 = vand.u32 %v4886, 2147483648
        %v4899 = vor.u32 1.1754944e-38, %v4898
        %v4900 = vsel %vm4897, %v4899, %v4895
        %v4901 = vmul.f32 %v4876, %v4900
        %v4902 = vmin.f32 %v4901, 1.0
        %v4903 = vmax.f32 %v4902, -1.0
        %v4904 = vmul.f32 %v3975, %v3975
        %v4905 = vmin.f32 16.0, %v4904
        %v4906 = vmul.f32 %v4905, 2.1237322e-06
        %v4907 = vadd.f32 %v4906, 0.00028619796
        %v4908 = vmul.f32 %v4905, %v4907
        %v4909 = vadd.f32 %v4908, 0.0036580483
        %v4910 = vmul.f32 %v4905, %v4909
        %v4911 = vadd.f32 %v4910, 0.05243302
        %v4912 = vmul.f32 %v4905, %v4911
        %v4913 = vadd.f32 %v4912, 0.18741608
        %v4914 = vmul.f32 %v4905, %v4913
        %v4915 = vadd.f32 %v4914, 1.1283791
        %v4916 = vmul.f32 %v3975, %v4915
        %v4917 = vmul.f32 %v4905, 3.8918573e-05
        %v4918 = vadd.f32 %v4917, 0.001143296
        %v4919 = vmul.f32 %v4905, %v4918
        %v4920 = vadd.f32 %v4919, 0.014752088
        %v4921 = vmul.f32 %v4905, %v4920
        %v4922 = vadd.f32 %v4921, 0.112945676
        %v4923 = vmul.f32 %v4905, %v4922
        %v4924 = vadd.f32 %v4923, 0.4994258
        %v4925 = vmul.f32 %v4905, %v4924
        %v4926 = vadd.f32 %v4925, 1.0
        %v4927 = vrcp.pop %v4926
        %v4928 = vmul.f32 %v4926, %v4927
        %v4929 = vsub.f32 1.0, %v4928
        %v4930 = vmul.f32 %v4927, %v4929
        %v4931 = vadd.f32 %v4927, %v4930
        %vm4932 = vweird.f32 %v4926
        %vm4933 = vweird.f32 %v4927
        %vm4934 = vmor %vm4932, %vm4933
        %v4935 = vsel %vm4934, %v4927, %v4931
        %v4936 = vand.u32 2147483647, %v4926
        %vm4937 = vcmp.eq.f32.partialorder %v4936, 8.507059e+37
        %v4938 = vand.u32 %v4926, 2147483648
        %v4939 = vor.u32 1.1754944e-38, %v4938
        %v4940 = vsel %vm4937, %v4939, %v4935
        %v4941 = vmul.f32 %v4916, %v4940
        %v4942 = vmin.f32 %v4941, 1.0
        %v4943 = vmax.f32 %v4942, -1.0
        %v4944 = vmul.f32 %v3976, %v3976
        %v4945 = vmin.f32 16.0, %v4944
        %v4946 = vmul.f32 %v4945, 2.1237322e-06
        %v4947 = vadd.f32 %v4946, 0.00028619796
        %v4948 = vmul.f32 %v4945, %v4947
        %v4949 = vadd.f32 %v4948, 0.0036580483
        %v4950 = vmul.f32 %v4945, %v4949
        %v4951 = vadd.f32 %v4950, 0.05243302
        %v4952 = vmul.f32 %v4945, %v4951
        %v4953 = vadd.f32 %v4952, 0.18741608
        %v4954 = vmul.f32 %v4945, %v4953
        %v4955 = vadd.f32 %v4954, 1.1283791
        %v4956 = vmul.f32 %v3976, %v4955
        %v4957 = vmul.f32 %v4945, 3.8918573e-05
        %v4958 = vadd.f32 %v4957, 0.001143296
        %v4959 = vmul.f32 %v4945, %v4958
        %v4960 = vadd.f32 %v4959, 0.014752088
        %v4961 = vmul.f32 %v4945, %v4960
        %v4962 = vadd.f32 %v4961, 0.112945676
        %v4963 = vmul.f32 %v4945, %v4962
        %v4964 = vadd.f32 %v4963, 0.4994258
        %v4965 = vmul.f32 %v4945, %v4964
        %v4966 = vadd.f32 %v4965, 1.0
        %v4967 = vrcp.pop %v4966
        %v4968 = vmul.f32 %v4966, %v4967
        %v4969 = vsub.f32 1.0, %v4968
        %v4970 = vmul.f32 %v4967, %v4969
        %v4971 = vadd.f32 %v4967, %v4970
        %vm4972 = vweird.f32 %v4966
        %vm4973 = vweird.f32 %v4967
        %vm4974 = vmor %vm4972, %vm4973
        %v4975 = vsel %vm4974, %v4967, %v4971
        %v4976 = vand.u32 2147483647, %v4966
        %vm4977 = vcmp.eq.f32.partialorder %v4976, 8.507059e+37
        %v4978 = vand.u32 %v4966, 2147483648
        %v4979 = vor.u32 1.1754944e-38, %v4978
        %v4980 = vsel %vm4977, %v4979, %v4975
        %v4981 = vmul.f32 %v4956, %v4980
        %v4982 = vmin.f32 %v4981, 1.0
        %v4983 = vmax.f32 %v4982, -1.0
        %v4984 = vmul.f32 %v3977, %v3977
        %v4985 = vmin.f32 16.0, %v4984
        %v4986 = vmul.f32 %v4985, 2.1237322e-06
        %v4987 = vadd.f32 %v4986, 0.00028619796
        %v4988 = vmul.f32 %v4985, %v4987
        %v4989 = vadd.f32 %v4988, 0.0036580483
        %v4990 = vmul.f32 %v4985, %v4989
        %v4991 = vadd.f32 %v4990, 0.05243302
        %v4992 = vmul.f32 %v4985, %v4991
        %v4993 = vadd.f32 %v4992, 0.18741608
        %v4994 = vmul.f32 %v4985, %v4993
        %v4995 = vadd.f32 %v4994, 1.1283791
        %v4996 = vmul.f32 %v3977, %v4995
        %v4997 = vmul.f32 %v4985, 3.8918573e-05
        %v4998 = vadd.f32 %v4997, 0.001143296
        %v4999 = vmul.f32 %v4985, %v4998
        %v5000 = vadd.f32 %v4999, 0.014752088
        %v5001 = vmul.f32 %v4985, %v5000
        %v5002 = vadd.f32 %v5001, 0.112945676
        %v5003 = vmul.f32 %v4985, %v5002
        %v5004 = vadd.f32 %v5003, 0.4994258
        %v5005 = vmul.f32 %v4985, %v5004
        %v5006 = vadd.f32 %v5005, 1.0
        %v5007 = vrcp.pop %v5006
        %v5008 = vmul.f32 %v5006, %v5007
        %v5009 = vsub.f32 1.0, %v5008
        %v5010 = vmul.f32 %v5007, %v5009
        %v5011 = vadd.f32 %v5007, %v5010
        %vm5012 = vweird.f32 %v5006
        %vm5013 = vweird.f32 %v5007
        %vm5014 = vmor %vm5012, %vm5013
        %v5015 = vsel %vm5014, %v5007, %v5011
        %v5016 = vand.u32 2147483647, %v5006
        %vm5017 = vcmp.eq.f32.partialorder %v5016, 8.507059e+37
        %v5018 = vand.u32 %v5006, 2147483648
        %v5019 = vor.u32 1.1754944e-38, %v5018
        %v5020 = vsel %vm5017, %v5019, %v5015
        %v5021 = vmul.f32 %v4996, %v5020
        %v5022 = vmin.f32 %v5021, 1.0
        %v5023 = vmax.f32 %v5022, -1.0
        %v5024 = vmul.f32 %v3978, %v3978
        %v5025 = vmin.f32 16.0, %v5024
        %v5026 = vmul.f32 %v5025, 2.1237322e-06
        %v5027 = vadd.f32 %v5026, 0.00028619796
        %v5028 = vmul.f32 %v5025, %v5027
        %v5029 = vadd.f32 %v5028, 0.0036580483
        %v5030 = vmul.f32 %v5025, %v5029
        %v5031 = vadd.f32 %v5030, 0.05243302
        %v5032 = vmul.f32 %v5025, %v5031
        %v5033 = vadd.f32 %v5032, 0.18741608
        %v5034 = vmul.f32 %v5025, %v5033
        %v5035 = vadd.f32 %v5034, 1.1283791
        %v5036 = vmul.f32 %v3978, %v5035
        %v5037 = vmul.f32 %v5025, 3.8918573e-05
        %v5038 = vadd.f32 %v5037, 0.001143296
        %v5039 = vmul.f32 %v5025, %v5038
        %v5040 = vadd.f32 %v5039, 0.014752088
        %v5041 = vmul.f32 %v5025, %v5040
        %v5042 = vadd.f32 %v5041, 0.112945676
        %v5043 = vmul.f32 %v5025, %v5042
        %v5044 = vadd.f32 %v5043, 0.4994258
        %v5045 = vmul.f32 %v5025, %v5044
        %v5046 = vadd.f32 %v5045, 1.0
        %v5047 = vrcp.pop %v5046
        %v5048 = vmul.f32 %v5046, %v5047
        %v5049 = vsub.f32 1.0, %v5048
        %v5050 = vmul.f32 %v5047, %v5049
        %v5051 = vadd.f32 %v5047, %v5050
        %vm5052 = vweird.f32 %v5046
        %vm5053 = vweird.f32 %v5047
        %vm5054 = vmor %vm5052, %vm5053
        %v5055 = vsel %vm5054, %v5047, %v5051
        %v5056 = vand.u32 2147483647, %v5046
        %vm5057 = vcmp.eq.f32.partialorder %v5056, 8.507059e+37
        %v5058 = vand.u32 %v5046, 2147483648
        %v5059 = vor.u32 1.1754944e-38, %v5058
        %v5060 = vsel %vm5057, %v5059, %v5055
        %v5061 = vmul.f32 %v5036, %v5060
        %v5062 = vmin.f32 %v5061, 1.0
        %v5063 = vmax.f32 %v5062, -1.0
        %v5064 = vmul.f32 %v3979, %v3979
        %v5065 = vmin.f32 16.0, %v5064
        %v5066 = vmul.f32 %v5065, 2.1237322e-06
        %v5067 = vadd.f32 %v5066, 0.00028619796
        %v5068 = vmul.f32 %v5065, %v5067
        %v5069 = vadd.f32 %v5068, 0.0036580483
        %v5070 = vmul.f32 %v5065, %v5069
        %v5071 = vadd.f32 %v5070, 0.05243302
        %v5072 = vmul.f32 %v5065, %v5071
        %v5073 = vadd.f32 %v5072, 0.18741608
        %v5074 = vmul.f32 %v5065, %v5073
        %v5075 = vadd.f32 %v5074, 1.1283791
        %v5076 = vmul.f32 %v3979, %v5075
        %v5077 = vmul.f32 %v5065, 3.8918573e-05
        %v5078 = vadd.f32 %v5077, 0.001143296
        %v5079 = vmul.f32 %v5065, %v5078
        %v5080 = vadd.f32 %v5079, 0.014752088
        %v5081 = vmul.f32 %v5065, %v5080
        %v5082 = vadd.f32 %v5081, 0.112945676
        %v5083 = vmul.f32 %v5065, %v5082
        %v5084 = vadd.f32 %v5083, 0.4994258
        %v5085 = vmul.f32 %v5065, %v5084
        %v5086 = vadd.f32 %v5085, 1.0
        %v5087 = vrcp.pop %v5086
        %v5088 = vmul.f32 %v5086, %v5087
        %v5089 = vsub.f32 1.0, %v5088
        %v5090 = vmul.f32 %v5087, %v5089
        %v5091 = vadd.f32 %v5087, %v5090
        %vm5092 = vweird.f32 %v5086
        %vm5093 = vweird.f32 %v5087
        %vm5094 = vmor %vm5092, %vm5093
        %v5095 = vsel %vm5094, %v5087, %v5091
        %v5096 = vand.u32 2147483647, %v5086
        %vm5097 = vcmp.eq.f32.partialorder %v5096, 8.507059e+37
        %v5098 = vand.u32 %v5086, 2147483648
        %v5099 = vor.u32 1.1754944e-38, %v5098
        %v5100 = vsel %vm5097, %v5099, %v5095
        %v5101 = vmul.f32 %v5076, %v5100
        %v5102 = vmin.f32 %v5101, 1.0
        %v5103 = vmax.f32 %v5102, -1.0
        %v5104 = vmul.f32 %v3980, %v3980
        %v5105 = vmin.f32 16.0, %v5104
        %v5106 = vmul.f32 %v5105, 2.1237322e-06
        %v5107 = vadd.f32 %v5106, 0.00028619796
        %v5108 = vmul.f32 %v5105, %v5107
        %v5109 = vadd.f32 %v5108, 0.0036580483
        %v5110 = vmul.f32 %v5105, %v5109
        %v5111 = vadd.f32 %v5110, 0.05243302
        %v5112 = vmul.f32 %v5105, %v5111
        %v5113 = vadd.f32 %v5112, 0.18741608
        %v5114 = vmul.f32 %v5105, %v5113
        %v5115 = vadd.f32 %v5114, 1.1283791
        %v5116 = vmul.f32 %v3980, %v5115
        %v5117 = vmul.f32 %v5105, 3.8918573e-05
        %v5118 = vadd.f32 %v5117, 0.001143296
        %v5119 = vmul.f32 %v5105, %v5118
        %v5120 = vadd.f32 %v5119, 0.014752088
        %v5121 = vmul.f32 %v5105, %v5120
        %v5122 = vadd.f32 %v5121, 0.112945676
        %v5123 = vmul.f32 %v5105, %v5122
        %v5124 = vadd.f32 %v5123, 0.4994258
        %v5125 = vmul.f32 %v5105, %v5124
        %v5126 = vadd.f32 %v5125, 1.0
        %v5127 = vrcp.pop %v5126
        %v5128 = vmul.f32 %v5126, %v5127
        %v5129 = vsub.f32 1.0, %v5128
        %v5130 = vmul.f32 %v5127, %v5129
        %v5131 = vadd.f32 %v5127, %v5130
        %vm5132 = vweird.f32 %v5126
        %vm5133 = vweird.f32 %v5127
        %vm5134 = vmor %vm5132, %vm5133
        %v5135 = vsel %vm5134, %v5127, %v5131
        %v5136 = vand.u32 2147483647, %v5126
        %vm5137 = vcmp.eq.f32.partialorder %v5136, 8.507059e+37
        %v5138 = vand.u32 %v5126, 2147483648
        %v5139 = vor.u32 1.1754944e-38, %v5138
        %v5140 = vsel %vm5137, %v5139, %v5135
        %v5141 = vmul.f32 %v5116, %v5140
        %v5142 = vmin.f32 %v5141, 1.0
        %v5143 = vmax.f32 %v5142, -1.0
        %v5144 = vmul.f32 %v3981, %v3981
        %v5145 = vmin.f32 16.0, %v5144
        %v5146 = vmul.f32 %v5145, 2.1237322e-06
        %v5147 = vadd.f32 %v5146, 0.00028619796
        %v5148 = vmul.f32 %v5145, %v5147
        %v5149 = vadd.f32 %v5148, 0.0036580483
        %v5150 = vmul.f32 %v5145, %v5149
        %v5151 = vadd.f32 %v5150, 0.05243302
        %v5152 = vmul.f32 %v5145, %v5151
        %v5153 = vadd.f32 %v5152, 0.18741608
        %v5154 = vmul.f32 %v5145, %v5153
        %v5155 = vadd.f32 %v5154, 1.1283791
        %v5156 = vmul.f32 %v3981, %v5155
        %v5157 = vmul.f32 %v5145, 3.8918573e-05
        %v5158 = vadd.f32 %v5157, 0.001143296
        %v5159 = vmul.f32 %v5145, %v5158
        %v5160 = vadd.f32 %v5159, 0.014752088
        %v5161 = vmul.f32 %v5145, %v5160
        %v5162 = vadd.f32 %v5161, 0.112945676
        %v5163 = vmul.f32 %v5145, %v5162
        %v5164 = vadd.f32 %v5163, 0.4994258
        %v5165 = vmul.f32 %v5145, %v5164
        %v5166 = vadd.f32 %v5165, 1.0
        %v5167 = vrcp.pop %v5166
        %v5168 = vmul.f32 %v5166, %v5167
        %v5169 = vsub.f32 1.0, %v5168
        %v5170 = vmul.f32 %v5167, %v5169
        %v5171 = vadd.f32 %v5167, %v5170
        %vm5172 = vweird.f32 %v5166
        %vm5173 = vweird.f32 %v5167
        %vm5174 = vmor %vm5172, %vm5173
        %v5175 = vsel %vm5174, %v5167, %v5171
        %v5176 = vand.u32 2147483647, %v5166
        %vm5177 = vcmp.eq.f32.partialorder %v5176, 8.507059e+37
        %v5178 = vand.u32 %v5166, 2147483648
        %v5179 = vor.u32 1.1754944e-38, %v5178
        %v5180 = vsel %vm5177, %v5179, %v5175
        %v5181 = vmul.f32 %v5156, %v5180
        %v5182 = vmin.f32 %v5181, 1.0
        %v5183 = vmax.f32 %v5182, -1.0
        %v5184 = vmul.f32 %v3982, %v3982
        %v5185 = vmin.f32 16.0, %v5184
        %v5186 = vmul.f32 %v5185, 2.1237322e-06
        %v5187 = vadd.f32 %v5186, 0.00028619796
        %v5188 = vmul.f32 %v5185, %v5187
        %v5189 = vadd.f32 %v5188, 0.0036580483
        %v5190 = vmul.f32 %v5185, %v5189
        %v5191 = vadd.f32 %v5190, 0.05243302
        %v5192 = vmul.f32 %v5185, %v5191
        %v5193 = vadd.f32 %v5192, 0.18741608
        %v5194 = vmul.f32 %v5185, %v5193
        %v5195 = vadd.f32 %v5194, 1.1283791
        %v5196 = vmul.f32 %v3982, %v5195
        %v5197 = vmul.f32 %v5185, 3.8918573e-05
        %v5198 = vadd.f32 %v5197, 0.001143296
        %v5199 = vmul.f32 %v5185, %v5198
        %v5200 = vadd.f32 %v5199, 0.014752088
        %v5201 = vmul.f32 %v5185, %v5200
        %v5202 = vadd.f32 %v5201, 0.112945676
        %v5203 = vmul.f32 %v5185, %v5202
        %v5204 = vadd.f32 %v5203, 0.4994258
        %v5205 = vmul.f32 %v5185, %v5204
        %v5206 = vadd.f32 %v5205, 1.0
        %v5207 = vrcp.pop %v5206
        %v5208 = vmul.f32 %v5206, %v5207
        %v5209 = vsub.f32 1.0, %v5208
        %v5210 = vmul.f32 %v5207, %v5209
        %v5211 = vadd.f32 %v5207, %v5210
        %vm5212 = vweird.f32 %v5206
        %vm5213 = vweird.f32 %v5207
        %vm5214 = vmor %vm5212, %vm5213
        %v5215 = vsel %vm5214, %v5207, %v5211
        %v5216 = vand.u32 2147483647, %v5206
        %vm5217 = vcmp.eq.f32.partialorder %v5216, 8.507059e+37
        %v5218 = vand.u32 %v5206, 2147483648
        %v5219 = vor.u32 1.1754944e-38, %v5218
        %v5220 = vsel %vm5217, %v5219, %v5215
        %v5221 = vmul.f32 %v5196, %v5220
        %v5222 = vmin.f32 %v5221, 1.0
        %v5223 = vmax.f32 %v5222, -1.0
        %v5224 = vmul.f32 %v3983, %v3983
        %v5225 = vmin.f32 16.0, %v5224
        %v5226 = vmul.f32 %v5225, 2.1237322e-06
        %v5227 = vadd.f32 %v5226, 0.00028619796
        %v5228 = vmul.f32 %v5225, %v5227
        %v5229 = vadd.f32 %v5228, 0.0036580483
        %v5230 = vmul.f32 %v5225, %v5229
        %v5231 = vadd.f32 %v5230, 0.05243302
        %v5232 = vmul.f32 %v5225, %v5231
        %v5233 = vadd.f32 %v5232, 0.18741608
        %v5234 = vmul.f32 %v5225, %v5233
        %v5235 = vadd.f32 %v5234, 1.1283791
        %v5236 = vmul.f32 %v3983, %v5235
        %v5237 = vmul.f32 %v5225, 3.8918573e-05
        %v5238 = vadd.f32 %v5237, 0.001143296
        %v5239 = vmul.f32 %v5225, %v5238
        %v5240 = vadd.f32 %v5239, 0.014752088
        %v5241 = vmul.f32 %v5225, %v5240
        %v5242 = vadd.f32 %v5241, 0.112945676
        %v5243 = vmul.f32 %v5225, %v5242
        %v5244 = vadd.f32 %v5243, 0.4994258
        %v5245 = vmul.f32 %v5225, %v5244
        %v5246 = vadd.f32 %v5245, 1.0
        %v5247 = vrcp.pop %v5246
        %v5248 = vmul.f32 %v5246, %v5247
        %v5249 = vsub.f32 1.0, %v5248
        %v5250 = vmul.f32 %v5247, %v5249
        %v5251 = vadd.f32 %v5247, %v5250
        %vm5252 = vweird.f32 %v5246
        %vm5253 = vweird.f32 %v5247
        %vm5254 = vmor %vm5252, %vm5253
        %v5255 = vsel %vm5254, %v5247, %v5251
        %v5256 = vand.u32 2147483647, %v5246
        %vm5257 = vcmp.eq.f32.partialorder %v5256, 8.507059e+37
        %v5258 = vand.u32 %v5246, 2147483648
        %v5259 = vor.u32 1.1754944e-38, %v5258
        %v5260 = vsel %vm5257, %v5259, %v5255
        %v5261 = vmul.f32 %v5236, %v5260
        %v5262 = vmin.f32 %v5261, 1.0
        %v5263 = vmax.f32 %v5262, -1.0
        %v5264 = vadd.f32 %v4023, 1.0
        %v5265 = vadd.f32 %v4063, 1.0
        %v5266 = vadd.f32 %v4103, 1.0
        %v5267 = vadd.f32 %v4143, 1.0
        %v5268 = vadd.f32 %v4183, 1.0
        %v5269 = vadd.f32 %v4223, 1.0
        %v5270 = vadd.f32 %v4263, 1.0
        %v5271 = vadd.f32 %v4303, 1.0
        %v5272 = vadd.f32 %v4343, 1.0
        %v5273 = vadd.f32 %v4383, 1.0
        %v5274 = vadd.f32 %v4423, 1.0
        %v5275 = vadd.f32 %v4463, 1.0
        %v5276 = vadd.f32 %v4503, 1.0
        %v5277 = vadd.f32 %v4543, 1.0
        %v5278 = vadd.f32 %v4583, 1.0
        %v5279 = vadd.f32 %v4623, 1.0
        %v5280 = vadd.f32 %v4663, 1.0
        %v5281 = vadd.f32 %v4703, 1.0
        %v5282 = vadd.f32 %v4743, 1.0
        %v5283 = vadd.f32 %v4783, 1.0
        %v5284 = vadd.f32 %v4823, 1.0
        %v5285 = vadd.f32 %v4863, 1.0
        %v5286 = vadd.f32 %v4903, 1.0
        %v5287 = vadd.f32 %v4943, 1.0
        %v5288 = vadd.f32 %v4983, 1.0
        %v5289 = vadd.f32 %v5023, 1.0
        %v5290 = vadd.f32 %v5063, 1.0
        %v5291 = vadd.f32 %v5103, 1.0
        %v5292 = vadd.f32 %v5143, 1.0
        %v5293 = vadd.f32 %v5183, 1.0
        %v5294 = vadd.f32 %v5223, 1.0
        %v5295 = vadd.f32 %v5263, 1.0
        %v5296 = vmul.f32 %v3920, %v5264
        %v5297 = vmul.f32 %v3921, %v5265
        %v5298 = vmul.f32 %v3922, %v5266
        %v5299 = vmul.f32 %v3923, %v5267
        %v5300 = vmul.f32 %v3924, %v5268
        %v5301 = vmul.f32 %v3925, %v5269
        %v5302 = vmul.f32 %v3926, %v5270
        %v5303 = vmul.f32 %v3927, %v5271
        %v5304 = vmul.f32 %v3928, %v5272
        %v5305 = vmul.f32 %v3929, %v5273
        %v5306 = vmul.f32 %v3930, %v5274
        %v5307 = vmul.f32 %v3931, %v5275
        %v5308 = vmul.f32 %v3932, %v5276
        %v5309 = vmul.f32 %v3933, %v5277
        %v5310 = vmul.f32 %v3934, %v5278
        %v5311 = vmul.f32 %v3935, %v5279
        %v5312 = vmul.f32 %v3936, %v5280
        %v5313 = vmul.f32 %v3937, %v5281
        %v5314 = vmul.f32 %v3938, %v5282
        %v5315 = vmul.f32 %v3939, %v5283
        %v5316 = vmul.f32 %v3940, %v5284
        %v5317 = vmul.f32 %v3941, %v5285
        %v5318 = vmul.f32 %v3942, %v5286
        %v5319 = vmul.f32 %v3943, %v5287
        %v5320 = vmul.f32 %v3944, %v5288
        %v5321 = vmul.f32 %v3945, %v5289
        %v5322 = vmul.f32 %v3946, %v5290
        %v5323 = vmul.f32 %v3947, %v5291
        %v5324 = vmul.f32 %v3948, %v5292
        %v5325 = vmul.f32 %v3949, %v5293
        %v5326 = vmul.f32 %v3950, %v5294
        %v5327 = vmul.f32 %v3951, %v5295
        %v5328 = vpack.c.bf16 %v5298, %v5296
        %v5329 = vpack.c.bf16 %v5299, %v5297
        %v5330 = vpack.c.bf16 %v5302, %v5300
        %v5331 = vpack.c.bf16 %v5303, %v5301
        %v5332 = vpack.c.bf16 %v5306, %v5304
        %v5333 = vpack.c.bf16 %v5307, %v5305
        %v5334 = vpack.c.bf16 %v5310, %v5308
        %v5335 = vpack.c.bf16 %v5311, %v5309
        %v5336 = vpack.c.bf16 %v5314, %v5312
        %v5337 = vpack.c.bf16 %v5315, %v5313
        %v5338 = vpack.c.bf16 %v5318, %v5316
        %v5339 = vpack.c.bf16 %v5319, %v5317
        %v5340 = vpack.c.bf16 %v5322, %v5320
        %v5341 = vpack.c.bf16 %v5323, %v5321
        %v5342 = vpack.c.bf16 %v5326, %v5324
        %v5343 = vpack.c.bf16 %v5327, %v5325
        %v5344 = vld [vmem:[#allocation13] sm:$0xf]
        %v5345 = vld [vmem:[#allocation13 + $0x4] sm:$0xf]
        %v5346 = vld [vmem:[#allocation13 + $0x8] sm:$0xf]
        %v5347 = vld [vmem:[#allocation13 + $0xc] sm:$0xf]
        %v5348 = vld [vmem:[#allocation13 + $0x10] sm:$0xf]
        %v5349 = vld [vmem:[#allocation13 + $0x14] sm:$0xf]
        %v5350 = vld [vmem:[#allocation13 + $0x18] sm:$0xf]
        %v5351 = vld [vmem:[#allocation13 + $0x1c] sm:$0xf]
        %v5352 = vld [vmem:[#allocation13 + $0x20] sm:$0xf]
        %v5353 = vld [vmem:[#allocation13 + $0x24] sm:$0xf]
        %v5354 = vld [vmem:[#allocation13 + $0x28] sm:$0xf]
        %v5355 = vld [vmem:[#allocation13 + $0x2c] sm:$0xf]
        %v5356 = vld [vmem:[#allocation13 + $0x30] sm:$0xf]
        %v5357 = vld [vmem:[#allocation13 + $0x34] sm:$0xf]
        %v5358 = vld [vmem:[#allocation13 + $0x38] sm:$0xf]
        %v5359 = vld [vmem:[#allocation13 + $0x3c] sm:$0xf]
        %v5360 = vld [vmem:[#allocation13 + $0x40] sm:$0xf]
        %v5361 = vld [vmem:[#allocation13 + $0x44] sm:$0xf]
        %v5362 = vld [vmem:[#allocation13 + $0x48] sm:$0xf]
        %v5363 = vld [vmem:[#allocation13 + $0x4c] sm:$0xf]
        %v5364 = vld [vmem:[#allocation13 + $0x50] sm:$0xf]
        %v5365 = vld [vmem:[#allocation13 + $0x54] sm:$0xf]
        %v5366 = vld [vmem:[#allocation13 + $0x58] sm:$0xf]
        %v5367 = vld [vmem:[#allocation13 + $0x5c] sm:$0xf]
        %v5368 = vld [vmem:[#allocation13 + $0x60] sm:$0xf]
        %v5369 = vld [vmem:[#allocation13 + $0x64] sm:$0xf]
        %v5370 = vld [vmem:[#allocation13 + $0x68] sm:$0xf]
        %v5371 = vld [vmem:[#allocation13 + $0x6c] sm:$0xf]
        %v5372 = vld [vmem:[#allocation13 + $0x70] sm:$0xf]
        %v5373 = vld [vmem:[#allocation13 + $0x74] sm:$0xf]
        %v5374 = vld [vmem:[#allocation13 + $0x78] sm:$0xf]
        %v5375 = vld [vmem:[#allocation13 + $0x7c] sm:$0xf]
        %v5376 = vld [vmem:[#allocation15 + $0x2] ss:$0 sm:$0xff]
        %v5409 = vunpack.c.l.b16 %v5344
        %v5410 = vunpack.c.l.b16 %v5345
        %v5411 = vunpack.c.l.b16 %v5346
        %v5412 = vunpack.c.l.b16 %v5347
        %v5413 = vunpack.c.l.b16 %v5348
        %v5414 = vunpack.c.l.b16 %v5349
        %v5415 = vunpack.c.l.b16 %v5350
        %v5416 = vunpack.c.l.b16 %v5351
        %v5417 = vunpack.c.l.b16 %v5352
        %v5418 = vunpack.c.l.b16 %v5353
        %v5419 = vunpack.c.l.b16 %v5354
        %v5420 = vunpack.c.l.b16 %v5355
        %v5421 = vunpack.c.l.b16 %v5356
        %v5422 = vunpack.c.l.b16 %v5357
        %v5423 = vunpack.c.l.b16 %v5358
        %v5424 = vunpack.c.l.b16 %v5359
        %v5425 = vunpack.c.l.b16 %v5360
        %v5426 = vunpack.c.l.b16 %v5361
        %v5427 = vunpack.c.l.b16 %v5362
        %v5428 = vunpack.c.l.b16 %v5363
        %v5429 = vunpack.c.l.b16 %v5364
        %v5430 = vunpack.c.l.b16 %v5365
        %v5431 = vunpack.c.l.b16 %v5366
        %v5432 = vunpack.c.l.b16 %v5367
        %v5433 = vunpack.c.l.b16 %v5368
        %v5434 = vunpack.c.l.b16 %v5369
        %v5435 = vunpack.c.l.b16 %v5370
        %v5436 = vunpack.c.l.b16 %v5371
        %v5437 = vunpack.c.l.b16 %v5372
        %v5438 = vunpack.c.l.b16 %v5373
        %v5439 = vunpack.c.l.b16 %v5374
        %v5440 = vunpack.c.l.b16 %v5375
        %v5441 = vpack.c.b16 %v5410, %v5409
        %v5442 = vpack.c.b16 %v5412, %v5411
        %v5443 = vpack.c.b16 %v5414, %v5413
        %v5444 = vpack.c.b16 %v5416, %v5415
        %v5445 = vpack.c.b16 %v5418, %v5417
        %v5446 = vpack.c.b16 %v5420, %v5419
        %v5447 = vpack.c.b16 %v5422, %v5421
        %v5448 = vpack.c.b16 %v5424, %v5423
        %v5449 = vpack.c.b16 %v5426, %v5425
        %v5450 = vpack.c.b16 %v5428, %v5427
        %v5451 = vpack.c.b16 %v5430, %v5429
        %v5452 = vpack.c.b16 %v5432, %v5431
        %v5453 = vpack.c.b16 %v5434, %v5433
        %v5454 = vpack.c.b16 %v5436, %v5435
        %v5455 = vpack.c.b16 %v5438, %v5437
        %v5456 = vpack.c.b16 %v5440, %v5439
        %5473 = vmatpush.bf16.msra.mxu0 %v5448
        %5474 = vmatpush.bf16.msra.mxu0 %v5447
        %5475 = vmatpush.bf16.msra.mxu0 %v5446
        %5476 = vmatpush.bf16.msra.mxu0 %v5445
        %5477 = vmatpush.bf16.msra.mxu0 %v5444
        %5478 = vmatpush.bf16.msra.mxu0 %v5443
        %5479 = vmatpush.bf16.msra.mxu0 %v5442
        %5480 = vmatpush.bf16.msra.mxu0 %v5441
        %5481 = vmatmul.bf16.gmra.mxu0 %v5328
        %v5482 = vpop.f32.mrf.mxu0
        %v5483 = vadd.f32 %v5376, %v5482
        %v5484 = vpop.f32.mrf.mxu0
        %v5485 = vadd.f32 %v5376, %v5484
        %5486 = vmatmul.bf16.gmra.mxu0 %v5330
        %v5487 = vpop.f32.mrf.mxu0
        %v5488 = vadd.f32 %v5376, %v5487
        %v5489 = vpop.f32.mrf.mxu0
        %v5490 = vadd.f32 %v5376, %v5489
        %5491 = vmatmul.bf16.gmra.mxu0 %v5332
        %v5492 = vpop.f32.mrf.mxu0
        %v5493 = vadd.f32 %v5376, %v5492
        %v5494 = vpop.f32.mrf.mxu0
        %v5495 = vadd.f32 %v5376, %v5494
        %5496 = vmatmul.bf16.gmra.mxu0 %v5334
        %v5497 = vpop.f32.mrf.mxu0
        %v5498 = vadd.f32 %v5376, %v5497
        %v5499 = vpop.f32.mrf.mxu0
        %v5500 = vadd.f32 %v5376, %v5499
        %5501 = vmatmul.bf16.gmra.mxu0 %v5336
        %v5502 = vpop.f32.mrf.mxu0
        %v5503 = vadd.f32 %v5376, %v5502
        %v5504 = vpop.f32.mrf.mxu0
        %v5505 = vadd.f32 %v5376, %v5504
        %5506 = vmatmul.bf16.gmra.mxu0 %v5338
        %v5507 = vpop.f32.mrf.mxu0
        %v5508 = vadd.f32 %v5376, %v5507
        %v5509 = vpop.f32.mrf.mxu0
        %v5510 = vadd.f32 %v5376, %v5509
        %5511 = vmatmul.bf16.gmra.mxu0 %v5340
        %v5512 = vpop.f32.mrf.mxu0
        %v5513 = vadd.f32 %v5376, %v5512
        %v5514 = vpop.f32.mrf.mxu0
        %v5515 = vadd.f32 %v5376, %v5514
        %5516 = vmatmul.bf16.gmra.mxu0 %v5342
        %v5517 = vpop.f32.mrf.mxu0
        %v5518 = vadd.f32 %v5376, %v5517
        %v5519 = vpop.f32.mrf.mxu0
        %v5520 = vadd.f32 %v5376, %v5519
        %5521 = vdwg.mxu0
        %5522 = vmatpush.bf16.msra.mxu0 %v5456
        %5523 = vmatpush.bf16.msra.mxu0 %v5455
        %5524 = vmatpush.bf16.msra.mxu0 %v5454
        %5525 = vmatpush.bf16.msra.mxu0 %v5453
        %5526 = vmatpush.bf16.msra.mxu0 %v5452
        %5527 = vmatpush.bf16.msra.mxu0 %v5451
        %5528 = vmatpush.bf16.msra.mxu0 %v5450
        %5529 = vmatpush.bf16.msra.mxu0 %v5449
        %5530 = vmatmul.bf16.gmra.mxu0 %v5329
        %v5531 = vpop.f32.mrf.mxu0
        %v5532 = vadd.f32 %v5483, %v5531
        %v5533 = vpop.f32.mrf.mxu0
        %v5534 = vadd.f32 %v5485, %v5533
        %5535 = vmatmul.bf16.gmra.mxu0 %v5331
        %v5536 = vpop.f32.mrf.mxu0
        %v5537 = vadd.f32 %v5488, %v5536
        %v5538 = vpop.f32.mrf.mxu0
        %v5539 = vadd.f32 %v5490, %v5538
        %5540 = vmatmul.bf16.gmra.mxu0 %v5333
        %v5541 = vpop.f32.mrf.mxu0
        %v5542 = vadd.f32 %v5493, %v5541
        %v5543 = vpop.f32.mrf.mxu0
        %v5544 = vadd.f32 %v5495, %v5543
        %5545 = vmatmul.bf16.gmra.mxu0 %v5335
        %v5546 = vpop.f32.mrf.mxu0
        %v5547 = vadd.f32 %v5498, %v5546
        %v5548 = vpop.f32.mrf.mxu0
        %v5549 = vadd.f32 %v5500, %v5548
        %5550 = vmatmul.bf16.gmra.mxu0 %v5337
        %v5551 = vpop.f32.mrf.mxu0
        %v5552 = vadd.f32 %v5503, %v5551
        %v5553 = vpop.f32.mrf.mxu0
        %v5554 = vadd.f32 %v5505, %v5553
        %5555 = vmatmul.bf16.gmra.mxu0 %v5339
        %v5556 = vpop.f32.mrf.mxu0
        %v5557 = vadd.f32 %v5508, %v5556
        %v5558 = vpop.f32.mrf.mxu0
        %v5559 = vadd.f32 %v5510, %v5558
        %5560 = vmatmul.bf16.gmra.mxu0 %v5341
        %v5561 = vpop.f32.mrf.mxu0
        %v5562 = vadd.f32 %v5513, %v5561
        %v5563 = vpop.f32.mrf.mxu0
        %v5564 = vadd.f32 %v5515, %v5563
        %5565 = vmatmul.bf16.gmra.mxu0 %v5343
        %v5566 = vpop.f32.mrf.mxu0
        %v5567 = vadd.f32 %v5518, %v5566
        %v5568 = vpop.f32.mrf.mxu0
        %v5569 = vadd.f32 %v5520, %v5568
        %5570 = vdwg.mxu0
        %v5571 = vmul.f32 %v5532, 0.5
        %v5572 = vmul.f32 %v5534, 0.5
        %v5573 = vmul.f32 %v5537, 0.5
        %v5574 = vmul.f32 %v5539, 0.5
        %v5575 = vmul.f32 %v5542, 0.5
        %v5576 = vmul.f32 %v5544, 0.5
        %v5577 = vmul.f32 %v5547, 0.5
        %v5578 = vmul.f32 %v5549, 0.5
        %v5579 = vmul.f32 %v5552, 0.5
        %v5580 = vmul.f32 %v5554, 0.5
        %v5581 = vmul.f32 %v5557, 0.5
        %v5582 = vmul.f32 %v5559, 0.5
        %v5583 = vmul.f32 %v5562, 0.5
        %v5584 = vmul.f32 %v5564, 0.5
        %v5585 = vmul.f32 %v5567, 0.5
        %v5586 = vmul.f32 %v5569, 0.5
        %v5587 = vmul.f32 %v5532, 0.70710677
        %v5588 = vmul.f32 %v5534, 0.70710677
        %v5589 = vmul.f32 %v5537, 0.70710677
        %v5590 = vmul.f32 %v5539, 0.70710677
        %v5591 = vmul.f32 %v5542, 0.70710677
        %v5592 = vmul.f32 %v5544, 0.70710677
        %v5593 = vmul.f32 %v5547, 0.70710677
        %v5594 = vmul.f32 %v5549, 0.70710677
        %v5595 = vmul.f32 %v5552, 0.70710677
        %v5596 = vmul.f32 %v5554, 0.70710677
        %v5597 = vmul.f32 %v5557, 0.70710677
        %v5598 = vmul.f32 %v5559, 0.70710677
        %v5599 = vmul.f32 %v5562, 0.70710677
        %v5600 = vmul.f32 %v5564, 0.70710677
        %v5601 = vmul.f32 %v5567, 0.70710677
        %v5602 = vmul.f32 %v5569, 0.70710677
        %v5603 = vmul.f32 %v5587, %v5587
        %v5604 = vmin.f32 16.0, %v5603
        %v5605 = vmul.f32 %v5604, 2.1237322e-06
        %v5606 = vadd.f32 %v5605, 0.00028619796
        %v5607 = vmul.f32 %v5604, %v5606
        %v5608 = vadd.f32 %v5607, 0.0036580483
        %v5609 = vmul.f32 %v5604, %v5608
        %v5610 = vadd.f32 %v5609, 0.05243302
        %v5611 = vmul.f32 %v5604, %v5610
        %v5612 = vadd.f32 %v5611, 0.18741608
        %v5613 = vmul.f32 %v5604, %v5612
        %v5614 = vadd.f32 %v5613, 1.1283791
        %v5615 = vmul.f32 %v5587, %v5614
        %v5616 = vmul.f32 %v5604, 3.8918573e-05
        %v5617 = vadd.f32 %v5616, 0.001143296
        %v5618 = vmul.f32 %v5604, %v5617
        %v5619 = vadd.f32 %v5618, 0.014752088
        %v5620 = vmul.f32 %v5604, %v5619
        %v5621 = vadd.f32 %v5620, 0.112945676
        %v5622 = vmul.f32 %v5604, %v5621
        %v5623 = vadd.f32 %v5622, 0.4994258
        %v5624 = vmul.f32 %v5604, %v5623
        %v5625 = vadd.f32 %v5624, 1.0
        %v5626 = vrcp.pop %v5625
        %v5627 = vmul.f32 %v5625, %v5626
        %v5628 = vsub.f32 1.0, %v5627
        %v5629 = vmul.f32 %v5626, %v5628
        %v5630 = vadd.f32 %v5626, %v5629
        %vm5631 = vweird.f32 %v5625
        %vm5632 = vweird.f32 %v5626
        %vm5633 = vmor %vm5631, %vm5632
        %v5634 = vsel %vm5633, %v5626, %v5630
        %v5635 = vand.u32 2147483647, %v5625
        %vm5636 = vcmp.eq.f32.partialorder %v5635, 8.507059e+37
        %v5637 = vand.u32 %v5625, 2147483648
        %v5638 = vor.u32 1.1754944e-38, %v5637
        %v5639 = vsel %vm5636, %v5638, %v5634
        %v5640 = vmul.f32 %v5615, %v5639
        %v5641 = vmin.f32 %v5640, 1.0
        %v5642 = vmax.f32 %v5641, -1.0
        %v5643 = vmul.f32 %v5588, %v5588
        %v5644 = vmin.f32 16.0, %v5643
        %v5645 = vmul.f32 %v5644, 2.1237322e-06
        %v5646 = vadd.f32 %v5645, 0.00028619796
        %v5647 = vmul.f32 %v5644, %v5646
        %v5648 = vadd.f32 %v5647, 0.0036580483
        %v5649 = vmul.f32 %v5644, %v5648
        %v5650 = vadd.f32 %v5649, 0.05243302
        %v5651 = vmul.f32 %v5644, %v5650
        %v5652 = vadd.f32 %v5651, 0.18741608
        %v5653 = vmul.f32 %v5644, %v5652
        %v5654 = vadd.f32 %v5653, 1.1283791
        %v5655 = vmul.f32 %v5588, %v5654
        %v5656 = vmul.f32 %v5644, 3.8918573e-05
        %v5657 = vadd.f32 %v5656, 0.001143296
        %v5658 = vmul.f32 %v5644, %v5657
        %v5659 = vadd.f32 %v5658, 0.014752088
        %v5660 = vmul.f32 %v5644, %v5659
        %v5661 = vadd.f32 %v5660, 0.112945676
        %v5662 = vmul.f32 %v5644, %v5661
        %v5663 = vadd.f32 %v5662, 0.4994258
        %v5664 = vmul.f32 %v5644, %v5663
        %v5665 = vadd.f32 %v5664, 1.0
        %v5666 = vrcp.pop %v5665
        %v5667 = vmul.f32 %v5665, %v5666
        %v5668 = vsub.f32 1.0, %v5667
        %v5669 = vmul.f32 %v5666, %v5668
        %v5670 = vadd.f32 %v5666, %v5669
        %vm5671 = vweird.f32 %v5665
        %vm5672 = vweird.f32 %v5666
        %vm5673 = vmor %vm5671, %vm5672
        %v5674 = vsel %vm5673, %v5666, %v5670
        %v5675 = vand.u32 2147483647, %v5665
        %vm5676 = vcmp.eq.f32.partialorder %v5675, 8.507059e+37
        %v5677 = vand.u32 %v5665, 2147483648
        %v5678 = vor.u32 1.1754944e-38, %v5677
        %v5679 = vsel %vm5676, %v5678, %v5674
        %v5680 = vmul.f32 %v5655, %v5679
        %v5681 = vmin.f32 %v5680, 1.0
        %v5682 = vmax.f32 %v5681, -1.0
        %v5683 = vmul.f32 %v5589, %v5589
        %v5684 = vmin.f32 16.0, %v5683
        %v5685 = vmul.f32 %v5684, 2.1237322e-06
        %v5686 = vadd.f32 %v5685, 0.00028619796
        %v5687 = vmul.f32 %v5684, %v5686
        %v5688 = vadd.f32 %v5687, 0.0036580483
        %v5689 = vmul.f32 %v5684, %v5688
        %v5690 = vadd.f32 %v5689, 0.05243302
        %v5691 = vmul.f32 %v5684, %v5690
        %v5692 = vadd.f32 %v5691, 0.18741608
        %v5693 = vmul.f32 %v5684, %v5692
        %v5694 = vadd.f32 %v5693, 1.1283791
        %v5695 = vmul.f32 %v5589, %v5694
        %v5696 = vmul.f32 %v5684, 3.8918573e-05
        %v5697 = vadd.f32 %v5696, 0.001143296
        %v5698 = vmul.f32 %v5684, %v5697
        %v5699 = vadd.f32 %v5698, 0.014752088
        %v5700 = vmul.f32 %v5684, %v5699
        %v5701 = vadd.f32 %v5700, 0.112945676
        %v5702 = vmul.f32 %v5684, %v5701
        %v5703 = vadd.f32 %v5702, 0.4994258
        %v5704 = vmul.f32 %v5684, %v5703
        %v5705 = vadd.f32 %v5704, 1.0
        %v5706 = vrcp.pop %v5705
        %v5707 = vmul.f32 %v5705, %v5706
        %v5708 = vsub.f32 1.0, %v5707
        %v5709 = vmul.f32 %v5706, %v5708
        %v5710 = vadd.f32 %v5706, %v5709
        %vm5711 = vweird.f32 %v5705
        %vm5712 = vweird.f32 %v5706
        %vm5713 = vmor %vm5711, %vm5712
        %v5714 = vsel %vm5713, %v5706, %v5710
        %v5715 = vand.u32 2147483647, %v5705
        %vm5716 = vcmp.eq.f32.partialorder %v5715, 8.507059e+37
        %v5717 = vand.u32 %v5705, 2147483648
        %v5718 = vor.u32 1.1754944e-38, %v5717
        %v5719 = vsel %vm5716, %v5718, %v5714
        %v5720 = vmul.f32 %v5695, %v5719
        %v5721 = vmin.f32 %v5720, 1.0
        %v5722 = vmax.f32 %v5721, -1.0
        %v5723 = vmul.f32 %v5590, %v5590
        %v5724 = vmin.f32 16.0, %v5723
        %v5725 = vmul.f32 %v5724, 2.1237322e-06
        %v5726 = vadd.f32 %v5725, 0.00028619796
        %v5727 = vmul.f32 %v5724, %v5726
        %v5728 = vadd.f32 %v5727, 0.0036580483
        %v5729 = vmul.f32 %v5724, %v5728
        %v5730 = vadd.f32 %v5729, 0.05243302
        %v5731 = vmul.f32 %v5724, %v5730
        %v5732 = vadd.f32 %v5731, 0.18741608
        %v5733 = vmul.f32 %v5724, %v5732
        %v5734 = vadd.f32 %v5733, 1.1283791
        %v5735 = vmul.f32 %v5590, %v5734
        %v5736 = vmul.f32 %v5724, 3.8918573e-05
        %v5737 = vadd.f32 %v5736, 0.001143296
        %v5738 = vmul.f32 %v5724, %v5737
        %v5739 = vadd.f32 %v5738, 0.014752088
        %v5740 = vmul.f32 %v5724, %v5739
        %v5741 = vadd.f32 %v5740, 0.112945676
        %v5742 = vmul.f32 %v5724, %v5741
        %v5743 = vadd.f32 %v5742, 0.4994258
        %v5744 = vmul.f32 %v5724, %v5743
        %v5745 = vadd.f32 %v5744, 1.0
        %v5746 = vrcp.pop %v5745
        %v5747 = vmul.f32 %v5745, %v5746
        %v5748 = vsub.f32 1.0, %v5747
        %v5749 = vmul.f32 %v5746, %v5748
        %v5750 = vadd.f32 %v5746, %v5749
        %vm5751 = vweird.f32 %v5745
        %vm5752 = vweird.f32 %v5746
        %vm5753 = vmor %vm5751, %vm5752
        %v5754 = vsel %vm5753, %v5746, %v5750
        %v5755 = vand.u32 2147483647, %v5745
        %vm5756 = vcmp.eq.f32.partialorder %v5755, 8.507059e+37
        %v5757 = vand.u32 %v5745, 2147483648
        %v5758 = vor.u32 1.1754944e-38, %v5757
        %v5759 = vsel %vm5756, %v5758, %v5754
        %v5760 = vmul.f32 %v5735, %v5759
        %v5761 = vmin.f32 %v5760, 1.0
        %v5762 = vmax.f32 %v5761, -1.0
        %v5763 = vmul.f32 %v5591, %v5591
        %v5764 = vmin.f32 16.0, %v5763
        %v5765 = vmul.f32 %v5764, 2.1237322e-06
        %v5766 = vadd.f32 %v5765, 0.00028619796
        %v5767 = vmul.f32 %v5764, %v5766
        %v5768 = vadd.f32 %v5767, 0.0036580483
        %v5769 = vmul.f32 %v5764, %v5768
        %v5770 = vadd.f32 %v5769, 0.05243302
        %v5771 = vmul.f32 %v5764, %v5770
        %v5772 = vadd.f32 %v5771, 0.18741608
        %v5773 = vmul.f32 %v5764, %v5772
        %v5774 = vadd.f32 %v5773, 1.1283791
        %v5775 = vmul.f32 %v5591, %v5774
        %v5776 = vmul.f32 %v5764, 3.8918573e-05
        %v5777 = vadd.f32 %v5776, 0.001143296
        %v5778 = vmul.f32 %v5764, %v5777
        %v5779 = vadd.f32 %v5778, 0.014752088
        %v5780 = vmul.f32 %v5764, %v5779
        %v5781 = vadd.f32 %v5780, 0.112945676
        %v5782 = vmul.f32 %v5764, %v5781
        %v5783 = vadd.f32 %v5782, 0.4994258
        %v5784 = vmul.f32 %v5764, %v5783
        %v5785 = vadd.f32 %v5784, 1.0
        %v5786 = vrcp.pop %v5785
        %v5787 = vmul.f32 %v5785, %v5786
        %v5788 = vsub.f32 1.0, %v5787
        %v5789 = vmul.f32 %v5786, %v5788
        %v5790 = vadd.f32 %v5786, %v5789
        %vm5791 = vweird.f32 %v5785
        %vm5792 = vweird.f32 %v5786
        %vm5793 = vmor %vm5791, %vm5792
        %v5794 = vsel %vm5793, %v5786, %v5790
        %v5795 = vand.u32 2147483647, %v5785
        %vm5796 = vcmp.eq.f32.partialorder %v5795, 8.507059e+37
        %v5797 = vand.u32 %v5785, 2147483648
        %v5798 = vor.u32 1.1754944e-38, %v5797
        %v5799 = vsel %vm5796, %v5798, %v5794
        %v5800 = vmul.f32 %v5775, %v5799
        %v5801 = vmin.f32 %v5800, 1.0
        %v5802 = vmax.f32 %v5801, -1.0
        %v5803 = vmul.f32 %v5592, %v5592
        %v5804 = vmin.f32 16.0, %v5803
        %v5805 = vmul.f32 %v5804, 2.1237322e-06
        %v5806 = vadd.f32 %v5805, 0.00028619796
        %v5807 = vmul.f32 %v5804, %v5806
        %v5808 = vadd.f32 %v5807, 0.0036580483
        %v5809 = vmul.f32 %v5804, %v5808
        %v5810 = vadd.f32 %v5809, 0.05243302
        %v5811 = vmul.f32 %v5804, %v5810
        %v5812 = vadd.f32 %v5811, 0.18741608
        %v5813 = vmul.f32 %v5804, %v5812
        %v5814 = vadd.f32 %v5813, 1.1283791
        %v5815 = vmul.f32 %v5592, %v5814
        %v5816 = vmul.f32 %v5804, 3.8918573e-05
        %v5817 = vadd.f32 %v5816, 0.001143296
        %v5818 = vmul.f32 %v5804, %v5817
        %v5819 = vadd.f32 %v5818, 0.014752088
        %v5820 = vmul.f32 %v5804, %v5819
        %v5821 = vadd.f32 %v5820, 0.112945676
        %v5822 = vmul.f32 %v5804, %v5821
        %v5823 = vadd.f32 %v5822, 0.4994258
        %v5824 = vmul.f32 %v5804, %v5823
        %v5825 = vadd.f32 %v5824, 1.0
        %v5826 = vrcp.pop %v5825
        %v5827 = vmul.f32 %v5825, %v5826
        %v5828 = vsub.f32 1.0, %v5827
        %v5829 = vmul.f32 %v5826, %v5828
        %v5830 = vadd.f32 %v5826, %v5829
        %vm5831 = vweird.f32 %v5825
        %vm5832 = vweird.f32 %v5826
        %vm5833 = vmor %vm5831, %vm5832
        %v5834 = vsel %vm5833, %v5826, %v5830
        %v5835 = vand.u32 2147483647, %v5825
        %vm5836 = vcmp.eq.f32.partialorder %v5835, 8.507059e+37
        %v5837 = vand.u32 %v5825, 2147483648
        %v5838 = vor.u32 1.1754944e-38, %v5837
        %v5839 = vsel %vm5836, %v5838, %v5834
        %v5840 = vmul.f32 %v5815, %v5839
        %v5841 = vmin.f32 %v5840, 1.0
        %v5842 = vmax.f32 %v5841, -1.0
        %v5843 = vmul.f32 %v5593, %v5593
        %v5844 = vmin.f32 16.0, %v5843
        %v5845 = vmul.f32 %v5844, 2.1237322e-06
        %v5846 = vadd.f32 %v5845, 0.00028619796
        %v5847 = vmul.f32 %v5844, %v5846
        %v5848 = vadd.f32 %v5847, 0.0036580483
        %v5849 = vmul.f32 %v5844, %v5848
        %v5850 = vadd.f32 %v5849, 0.05243302
        %v5851 = vmul.f32 %v5844, %v5850
        %v5852 = vadd.f32 %v5851, 0.18741608
        %v5853 = vmul.f32 %v5844, %v5852
        %v5854 = vadd.f32 %v5853, 1.1283791
        %v5855 = vmul.f32 %v5593, %v5854
        %v5856 = vmul.f32 %v5844, 3.8918573e-05
        %v5857 = vadd.f32 %v5856, 0.001143296
        %v5858 = vmul.f32 %v5844, %v5857
        %v5859 = vadd.f32 %v5858, 0.014752088
        %v5860 = vmul.f32 %v5844, %v5859
        %v5861 = vadd.f32 %v5860, 0.112945676
        %v5862 = vmul.f32 %v5844, %v5861
        %v5863 = vadd.f32 %v5862, 0.4994258
        %v5864 = vmul.f32 %v5844, %v5863
        %v5865 = vadd.f32 %v5864, 1.0
        %v5866 = vrcp.pop %v5865
        %v5867 = vmul.f32 %v5865, %v5866
        %v5868 = vsub.f32 1.0, %v5867
        %v5869 = vmul.f32 %v5866, %v5868
        %v5870 = vadd.f32 %v5866, %v5869
        %vm5871 = vweird.f32 %v5865
        %vm5872 = vweird.f32 %v5866
        %vm5873 = vmor %vm5871, %vm5872
        %v5874 = vsel %vm5873, %v5866, %v5870
        %v5875 = vand.u32 2147483647, %v5865
        %vm5876 = vcmp.eq.f32.partialorder %v5875, 8.507059e+37
        %v5877 = vand.u32 %v5865, 2147483648
        %v5878 = vor.u32 1.1754944e-38, %v5877
        %v5879 = vsel %vm5876, %v5878, %v5874
        %v5880 = vmul.f32 %v5855, %v5879
        %v5881 = vmin.f32 %v5880, 1.0
        %v5882 = vmax.f32 %v5881, -1.0
        %v5883 = vmul.f32 %v5594, %v5594
        %v5884 = vmin.f32 16.0, %v5883
        %v5885 = vmul.f32 %v5884, 2.1237322e-06
        %v5886 = vadd.f32 %v5885, 0.00028619796
        %v5887 = vmul.f32 %v5884, %v5886
        %v5888 = vadd.f32 %v5887, 0.0036580483
        %v5889 = vmul.f32 %v5884, %v5888
        %v5890 = vadd.f32 %v5889, 0.05243302
        %v5891 = vmul.f32 %v5884, %v5890
        %v5892 = vadd.f32 %v5891, 0.18741608
        %v5893 = vmul.f32 %v5884, %v5892
        %v5894 = vadd.f32 %v5893, 1.1283791
        %v5895 = vmul.f32 %v5594, %v5894
        %v5896 = vmul.f32 %v5884, 3.8918573e-05
        %v5897 = vadd.f32 %v5896, 0.001143296
        %v5898 = vmul.f32 %v5884, %v5897
        %v5899 = vadd.f32 %v5898, 0.014752088
        %v5900 = vmul.f32 %v5884, %v5899
        %v5901 = vadd.f32 %v5900, 0.112945676
        %v5902 = vmul.f32 %v5884, %v5901
        %v5903 = vadd.f32 %v5902, 0.4994258
        %v5904 = vmul.f32 %v5884, %v5903
        %v5905 = vadd.f32 %v5904, 1.0
        %v5906 = vrcp.pop %v5905
        %v5907 = vmul.f32 %v5905, %v5906
        %v5908 = vsub.f32 1.0, %v5907
        %v5909 = vmul.f32 %v5906, %v5908
        %v5910 = vadd.f32 %v5906, %v5909
        %vm5911 = vweird.f32 %v5905
        %vm5912 = vweird.f32 %v5906
        %vm5913 = vmor %vm5911, %vm5912
        %v5914 = vsel %vm5913, %v5906, %v5910
        %v5915 = vand.u32 2147483647, %v5905
        %vm5916 = vcmp.eq.f32.partialorder %v5915, 8.507059e+37
        %v5917 = vand.u32 %v5905, 2147483648
        %v5918 = vor.u32 1.1754944e-38, %v5917
        %v5919 = vsel %vm5916, %v5918, %v5914
        %v5920 = vmul.f32 %v5895, %v5919
        %v5921 = vmin.f32 %v5920, 1.0
        %v5922 = vmax.f32 %v5921, -1.0
        %v5923 = vmul.f32 %v5595, %v5595
        %v5924 = vmin.f32 16.0, %v5923
        %v5925 = vmul.f32 %v5924, 2.1237322e-06
        %v5926 = vadd.f32 %v5925, 0.00028619796
        %v5927 = vmul.f32 %v5924, %v5926
        %v5928 = vadd.f32 %v5927, 0.0036580483
        %v5929 = vmul.f32 %v5924, %v5928
        %v5930 = vadd.f32 %v5929, 0.05243302
        %v5931 = vmul.f32 %v5924, %v5930
        %v5932 = vadd.f32 %v5931, 0.18741608
        %v5933 = vmul.f32 %v5924, %v5932
        %v5934 = vadd.f32 %v5933, 1.1283791
        %v5935 = vmul.f32 %v5595, %v5934
        %v5936 = vmul.f32 %v5924, 3.8918573e-05
        %v5937 = vadd.f32 %v5936, 0.001143296
        %v5938 = vmul.f32 %v5924, %v5937
        %v5939 = vadd.f32 %v5938, 0.014752088
        %v5940 = vmul.f32 %v5924, %v5939
        %v5941 = vadd.f32 %v5940, 0.112945676
        %v5942 = vmul.f32 %v5924, %v5941
        %v5943 = vadd.f32 %v5942, 0.4994258
        %v5944 = vmul.f32 %v5924, %v5943
        %v5945 = vadd.f32 %v5944, 1.0
        %v5946 = vrcp.pop %v5945
        %v5947 = vmul.f32 %v5945, %v5946
        %v5948 = vsub.f32 1.0, %v5947
        %v5949 = vmul.f32 %v5946, %v5948
        %v5950 = vadd.f32 %v5946, %v5949
        %vm5951 = vweird.f32 %v5945
        %vm5952 = vweird.f32 %v5946
        %vm5953 = vmor %vm5951, %vm5952
        %v5954 = vsel %vm5953, %v5946, %v5950
        %v5955 = vand.u32 2147483647, %v5945
        %vm5956 = vcmp.eq.f32.partialorder %v5955, 8.507059e+37
        %v5957 = vand.u32 %v5945, 2147483648
        %v5958 = vor.u32 1.1754944e-38, %v5957
        %v5959 = vsel %vm5956, %v5958, %v5954
        %v5960 = vmul.f32 %v5935, %v5959
        %v5961 = vmin.f32 %v5960, 1.0
        %v5962 = vmax.f32 %v5961, -1.0
        %v5963 = vmul.f32 %v5596, %v5596
        %v5964 = vmin.f32 16.0, %v5963
        %v5965 = vmul.f32 %v5964, 2.1237322e-06
        %v5966 = vadd.f32 %v5965, 0.00028619796
        %v5967 = vmul.f32 %v5964, %v5966
        %v5968 = vadd.f32 %v5967, 0.0036580483
        %v5969 = vmul.f32 %v5964, %v5968
        %v5970 = vadd.f32 %v5969, 0.05243302
        %v5971 = vmul.f32 %v5964, %v5970
        %v5972 = vadd.f32 %v5971, 0.18741608
        %v5973 = vmul.f32 %v5964, %v5972
        %v5974 = vadd.f32 %v5973, 1.1283791
        %v5975 = vmul.f32 %v5596, %v5974
        %v5976 = vmul.f32 %v5964, 3.8918573e-05
        %v5977 = vadd.f32 %v5976, 0.001143296
        %v5978 = vmul.f32 %v5964, %v5977
        %v5979 = vadd.f32 %v5978, 0.014752088
        %v5980 = vmul.f32 %v5964, %v5979
        %v5981 = vadd.f32 %v5980, 0.112945676
        %v5982 = vmul.f32 %v5964, %v5981
        %v5983 = vadd.f32 %v5982, 0.4994258
        %v5984 = vmul.f32 %v5964, %v5983
        %v5985 = vadd.f32 %v5984, 1.0
        %v5986 = vrcp.pop %v5985
        %v5987 = vmul.f32 %v5985, %v5986
        %v5988 = vsub.f32 1.0, %v5987
        %v5989 = vmul.f32 %v5986, %v5988
        %v5990 = vadd.f32 %v5986, %v5989
        %vm5991 = vweird.f32 %v5985
        %vm5992 = vweird.f32 %v5986
        %vm5993 = vmor %vm5991, %vm5992
        %v5994 = vsel %vm5993, %v5986, %v5990
        %v5995 = vand.u32 2147483647, %v5985
        %vm5996 = vcmp.eq.f32.partialorder %v5995, 8.507059e+37
        %v5997 = vand.u32 %v5985, 2147483648
        %v5998 = vor.u32 1.1754944e-38, %v5997
        %v5999 = vsel %vm5996, %v5998, %v5994
        %v6000 = vmul.f32 %v5975, %v5999
        %v6001 = vmin.f32 %v6000, 1.0
        %v6002 = vmax.f32 %v6001, -1.0
        %v6003 = vmul.f32 %v5597, %v5597
        %v6004 = vmin.f32 16.0, %v6003
        %v6005 = vmul.f32 %v6004, 2.1237322e-06
        %v6006 = vadd.f32 %v6005, 0.00028619796
        %v6007 = vmul.f32 %v6004, %v6006
        %v6008 = vadd.f32 %v6007, 0.0036580483
        %v6009 = vmul.f32 %v6004, %v6008
        %v6010 = vadd.f32 %v6009, 0.05243302
        %v6011 = vmul.f32 %v6004, %v6010
        %v6012 = vadd.f32 %v6011, 0.18741608
        %v6013 = vmul.f32 %v6004, %v6012
        %v6014 = vadd.f32 %v6013, 1.1283791
        %v6015 = vmul.f32 %v5597, %v6014
        %v6016 = vmul.f32 %v6004, 3.8918573e-05
        %v6017 = vadd.f32 %v6016, 0.001143296
        %v6018 = vmul.f32 %v6004, %v6017
        %v6019 = vadd.f32 %v6018, 0.014752088
        %v6020 = vmul.f32 %v6004, %v6019
        %v6021 = vadd.f32 %v6020, 0.112945676
        %v6022 = vmul.f32 %v6004, %v6021
        %v6023 = vadd.f32 %v6022, 0.4994258
        %v6024 = vmul.f32 %v6004, %v6023
        %v6025 = vadd.f32 %v6024, 1.0
        %v6026 = vrcp.pop %v6025
        %v6027 = vmul.f32 %v6025, %v6026
        %v6028 = vsub.f32 1.0, %v6027
        %v6029 = vmul.f32 %v6026, %v6028
        %v6030 = vadd.f32 %v6026, %v6029
        %vm6031 = vweird.f32 %v6025
        %vm6032 = vweird.f32 %v6026
        %vm6033 = vmor %vm6031, %vm6032
        %v6034 = vsel %vm6033, %v6026, %v6030
        %v6035 = vand.u32 2147483647, %v6025
        %vm6036 = vcmp.eq.f32.partialorder %v6035, 8.507059e+37
        %v6037 = vand.u32 %v6025, 2147483648
        %v6038 = vor.u32 1.1754944e-38, %v6037
        %v6039 = vsel %vm6036, %v6038, %v6034
        %v6040 = vmul.f32 %v6015, %v6039
        %v6041 = vmin.f32 %v6040, 1.0
        %v6042 = vmax.f32 %v6041, -1.0
        %v6043 = vmul.f32 %v5598, %v5598
        %v6044 = vmin.f32 16.0, %v6043
        %v6045 = vmul.f32 %v6044, 2.1237322e-06
        %v6046 = vadd.f32 %v6045, 0.00028619796
        %v6047 = vmul.f32 %v6044, %v6046
        %v6048 = vadd.f32 %v6047, 0.0036580483
        %v6049 = vmul.f32 %v6044, %v6048
        %v6050 = vadd.f32 %v6049, 0.05243302
        %v6051 = vmul.f32 %v6044, %v6050
        %v6052 = vadd.f32 %v6051, 0.18741608
        %v6053 = vmul.f32 %v6044, %v6052
        %v6054 = vadd.f32 %v6053, 1.1283791
        %v6055 = vmul.f32 %v5598, %v6054
        %v6056 = vmul.f32 %v6044, 3.8918573e-05
        %v6057 = vadd.f32 %v6056, 0.001143296
        %v6058 = vmul.f32 %v6044, %v6057
        %v6059 = vadd.f32 %v6058, 0.014752088
        %v6060 = vmul.f32 %v6044, %v6059
        %v6061 = vadd.f32 %v6060, 0.112945676
        %v6062 = vmul.f32 %v6044, %v6061
        %v6063 = vadd.f32 %v6062, 0.4994258
        %v6064 = vmul.f32 %v6044, %v6063
        %v6065 = vadd.f32 %v6064, 1.0
        %v6066 = vrcp.pop %v6065
        %v6067 = vmul.f32 %v6065, %v6066
        %v6068 = vsub.f32 1.0, %v6067
        %v6069 = vmul.f32 %v6066, %v6068
        %v6070 = vadd.f32 %v6066, %v6069
        %vm6071 = vweird.f32 %v6065
        %vm6072 = vweird.f32 %v6066
        %vm6073 = vmor %vm6071, %vm6072
        %v6074 = vsel %vm6073, %v6066, %v6070
        %v6075 = vand.u32 2147483647, %v6065
        %vm6076 = vcmp.eq.f32.partialorder %v6075, 8.507059e+37
        %v6077 = vand.u32 %v6065, 2147483648
        %v6078 = vor.u32 1.1754944e-38, %v6077
        %v6079 = vsel %vm6076, %v6078, %v6074
        %v6080 = vmul.f32 %v6055, %v6079
        %v6081 = vmin.f32 %v6080, 1.0
        %v6082 = vmax.f32 %v6081, -1.0
        %v6083 = vmul.f32 %v5599, %v5599
        %v6084 = vmin.f32 16.0, %v6083
        %v6085 = vmul.f32 %v6084, 2.1237322e-06
        %v6086 = vadd.f32 %v6085, 0.00028619796
        %v6087 = vmul.f32 %v6084, %v6086
        %v6088 = vadd.f32 %v6087, 0.0036580483
        %v6089 = vmul.f32 %v6084, %v6088
        %v6090 = vadd.f32 %v6089, 0.05243302
        %v6091 = vmul.f32 %v6084, %v6090
        %v6092 = vadd.f32 %v6091, 0.18741608
        %v6093 = vmul.f32 %v6084, %v6092
        %v6094 = vadd.f32 %v6093, 1.1283791
        %v6095 = vmul.f32 %v5599, %v6094
        %v6096 = vmul.f32 %v6084, 3.8918573e-05
        %v6097 = vadd.f32 %v6096, 0.001143296
        %v6098 = vmul.f32 %v6084, %v6097
        %v6099 = vadd.f32 %v6098, 0.014752088
        %v6100 = vmul.f32 %v6084, %v6099
        %v6101 = vadd.f32 %v6100, 0.112945676
        %v6102 = vmul.f32 %v6084, %v6101
        %v6103 = vadd.f32 %v6102, 0.4994258
        %v6104 = vmul.f32 %v6084, %v6103
        %v6105 = vadd.f32 %v6104, 1.0
        %v6106 = vrcp.pop %v6105
        %v6107 = vmul.f32 %v6105, %v6106
        %v6108 = vsub.f32 1.0, %v6107
        %v6109 = vmul.f32 %v6106, %v6108
        %v6110 = vadd.f32 %v6106, %v6109
        %vm6111 = vweird.f32 %v6105
        %vm6112 = vweird.f32 %v6106
        %vm6113 = vmor %vm6111, %vm6112
        %v6114 = vsel %vm6113, %v6106, %v6110
        %v6115 = vand.u32 2147483647, %v6105
        %vm6116 = vcmp.eq.f32.partialorder %v6115, 8.507059e+37
        %v6117 = vand.u32 %v6105, 2147483648
        %v6118 = vor.u32 1.1754944e-38, %v6117
        %v6119 = vsel %vm6116, %v6118, %v6114
        %v6120 = vmul.f32 %v6095, %v6119
        %v6121 = vmin.f32 %v6120, 1.0
        %v6122 = vmax.f32 %v6121, -1.0
        %v6123 = vmul.f32 %v5600, %v5600
        %v6124 = vmin.f32 16.0, %v6123
        %v6125 = vmul.f32 %v6124, 2.1237322e-06
        %v6126 = vadd.f32 %v6125, 0.00028619796
        %v6127 = vmul.f32 %v6124, %v6126
        %v6128 = vadd.f32 %v6127, 0.0036580483
        %v6129 = vmul.f32 %v6124, %v6128
        %v6130 = vadd.f32 %v6129, 0.05243302
        %v6131 = vmul.f32 %v6124, %v6130
        %v6132 = vadd.f32 %v6131, 0.18741608
        %v6133 = vmul.f32 %v6124, %v6132
        %v6134 = vadd.f32 %v6133, 1.1283791
        %v6135 = vmul.f32 %v5600, %v6134
        %v6136 = vmul.f32 %v6124, 3.8918573e-05
        %v6137 = vadd.f32 %v6136, 0.001143296
        %v6138 = vmul.f32 %v6124, %v6137
        %v6139 = vadd.f32 %v6138, 0.014752088
        %v6140 = vmul.f32 %v6124, %v6139
        %v6141 = vadd.f32 %v6140, 0.112945676
        %v6142 = vmul.f32 %v6124, %v6141
        %v6143 = vadd.f32 %v6142, 0.4994258
        %v6144 = vmul.f32 %v6124, %v6143
        %v6145 = vadd.f32 %v6144, 1.0
        %v6146 = vrcp.pop %v6145
        %v6147 = vmul.f32 %v6145, %v6146
        %v6148 = vsub.f32 1.0, %v6147
        %v6149 = vmul.f32 %v6146, %v6148
        %v6150 = vadd.f32 %v6146, %v6149
        %vm6151 = vweird.f32 %v6145
        %vm6152 = vweird.f32 %v6146
        %vm6153 = vmor %vm6151, %vm6152
        %v6154 = vsel %vm6153, %v6146, %v6150
        %v6155 = vand.u32 2147483647, %v6145
        %vm6156 = vcmp.eq.f32.partialorder %v6155, 8.507059e+37
        %v6157 = vand.u32 %v6145, 2147483648
        %v6158 = vor.u32 1.1754944e-38, %v6157
        %v6159 = vsel %vm6156, %v6158, %v6154
        %v6160 = vmul.f32 %v6135, %v6159
        %v6161 = vmin.f32 %v6160, 1.0
        %v6162 = vmax.f32 %v6161, -1.0
        %v6163 = vmul.f32 %v5601, %v5601
        %v6164 = vmin.f32 16.0, %v6163
        %v6165 = vmul.f32 %v6164, 2.1237322e-06
        %v6166 = vadd.f32 %v6165, 0.00028619796
        %v6167 = vmul.f32 %v6164, %v6166
        %v6168 = vadd.f32 %v6167, 0.0036580483
        %v6169 = vmul.f32 %v6164, %v6168
        %v6170 = vadd.f32 %v6169, 0.05243302
        %v6171 = vmul.f32 %v6164, %v6170
        %v6172 = vadd.f32 %v6171, 0.18741608
        %v6173 = vmul.f32 %v6164, %v6172
        %v6174 = vadd.f32 %v6173, 1.1283791
        %v6175 = vmul.f32 %v5601, %v6174
        %v6176 = vmul.f32 %v6164, 3.8918573e-05
        %v6177 = vadd.f32 %v6176, 0.001143296
        %v6178 = vmul.f32 %v6164, %v6177
        %v6179 = vadd.f32 %v6178, 0.014752088
        %v6180 = vmul.f32 %v6164, %v6179
        %v6181 = vadd.f32 %v6180, 0.112945676
        %v6182 = vmul.f32 %v6164, %v6181
        %v6183 = vadd.f32 %v6182, 0.4994258
        %v6184 = vmul.f32 %v6164, %v6183
        %v6185 = vadd.f32 %v6184, 1.0
        %v6186 = vrcp.pop %v6185
        %v6187 = vmul.f32 %v6185, %v6186
        %v6188 = vsub.f32 1.0, %v6187
        %v6189 = vmul.f32 %v6186, %v6188
        %v6190 = vadd.f32 %v6186, %v6189
        %vm6191 = vweird.f32 %v6185
        %vm6192 = vweird.f32 %v6186
        %vm6193 = vmor %vm6191, %vm6192
        %v6194 = vsel %vm6193, %v6186, %v6190
        %v6195 = vand.u32 2147483647, %v6185
        %vm6196 = vcmp.eq.f32.partialorder %v6195, 8.507059e+37
        %v6197 = vand.u32 %v6185, 2147483648
        %v6198 = vor.u32 1.1754944e-38, %v6197
        %v6199 = vsel %vm6196, %v6198, %v6194
        %v6200 = vmul.f32 %v6175, %v6199
        %v6201 = vmin.f32 %v6200, 1.0
        %v6202 = vmax.f32 %v6201, -1.0
        %v6203 = vmul.f32 %v5602, %v5602
        %v6204 = vmin.f32 16.0, %v6203
        %v6205 = vmul.f32 %v6204, 2.1237322e-06
        %v6206 = vadd.f32 %v6205, 0.00028619796
        %v6207 = vmul.f32 %v6204, %v6206
        %v6208 = vadd.f32 %v6207, 0.0036580483
        %v6209 = vmul.f32 %v6204, %v6208
        %v6210 = vadd.f32 %v6209, 0.05243302
        %v6211 = vmul.f32 %v6204, %v6210
        %v6212 = vadd.f32 %v6211, 0.18741608
        %v6213 = vmul.f32 %v6204, %v6212
        %v6214 = vadd.f32 %v6213, 1.1283791
        %v6215 = vmul.f32 %v5602, %v6214
        %v6216 = vmul.f32 %v6204, 3.8918573e-05
        %v6217 = vadd.f32 %v6216, 0.001143296
        %v6218 = vmul.f32 %v6204, %v6217
        %v6219 = vadd.f32 %v6218, 0.014752088
        %v6220 = vmul.f32 %v6204, %v6219
        %v6221 = vadd.f32 %v6220, 0.112945676
        %v6222 = vmul.f32 %v6204, %v6221
        %v6223 = vadd.f32 %v6222, 0.4994258
        %v6224 = vmul.f32 %v6204, %v6223
        %v6225 = vadd.f32 %v6224, 1.0
        %v6226 = vrcp.pop %v6225
        %v6227 = vmul.f32 %v6225, %v6226
        %v6228 = vsub.f32 1.0, %v6227
        %v6229 = vmul.f32 %v6226, %v6228
        %v6230 = vadd.f32 %v6226, %v6229
        %vm6231 = vweird.f32 %v6225
        %vm6232 = vweird.f32 %v6226
        %vm6233 = vmor %vm6231, %vm6232
        %v6234 = vsel %vm6233, %v6226, %v6230
        %v6235 = vand.u32 2147483647, %v6225
        %vm6236 = vcmp.eq.f32.partialorder %v6235, 8.507059e+37
        %v6237 = vand.u32 %v6225, 2147483648
        %v6238 = vor.u32 1.1754944e-38, %v6237
        %v6239 = vsel %vm6236, %v6238, %v6234
        %v6240 = vmul.f32 %v6215, %v6239
        %v6241 = vmin.f32 %v6240, 1.0
        %v6242 = vmax.f32 %v6241, -1.0
        %v6243 = vadd.f32 %v5642, 1.0
        %v6244 = vadd.f32 %v5682, 1.0
        %v6245 = vadd.f32 %v5722, 1.0
        %v6246 = vadd.f32 %v5762, 1.0
        %v6247 = vadd.f32 %v5802, 1.0
        %v6248 = vadd.f32 %v5842, 1.0
        %v6249 = vadd.f32 %v5882, 1.0
        %v6250 = vadd.f32 %v5922, 1.0
        %v6251 = vadd.f32 %v5962, 1.0
        %v6252 = vadd.f32 %v6002, 1.0
        %v6253 = vadd.f32 %v6042, 1.0
        %v6254 = vadd.f32 %v6082, 1.0
        %v6255 = vadd.f32 %v6122, 1.0
        %v6256 = vadd.f32 %v6162, 1.0
        %v6257 = vadd.f32 %v6202, 1.0
        %v6258 = vadd.f32 %v6242, 1.0
        %v6259 = vmul.f32 %v5571, %v6243
        %v6260 = vmul.f32 %v5572, %v6244
        %v6261 = vmul.f32 %v5573, %v6245
        %v6262 = vmul.f32 %v5574, %v6246
        %v6263 = vmul.f32 %v5575, %v6247
        %v6264 = vmul.f32 %v5576, %v6248
        %v6265 = vmul.f32 %v5577, %v6249
        %v6266 = vmul.f32 %v5578, %v6250
        %v6267 = vmul.f32 %v5579, %v6251
        %v6268 = vmul.f32 %v5580, %v6252
        %v6269 = vmul.f32 %v5581, %v6253
        %v6270 = vmul.f32 %v5582, %v6254
        %v6271 = vmul.f32 %v5583, %v6255
        %v6272 = vmul.f32 %v5584, %v6256
        %v6273 = vmul.f32 %v5585, %v6257
        %v6274 = vmul.f32 %v5586, %v6258
        %v6275 = vld [vmem:[#allocation15 + $0x3] ss:$0 sm:$0xff]
        %v6276 = vld [vmem:[#allocation15 + $0x4] ss:$0 sm:$0xff]
        %v6277 = vmul.f32 %v6259, %v6275
        %v6278 = vmul.f32 %v6260, %v6275
        %v6279 = vmul.f32 %v6261, %v6275
        %v6280 = vmul.f32 %v6262, %v6275
        %v6281 = vmul.f32 %v6263, %v6275
        %v6282 = vmul.f32 %v6264, %v6275
        %v6283 = vmul.f32 %v6265, %v6275
        %v6284 = vmul.f32 %v6266, %v6275
        %v6285 = vmul.f32 %v6267, %v6275
        %v6286 = vmul.f32 %v6268, %v6275
        %v6287 = vmul.f32 %v6269, %v6275
        %v6288 = vmul.f32 %v6270, %v6275
        %v6289 = vmul.f32 %v6271, %v6275
        %v6290 = vmul.f32 %v6272, %v6275
        %v6291 = vmul.f32 %v6273, %v6275
        %v6292 = vmul.f32 %v6274, %v6275
        %6293 = vadd.xlane.f32.xlu0 %v6277
        %v6294 = vpop.xlane.xlu0 %6293
        %6295 = vadd.xlane.f32.xlu0 %v6278
        %v6296 = vpop.xlane.xlu0 %6295
        %6297 = vadd.xlane.f32.xlu0 %v6279
        %v6298 = vpop.xlane.xlu0 %6297
        %6299 = vadd.xlane.f32.xlu0 %v6280
        %v6300 = vpop.xlane.xlu0 %6299
        %6301 = vadd.xlane.f32.xlu0 %v6281
        %v6302 = vpop.xlane.xlu0 %6301
        %6303 = vadd.xlane.f32.xlu0 %v6282
        %v6304 = vpop.xlane.xlu0 %6303
        %6305 = vadd.xlane.f32.xlu0 %v6283
        %v6306 = vpop.xlane.xlu0 %6305
        %6307 = vadd.xlane.f32.xlu0 %v6284
        %v6308 = vpop.xlane.xlu0 %6307
        %6309 = vadd.xlane.f32.xlu0 %v6285
        %v6310 = vpop.xlane.xlu0 %6309
        %6311 = vadd.xlane.f32.xlu0 %v6286
        %v6312 = vpop.xlane.xlu0 %6311
        %6313 = vadd.xlane.f32.xlu0 %v6287
        %v6314 = vpop.xlane.xlu0 %6313
        %6315 = vadd.xlane.f32.xlu0 %v6288
        %v6316 = vpop.xlane.xlu0 %6315
        %6317 = vadd.xlane.f32.xlu0 %v6289
        %v6318 = vpop.xlane.xlu0 %6317
        %6319 = vadd.xlane.f32.xlu0 %v6290
        %v6320 = vpop.xlane.xlu0 %6319
        %6321 = vadd.xlane.f32.xlu0 %v6291
        %v6322 = vpop.xlane.xlu0 %6321
        %6323 = vadd.xlane.f32.xlu0 %v6292
        %v6324 = vpop.xlane.xlu0 %6323
        %v6325 = vadd.f32 %v6294, %v6276
        %v6326 = vadd.f32 %v6296, %v6276
        %v6327 = vadd.f32 %v6298, %v6276
        %v6328 = vadd.f32 %v6300, %v6276
        %v6329 = vadd.f32 %v6302, %v6276
        %v6330 = vadd.f32 %v6304, %v6276
        %v6331 = vadd.f32 %v6306, %v6276
        %v6332 = vadd.f32 %v6308, %v6276
        %v6333 = vadd.f32 %v6310, %v6276
        %v6334 = vadd.f32 %v6312, %v6276
        %v6335 = vadd.f32 %v6314, %v6276
        %v6336 = vadd.f32 %v6316, %v6276
        %v6337 = vadd.f32 %v6318, %v6276
        %v6338 = vadd.f32 %v6320, %v6276
        %v6339 = vadd.f32 %v6322, %v6276
        %v6340 = vadd.f32 %v6324, %v6276
        %vm6341 = vcmask 7168
        %6342 = vst.msk [vmem:[%s512] sm:$0xff] %vm6341, %v6325
        %6343 = vst.msk [vmem:[%s512 + $0x8] sm:$0xff] %vm6341, %v6326
        %6344 = vst.msk [vmem:[%s512 + $0x10] sm:$0xff] %vm6341, %v6327
        %6345 = vst.msk [vmem:[%s512 + $0x18] sm:$0xff] %vm6341, %v6328
        %6346 = vst.msk [vmem:[%s512 + $0x20] sm:$0xff] %vm6341, %v6329
        %6347 = vst.msk [vmem:[%s512 + $0x28] sm:$0xff] %vm6341, %v6330
        %6348 = vst.msk [vmem:[%s512 + $0x30] sm:$0xff] %vm6341, %v6331
        %6349 = vst.msk [vmem:[%s512 + $0x38] sm:$0xff] %vm6341, %v6332
        %6350 = vst.msk [vmem:[%s512 + $0x40] sm:$0xff] %vm6341, %v6333
        %6351 = vst.msk [vmem:[%s512 + $0x48] sm:$0xff] %vm6341, %v6334
        %6352 = vst.msk [vmem:[%s512 + $0x50] sm:$0xff] %vm6341, %v6335
        %6353 = vst.msk [vmem:[%s512 + $0x58] sm:$0xff] %vm6341, %v6336
        %6354 = vst.msk [vmem:[%s512 + $0x60] sm:$0xff] %vm6341, %v6337
        %6355 = vst.msk [vmem:[%s512 + $0x68] sm:$0xff] %vm6341, %v6338
        %6356 = vst.msk [vmem:[%s512 + $0x70] sm:$0xff] %vm6341, %v6339
        %6357 = vst.msk [vmem:[%s512 + $0x78] sm:$0xff] %vm6341, %v6340
        %s6358 = smul.u32 16, %s29
        %p6359 = scmp.lt.s32.totalorder %s6358, 31
        %s6360 = scalar_select %p6359, %s6358, 31
        %s6361 = smul.addr %s6360, 8
        %s6362 = scalar_lea.vmem %s9, %s6361
        // Predicated region
        $region93: #{tpu_custom_call.1} parent=55 // pred_check
          %p6363 = pneg %p246
        $region94: #{tpu_custom_call.1} parent=55 // pred_check_branch
          %6365 = sbr.rel (%p6363) target = $region96
        $region95: #{tpu_custom_call.1} parent=55 // pred_region
          %s6366 = smul.u32 16, %s29
        $region96: #{tpu_custom_call.1} parent=55 // pred_fallthru
          _
      $region56: #{tpu_custom_call.1} parent=5 // pred_fallthru
        _
      %p6367 = scmp.le.s32.totalorder 2, %s24
      // Predicated region
      $region97: #{tpu_custom_call.1} parent=5 // pred_check
        %p6368 = pneg %p6367
      $region98: #{tpu_custom_call.1} parent=5 // pred_check_branch
        %6370 = sbr.rel (%p6368) target = $region100
      $region99: #{tpu_custom_call.1} parent=5 // pred_region
        %s6371 = ssub.s32 %s24, 2
        // Predicated region
        $region101: #{tpu_custom_call.1} parent=99 // pred_check
          %p6372 = pneg %p252
        $region102: #{tpu_custom_call.1} parent=99 // pred_check_branch
          %6374 = sbr.rel (%p6372) target = $region104
        $region103: #{tpu_custom_call.1} parent=99 // pred_region
          %s6375 = smul.u32 16, %s30
          %p6376 = scmp.lt.s32.totalorder %s6375, 31
          %s6377 = scalar_select %p6376, %s6375, 31
          %s6378 = smul.addr %s6377, 8
          %s6379 = scalar_lea.vmem %s9, %s6378
        $region104: #{tpu_custom_call.1} parent=99 // pred_fallthru
          _
      $region100: #{tpu_custom_call.1} parent=5 // pred_fallthru
        _
    $region6: #{tpu_custom_call.1} parent=1 // loop_footer
      %s28 = sadd.s32 1, %s24
    $region7: #{tpu_custom_call.1} parent=1 // loop_footer_branch
      %23 = sbr.rel target = $region3
    $region8: #{tpu_custom_call.1} parent=1 // loop_exit
      _
    %6380 = vsyncpa [#allocation3], 1
    %s6381 = scalar_lea.sflag [#allocation3], 1
    %6382 = vsyncpa %s6381, 1
    %6383 = vsyncpa [#allocation5], 1
    %s6384 = scalar_lea.sflag [#allocation5], 1
    %6385 = vsyncpa %s6384, 1
    %6386 = vsyncpa [#allocation8], 1
    %6387 = vsyncpa [#allocation11], 1
    %6388 = vsyncpa [#allocation14], 1

</llo_original>
